<compile_context>
chip_gen: v6e
topology: v6e:2x2x1
jax: 0.10.0
libtpu: 0.0.40
codegen_flags: <defaults>
</compile_context>

<pallas_src>
import numpy as np
import jax
import jax.numpy as jnp
from jax import lax
from jax.experimental import pallas as pl
from jax.experimental.pallas import tpu as pltpu

DIM = 8            # dim1 = dim2 = dim3 = dim4
DC = DIM + 1       # each o_i gets a constant "1" column appended
NB = 4             # number of gated branches
HID = NB * DIM     # 32  (batched hidden width)
SKIP = NB * DC     # 36  (width of [o1c|o2c|o3c|o4c])
MMHID = 32
BATCH = 8

_WO_OFF = 128      # lane offset of Wo block inside the gate-weight slab
_WZ_OFF = 256      # lane offset of Wz block inside the gate-weight slab


def _relu(x):
    return jnp.maximum(x, 0.0)


# ---- in-kernel constant builders (iota masks; exact float div/mod tricks) ----
def _fiota(shape, axis):
    return lax.broadcasted_iota(jnp.int32, shape, axis).astype(jnp.float32)


def _fdiv(x, d):
    # exact floor(x / d) for small non-negative integer-valued f32 x
    return jnp.floor((x + 0.5) * (1.0 / d))


def _fmod(x, d):
    return x - d * _fdiv(x, d)


def multilinear_fusion_kernel(x_ref, wg_ref, b_ref, w1_ref, w2_ref, out_ref):
    f32 = jnp.float32
    B = x_ref.shape[0]

    # ---- unpack packed operands (static slices, no extra DMAs) --------------
    x = x_ref[...]                              # (B, 64)
    v_cat = x[:, 0:HID]                         # [v1|v2|v3|v4]
    va_cat = x[:, HID:2 * HID]                  # [v1|v2|v1|v4] (bilinear-left)
    v3 = x[:, 2 * DIM:3 * DIM]                  # vec3

    wh = wg_ref[:, 0:HID]                       # (32, 32)  block-diag h weights
    wo = wg_ref[:, _WO_OFF:_WO_OFF + SKIP]      # (32, 36)  block-diag o weights (+zero cols)
    wz = wg_ref[:, _WZ_OFF:_WZ_OFF + HID * DIM] # (32, 256) block-diag bilinear weights

    bias = b_ref[...]                           # (8, 64)
    bh = bias[0:1, 0:HID]
    bz = bias[1:2, 0:HID]
    bo = bias[2:3, 0:SKIP]
    b1 = bias[3:4, 0:MMHID]
    b2 = bias[4:5, 0:MMHID]

    # ---- four gated branches, batched via block-diagonal weights ------------
    h = _relu(jnp.dot(v_cat, wh, preferred_element_type=f32) + bh)     # (B, 32)
    t = jnp.dot(va_cat, wz, preferred_element_type=f32)                # (B, 256)

    # tile vec3 32x along lanes:  v3t[b, i*64 + k*8 + j] = v3[b, j]
    r = _fiota((DIM, HID * DIM), 0)
    c = _fiota((DIM, HID * DIM), 1)
    tz = (_fmod(c, DIM) == r).astype(f32)
    v3t = jnp.dot(v3, tz, preferred_element_type=f32)                  # (B, 256)

    # block-sum over j (groups of 8):  z[b, i*8+k] = sum_j t*v3t
    r = _fiota((HID * DIM, HID), 0)
    c = _fiota((HID * DIM, HID), 1)
    smat = (_fdiv(r, DIM) == c).astype(f32)
    z = jnp.dot(t * v3t, smat, preferred_element_type=f32) + bz        # (B, 32)

    g = jax.nn.sigmoid(z) * h

    # o projection with ppad folded into wo (appended column: ReLU(0)=0, then +1)
    c = _fiota((B, SKIP), 1)
    ones_col = (_fmod(c, DC) == DIM).astype(f32)
    oc = _relu(jnp.dot(g, wo, preferred_element_type=f32) + bo) + ones_col
    # oc = [o1c | o2c | o3c | o4c], each DC=9 wide                     (B, 36)

    # ---- flattened outer products (torch bmm + flatten order) ---------------
    # o12[b, i*9+j] = o1c[b,i] * o2c[b,j]
    r = _fiota((SKIP, DC * DC), 0)
    c = _fiota((SKIP, DC * DC), 1)
    e1 = ((r < DC) & (_fdiv(c, DC) == r)).astype(f32)                       # select+repeat o1c
    t1 = ((r >= DC) & (r < 2 * DC) & (_fmod(c, DC) == r - DC)).astype(f32)  # select+tile   o2c
    o12 = (jnp.dot(oc, e1, preferred_element_type=f32) *
           jnp.dot(oc, t1, preferred_element_type=f32))                # (B, 81)

    # o123[b, p*9+k] = o12[b,p] * o3c[b,k]
    r = _fiota((DC * DC, DC ** 3), 0)
    c = _fiota((DC * DC, DC ** 3), 1)
    e2 = (_fdiv(c, DC) == r).astype(f32)                               # repeat o12 9x
    r = _fiota((SKIP, DC ** 3), 0)
    c = _fiota((SKIP, DC ** 3), 1)
    t2 = ((r >= 2 * DC) & (r < 3 * DC) &
          (_fmod(c, DC) == r - 2 * DC)).astype(f32)                    # select+tile o3c
    o123 = (jnp.dot(o12, e2, preferred_element_type=f32) *
            jnp.dot(oc, t2, preferred_element_type=f32))               # (B, 729)

    # ---- encoder1 on the implicit DC^4 fused vector (never materialized) ----
    #   W1 reshaped host-side to (729, 9*32):  T[b, l*32+m] = sum_p o123 * W1
    #   out1[b, m] = relu( sum_l o4c[b, l] * T[b, l*32+m] + b1[m] )
    T = jnp.dot(o123.astype(jnp.bfloat16), w1_ref[...],
                preferred_element_type=f32)                            # (B, 288)
    r = _fiota((SKIP, DC * MMHID), 0)
    c = _fiota((SKIP, DC * MMHID), 1)
    rep4 = ((r >= 3 * DC) & (_fdiv(c, MMHID) == r - 3 * DC)).astype(f32)
    o4rep = jnp.dot(oc, rep4, preferred_element_type=f32)              # (B, 288)
    r = _fiota((DC * MMHID, MMHID), 0)
    c = _fiota((DC * MMHID, MMHID), 1)
    gsum = (_fmod(r, MMHID) == c).astype(f32)
    out1 = _relu(jnp.dot(T * o4rep, gsum, preferred_element_type=f32) + b1)

    # ---- encoder2 on concat([out1, o1c, o2c, o3c, o4c]) : 2 dots ------------
    pre2 = (jnp.dot(out1, w2_ref[0:MMHID, :], preferred_element_type=f32) +
            jnp.dot(oc, w2_ref[MMHID:MMHID + SKIP, :], preferred_element_type=f32) +
            b2)
    out_ref[...] = _relu(pre2)


def init_params(key):
    ks = iter(jax.random.split(key, 64))

    def nrm(shape, fan_in):
        return jax.random.normal(next(ks), shape, jnp.float32) / np.sqrt(fan_in)

    branches = []
    for _ in range(NB):
        branches.append(dict(
            wh=nrm((DIM, DIM), DIM), bh=nrm((1, DIM), DIM),
            wz_full=nrm((DIM, DIM, DIM), DIM), bz=nrm((1, DIM), DIM),
            wo=nrm((DIM, DIM), DIM), bo=nrm((1, DIM), DIM)))
    wenc1 = nrm((DC ** 4, MMHID), DC ** 4)
    benc1 = nrm((1, MMHID), DC ** 4)
    wenc2 = nrm((MMHID + SKIP, MMHID), MMHID + SKIP)
    benc2 = nrm((1, MMHID), MMHID + SKIP)
    return dict(branches=branches, wenc1=wenc1, benc1=benc1,
                wenc2=wenc2, benc2=benc2)


def run_pallas(v1, v2, v3, v4, params):
    f32 = np.float32
    B = v1.shape[0]

    # activation slab: [h-path inputs | bilinear-left inputs]  -> one DMA
    x_in = jnp.concatenate([v1, v2, v3, v4, v1, v2, v1, v4], axis=1)   # (B, 64)

    # --- one-time host-side weight packing (block-diagonal + ppad fold) ------
    wg = np.zeros((HID, _WZ_OFF + HID * DIM), f32)                     # (32, 512)
    bias = np.zeros((8, 64), f32)
    for i, br in enumerate(params["branches"]):
        rows = slice(i * DIM, (i + 1) * DIM)
        wh_i = np.asarray(br["wh"], f32)
        wo_i = np.asarray(br["wo"], f32)
        # bilinear weight (out,in1,in2) -> (in1, out*in2) so it is a plain matmul
        wz_i = np.transpose(np.asarray(br["wz_full"], f32), (1, 0, 2)).reshape(DIM, DIM * DIM)
        wg[rows, i * DIM:(i + 1) * DIM] = wh_i
        wg[rows, _WO_OFF + i * DC:_WO_OFF + i * DC + DIM] = wo_i       # col i*DC+8 stays 0 (ppad fold)
        wg[rows, _WZ_OFF + i * DIM * DIM:_WZ_OFF + (i + 1) * DIM * DIM] = wz_i
        bias[0, i * DIM:(i + 1) * DIM] = np.asarray(br["bh"], f32)[0]
        bias[1, i * DIM:(i + 1) * DIM] = np.asarray(br["bz"], f32)[0]
        bias[2, i * DC:i * DC + DIM] = np.asarray(br["bo"], f32)[0]
    bias[3, 0:MMHID] = np.asarray(params["benc1"], f32)[0]
    bias[4, 0:MMHID] = np.asarray(params["benc2"], f32)[0]

    # encoder1 weight (DC^4, MMHID), row p*DC+l -> (DC^3, DC*MMHID), col l*MMHID+m
    w1 = np.asarray(params["wenc1"], f32).reshape(DC ** 3, DC * MMHID)
    w1 = jnp.asarray(w1, jnp.bfloat16)                                 # dominant traffic in bf16
    w2 = jnp.asarray(params["wenc2"], jnp.float32)                     # (68, 32)

    vmem = pl.BlockSpec(memory_space=pltpu.MemorySpace.VMEM)
    return pl.pallas_call(
        multilinear_fusion_kernel,
        out_shape=jax.ShapeDtypeStruct((B, MMHID), jnp.float32),
        in_specs=[vmem] * 5,
        out_specs=vmem,
    )(x_in, jnp.asarray(wg), jnp.asarray(bias), w1, w2)


def reference(v1, v2, v3, v4, params):
    def gated(vh, va, br):
        h = _relu(vh @ br["wh"] + br["bh"])
        z = jnp.einsum('bi,kij,bj->bk', va, br["wz_full"], v3) + br["bz"]
        g = jax.nn.sigmoid(z) * h
        return _relu(g @ br["wo"] + br["bo"])

    b1, b2, b3, b4 = params["branches"]
    o1 = gated(v1, v1, b1)
    o2 = gated(v2, v2, b2)
    o3 = gated(v3, v1, b3)
    o4 = gated(v4, v4, b4)
    b = v1.shape[0]
    one = jnp.ones((b, 1), jnp.float32)
    o1c = jnp.concatenate([o1, one], 1)
    o2c = jnp.concatenate([o2, one], 1)
    o3c = jnp.concatenate([o3, one], 1)
    o4c = jnp.concatenate([o4, one], 1)
    o12 = (o1c[:, :, None] * o2c[:, None, :]).reshape(b, -1)
    o123 = (o12[:, :, None] * o3c[:, None, :]).reshape(b, -1)
    o1234 = (o123[:, :, None] * o4c[:, None, :]).reshape(b, -1)
    out1 = _relu(o1234 @ params["wenc1"] + params["benc1"])
    cat = jnp.concatenate([out1, o1c, o2c, o3c, o4c], 1)
    return _relu(cat @ params["wenc2"] + params["benc2"])


if __name__ == "__main__":
    key = jax.random.PRNGKey(0)
    kp, k1, k2, k3, k4 = jax.random.split(key, 5)
    params = init_params(kp)
    v1 = jax.random.normal(k1, (BATCH, DIM), jnp.float32)
    v2 = jax.random.normal(k2, (BATCH, DIM), jnp.float32)
    v3 = jax.random.normal(k3, (BATCH, DIM), jnp.float32)
    v4 = jax.random.normal(k4, (BATCH, DIM), jnp.float32)

    out = jax.block_until_ready(run_pallas(v1, v2, v3, v4, params))

    ref = reference(v1, v2, v3, v4, params)
    np.testing.assert_allclose(np.asarray(out), np.asarray(ref),
                               rtol=2e-2, atol=2e-2)
    print("KERNEL_OK")
</pallas_src>

<mosaic_0001>
module attributes {stable_mosaic.version = 11 : i64} {
  func.func @multilinear_fusion_kernel(%arg0: memref<8x64xf32, #tpu.memory_space<vmem>>, %arg1: memref<32x512xf32, #tpu.memory_space<vmem>>, %arg2: memref<8x64xf32, #tpu.memory_space<vmem>>, %arg3: memref<729x288xbf16, #tpu.memory_space<vmem>>, %arg4: memref<68x32xf32, #tpu.memory_space<vmem>>, %arg5: memref<8x32xf32, #tpu.memory_space<vmem>>) attributes {dimension_semantics = [], scalar_prefetch = 0 : i64, scratch_operands = 0 : i64, tpu.core_type = #tpu.core_type<tc>} {
    %c0 = arith.constant 0 : index
    %c0_0 = arith.constant 0 : index
    %0 = vector.load %arg0[%c0, %c0_0] : memref<8x64xf32, #tpu.memory_space<vmem>>, vector<8x64xf32>
    %1 = vector.extract_strided_slice %0 {offsets = [0, 0], sizes = [8, 32], strides = [1, 1]} : vector<8x64xf32> to vector<8x32xf32>
    %2 = vector.extract_strided_slice %0 {offsets = [0, 32], sizes = [8, 32], strides = [1, 1]} : vector<8x64xf32> to vector<8x32xf32>
    %3 = vector.extract_strided_slice %0 {offsets = [0, 16], sizes = [8, 8], strides = [1, 1]} : vector<8x64xf32> to vector<8x8xf32>
    %c0_1 = arith.constant 0 : index
    %c0_2 = arith.constant 0 : index
    %4 = vector.load %arg1[%c0_1, %c0_2] : memref<32x512xf32, #tpu.memory_space<vmem>>, vector<32x32xf32>
    %c0_3 = arith.constant 0 : index
    %c128 = arith.constant 128 : index
    %5 = vector.load %arg1[%c0_3, %c128] : memref<32x512xf32, #tpu.memory_space<vmem>>, vector<32x36xf32>
    %c0_4 = arith.constant 0 : index
    %c256 = arith.constant 256 : index
    %6 = vector.load %arg1[%c0_4, %c256] : memref<32x512xf32, #tpu.memory_space<vmem>>, vector<32x256xf32>
    %c0_5 = arith.constant 0 : index
    %c0_6 = arith.constant 0 : index
    %7 = vector.load %arg2[%c0_5, %c0_6] : memref<8x64xf32, #tpu.memory_space<vmem>>, vector<8x64xf32>
    %8 = vector.extract_strided_slice %7 {offsets = [0, 0], sizes = [1, 32], strides = [1, 1]} : vector<8x64xf32> to vector<1x32xf32>
    %9 = vector.extract_strided_slice %7 {offsets = [1, 0], sizes = [1, 32], strides = [1, 1]} : vector<8x64xf32> to vector<1x32xf32>
    %10 = vector.extract_strided_slice %7 {offsets = [2, 0], sizes = [1, 36], strides = [1, 1]} : vector<8x64xf32> to vector<1x36xf32>
    %11 = vector.extract_strided_slice %7 {offsets = [3, 0], sizes = [1, 32], strides = [1, 1]} : vector<8x64xf32> to vector<1x32xf32>
    %12 = vector.extract_strided_slice %7 {offsets = [4, 0], sizes = [1, 32], strides = [1, 1]} : vector<8x64xf32> to vector<1x32xf32>
    %cst = arith.constant dense<0.000000e+00> : vector<8x32xf32>
    %13 = tpu.matmul %1, %4, %cst {dimension_numbers = #tpu.dot_dimension_numbers<[1], [0], [0], [1], [0, 0, 1, 1], [], []>} : vector<8x32xf32>, vector<32x32xf32>, vector<8x32xf32> -> vector<8x32xf32>
    %14 = vector.broadcast %8 : vector<1x32xf32> to vector<8x32xf32>
    %15 = arith.addf %13, %14 : vector<8x32xf32>
    %cst_7 = arith.constant 0.000000e+00 : f32
    %16 = vector.broadcast %cst_7 : f32 to vector<8x32xf32>
    %17 = arith.maximumf %15, %16 : vector<8x32xf32>
    %cst_8 = arith.constant dense<0.000000e+00> : vector<8x256xf32>
    %18 = tpu.matmul %2, %6, %cst_8 {dimension_numbers = #tpu.dot_dimension_numbers<[1], [0], [0], [1], [0, 0, 1, 1], [], []>} : vector<8x32xf32>, vector<32x256xf32>, vector<8x256xf32> -> vector<8x256xf32>
    %19 = tpu.iota {dimensions = array<i32: 0>} : vector<8x256xi32>
    %20 = arith.sitofp %19 : vector<8x256xi32> to vector<8x256xf32>
    %21 = tpu.iota {dimensions = array<i32: 1>} : vector<8x256xi32>
    %22 = arith.sitofp %21 : vector<8x256xi32> to vector<8x256xf32>
    %cst_9 = arith.constant 5.000000e-01 : f32
    %23 = vector.broadcast %cst_9 : f32 to vector<8x256xf32>
    %24 = arith.addf %22, %23 : vector<8x256xf32>
    %cst_10 = arith.constant 1.250000e-01 : f32
    %25 = vector.broadcast %cst_10 : f32 to vector<8x256xf32>
    %26 = arith.mulf %24, %25 : vector<8x256xf32>
    %27 = math.floor %26 : vector<8x256xf32>
    %cst_11 = arith.constant 8.000000e+00 : f32
    %28 = vector.broadcast %cst_11 : f32 to vector<8x256xf32>
    %29 = arith.mulf %28, %27 : vector<8x256xf32>
    %30 = arith.subf %22, %29 : vector<8x256xf32>
    %31 = arith.cmpf oeq, %30, %20 : vector<8x256xf32>
    %32 = arith.extui %31 : vector<8x256xi1> to vector<8x256xi32>
    %33 = arith.sitofp %32 : vector<8x256xi32> to vector<8x256xf32>
    %cst_12 = arith.constant dense<0.000000e+00> : vector<8x256xf32>
    %34 = tpu.matmul %3, %33, %cst_12 {dimension_numbers = #tpu.dot_dimension_numbers<[1], [0], [0], [1], [0, 0, 1, 1], [], []>} : vector<8x8xf32>, vector<8x256xf32>, vector<8x256xf32> -> vector<8x256xf32>
    %35 = tpu.iota {dimensions = array<i32: 0>} : vector<256x32xi32>
    %36 = arith.sitofp %35 : vector<256x32xi32> to vector<256x32xf32>
    %37 = tpu.iota {dimensions = array<i32: 1>} : vector<256x32xi32>
    %38 = arith.sitofp %37 : vector<256x32xi32> to vector<256x32xf32>
    %cst_13 = arith.constant 5.000000e-01 : f32
    %39 = vector.broadcast %cst_13 : f32 to vector<256x32xf32>
    %40 = arith.addf %36, %39 : vector<256x32xf32>
    %cst_14 = arith.constant 1.250000e-01 : f32
    %41 = vector.broadcast %cst_14 : f32 to vector<256x32xf32>
    %42 = arith.mulf %40, %41 : vector<256x32xf32>
    %43 = math.floor %42 : vector<256x32xf32>
    %44 = arith.cmpf oeq, %43, %38 : vector<256x32xf32>
    %45 = arith.extui %44 : vector<256x32xi1> to vector<256x32xi32>
    %46 = arith.sitofp %45 : vector<256x32xi32> to vector<256x32xf32>
    %47 = arith.mulf %18, %34 : vector<8x256xf32>
    %cst_15 = arith.constant dense<0.000000e+00> : vector<8x32xf32>
    %48 = tpu.matmul %47, %46, %cst_15 {dimension_numbers = #tpu.dot_dimension_numbers<[1], [0], [0], [1], [0, 0, 1, 1], [], []>} : vector<8x256xf32>, vector<256x32xf32>, vector<8x32xf32> -> vector<8x32xf32>
    %49 = vector.broadcast %9 : vector<1x32xf32> to vector<8x32xf32>
    %50 = arith.addf %48, %49 : vector<8x32xf32>
    %51 = arith.negf %50 : vector<8x32xf32>
    %52 = math.exp %51 : vector<8x32xf32>
    %cst_16 = arith.constant 1.000000e+00 : f32
    %53 = vector.broadcast %cst_16 : f32 to vector<8x32xf32>
    %54 = arith.addf %53, %52 : vector<8x32xf32>
    %55 = arith.divf %53, %54 : vector<8x32xf32>
    %56 = arith.mulf %55, %17 : vector<8x32xf32>
    %57 = tpu.iota {dimensions = array<i32: 1>} : vector<8x36xi32>
    %58 = arith.sitofp %57 : vector<8x36xi32> to vector<8x36xf32>
    %cst_17 = arith.constant 5.000000e-01 : f32
    %59 = vector.broadcast %cst_17 : f32 to vector<8x36xf32>
    %60 = arith.addf %58, %59 : vector<8x36xf32>
    %cst_18 = arith.constant 0.111111112 : f32
    %61 = vector.broadcast %cst_18 : f32 to vector<8x36xf32>
    %62 = arith.mulf %60, %61 : vector<8x36xf32>
    %63 = math.floor %62 : vector<8x36xf32>
    %cst_19 = arith.constant 9.000000e+00 : f32
    %64 = vector.broadcast %cst_19 : f32 to vector<8x36xf32>
    %65 = arith.mulf %64, %63 : vector<8x36xf32>
    %66 = arith.subf %58, %65 : vector<8x36xf32>
    %cst_20 = arith.constant 8.000000e+00 : f32
    %67 = vector.broadcast %cst_20 : f32 to vector<8x36xf32>
    %68 = arith.cmpf oeq, %66, %67 : vector<8x36xf32>
    %69 = arith.extui %68 : vector<8x36xi1> to vector<8x36xi32>
    %70 = arith.sitofp %69 : vector<8x36xi32> to vector<8x36xf32>
    %cst_21 = arith.constant dense<0.000000e+00> : vector<8x36xf32>
    %71 = tpu.matmul %56, %5, %cst_21 {dimension_numbers = #tpu.dot_dimension_numbers<[1], [0], [0], [1], [0, 0, 1, 1], [], []>} : vector<8x32xf32>, vector<32x36xf32>, vector<8x36xf32> -> vector<8x36xf32>
    %72 = vector.broadcast %10 : vector<1x36xf32> to vector<8x36xf32>
    %73 = arith.addf %71, %72 : vector<8x36xf32>
    %cst_22 = arith.constant 0.000000e+00 : f32
    %74 = vector.broadcast %cst_22 : f32 to vector<8x36xf32>
    %75 = arith.maximumf %73, %74 : vector<8x36xf32>
    %76 = arith.addf %75, %70 : vector<8x36xf32>
    %77 = tpu.iota {dimensions = array<i32: 0>} : vector<36x81xi32>
    %78 = arith.sitofp %77 : vector<36x81xi32> to vector<36x81xf32>
    %79 = tpu.iota {dimensions = array<i32: 1>} : vector<36x81xi32>
    %80 = arith.sitofp %79 : vector<36x81xi32> to vector<36x81xf32>
    %cst_23 = arith.constant 9.000000e+00 : f32
    %81 = vector.broadcast %cst_23 : f32 to vector<36x81xf32>
    %82 = arith.cmpf olt, %78, %81 : vector<36x81xf32>
    %cst_24 = arith.constant 5.000000e-01 : f32
    %83 = vector.broadcast %cst_24 : f32 to vector<36x81xf32>
    %84 = arith.addf %80, %83 : vector<36x81xf32>
    %cst_25 = arith.constant 0.111111112 : f32
    %85 = vector.broadcast %cst_25 : f32 to vector<36x81xf32>
    %86 = arith.mulf %84, %85 : vector<36x81xf32>
    %87 = math.floor %86 : vector<36x81xf32>
    %88 = arith.cmpf oeq, %87, %78 : vector<36x81xf32>
    %89 = arith.andi %82, %88 : vector<36x81xi1>
    %90 = arith.extui %89 : vector<36x81xi1> to vector<36x81xi32>
    %91 = arith.sitofp %90 : vector<36x81xi32> to vector<36x81xf32>
    %cst_26 = arith.constant 9.000000e+00 : f32
    %92 = vector.broadcast %cst_26 : f32 to vector<36x81xf32>
    %93 = arith.cmpf oge, %78, %92 : vector<36x81xf32>
    %cst_27 = arith.constant 1.800000e+01 : f32
    %94 = vector.broadcast %cst_27 : f32 to vector<36x81xf32>
    %95 = arith.cmpf olt, %78, %94 : vector<36x81xf32>
    %96 = arith.andi %93, %95 : vector<36x81xi1>
    %cst_28 = arith.constant 5.000000e-01 : f32
    %97 = vector.broadcast %cst_28 : f32 to vector<36x81xf32>
    %98 = arith.addf %80, %97 : vector<36x81xf32>
    %cst_29 = arith.constant 0.111111112 : f32
    %99 = vector.broadcast %cst_29 : f32 to vector<36x81xf32>
    %100 = arith.mulf %98, %99 : vector<36x81xf32>
    %101 = math.floor %100 : vector<36x81xf32>
    %cst_30 = arith.constant 9.000000e+00 : f32
    %102 = vector.broadcast %cst_30 : f32 to vector<36x81xf32>
    %103 = arith.mulf %102, %101 : vector<36x81xf32>
    %104 = arith.subf %80, %103 : vector<36x81xf32>
    %cst_31 = arith.constant 9.000000e+00 : f32
    %105 = vector.broadcast %cst_31 : f32 to vector<36x81xf32>
    %106 = arith.subf %78, %105 : vector<36x81xf32>
    %107 = arith.cmpf oeq, %104, %106 : vector<36x81xf32>
    %108 = arith.andi %96, %107 : vector<36x81xi1>
    %109 = arith.extui %108 : vector<36x81xi1> to vector<36x81xi32>
    %110 = arith.sitofp %109 : vector<36x81xi32> to vector<36x81xf32>
    %cst_32 = arith.constant dense<0.000000e+00> : vector<8x81xf32>
    %111 = tpu.matmul %76, %91, %cst_32 {dimension_numbers = #tpu.dot_dimension_numbers<[1], [0], [0], [1], [0, 0, 1, 1], [], []>} : vector<8x36xf32>, vector<36x81xf32>, vector<8x81xf32> -> vector<8x81xf32>
    %cst_33 = arith.constant dense<0.000000e+00> : vector<8x81xf32>
    %112 = tpu.matmul %76, %110, %cst_33 {dimension_numbers = #tpu.dot_dimension_numbers<[1], [0], [0], [1], [0, 0, 1, 1], [], []>} : vector<8x36xf32>, vector<36x81xf32>, vector<8x81xf32> -> vector<8x81xf32>
    %113 = arith.mulf %111, %112 : vector<8x81xf32>
    %114 = tpu.iota {dimensions = array<i32: 0>} : vector<81x729xi32>
    %115 = arith.sitofp %114 : vector<81x729xi32> to vector<81x729xf32>
    %116 = tpu.iota {dimensions = array<i32: 1>} : vector<81x729xi32>
    %117 = arith.sitofp %116 : vector<81x729xi32> to vector<81x729xf32>
    %cst_34 = arith.constant 5.000000e-01 : f32
    %118 = vector.broadcast %cst_34 : f32 to vector<81x729xf32>
    %119 = arith.addf %117, %118 : vector<81x729xf32>
    %cst_35 = arith.constant 0.111111112 : f32
    %120 = vector.broadcast %cst_35 : f32 to vector<81x729xf32>
    %121 = arith.mulf %119, %120 : vector<81x729xf32>
    %122 = math.floor %121 : vector<81x729xf32>
    %123 = arith.cmpf oeq, %122, %115 : vector<81x729xf32>
    %124 = arith.extui %123 : vector<81x729xi1> to vector<81x729xi32>
    %125 = arith.sitofp %124 : vector<81x729xi32> to vector<81x729xf32>
    %126 = tpu.iota {dimensions = array<i32: 0>} : vector<36x729xi32>
    %127 = arith.sitofp %126 : vector<36x729xi32> to vector<36x729xf32>
    %128 = tpu.iota {dimensions = array<i32: 1>} : vector<36x729xi32>
    %129 = arith.sitofp %128 : vector<36x729xi32> to vector<36x729xf32>
    %cst_36 = arith.constant 1.800000e+01 : f32
    %130 = vector.broadcast %cst_36 : f32 to vector<36x729xf32>
    %131 = arith.cmpf oge, %127, %130 : vector<36x729xf32>
    %cst_37 = arith.constant 2.700000e+01 : f32
    %132 = vector.broadcast %cst_37 : f32 to vector<36x729xf32>
    %133 = arith.cmpf olt, %127, %132 : vector<36x729xf32>
    %134 = arith.andi %131, %133 : vector<36x729xi1>
    %cst_38 = arith.constant 5.000000e-01 : f32
    %135 = vector.broadcast %cst_38 : f32 to vector<36x729xf32>
    %136 = arith.addf %129, %135 : vector<36x729xf32>
    %cst_39 = arith.constant 0.111111112 : f32
    %137 = vector.broadcast %cst_39 : f32 to vector<36x729xf32>
    %138 = arith.mulf %136, %137 : vector<36x729xf32>
    %139 = math.floor %138 : vector<36x729xf32>
    %cst_40 = arith.constant 9.000000e+00 : f32
    %140 = vector.broadcast %cst_40 : f32 to vector<36x729xf32>
    %141 = arith.mulf %140, %139 : vector<36x729xf32>
    %142 = arith.subf %129, %141 : vector<36x729xf32>
    %cst_41 = arith.constant 1.800000e+01 : f32
    %143 = vector.broadcast %cst_41 : f32 to vector<36x729xf32>
    %144 = arith.subf %127, %143 : vector<36x729xf32>
    %145 = arith.cmpf oeq, %142, %144 : vector<36x729xf32>
    %146 = arith.andi %134, %145 : vector<36x729xi1>
    %147 = arith.extui %146 : vector<36x729xi1> to vector<36x729xi32>
    %148 = arith.sitofp %147 : vector<36x729xi32> to vector<36x729xf32>
    %cst_42 = arith.constant dense<0.000000e+00> : vector<8x729xf32>
    %149 = tpu.matmul %113, %125, %cst_42 {dimension_numbers = #tpu.dot_dimension_numbers<[1], [0], [0], [1], [0, 0, 1, 1], [], []>} : vector<8x81xf32>, vector<81x729xf32>, vector<8x729xf32> -> vector<8x729xf32>
    %cst_43 = arith.constant dense<0.000000e+00> : vector<8x729xf32>
    %150 = tpu.matmul %76, %148, %cst_43 {dimension_numbers = #tpu.dot_dimension_numbers<[1], [0], [0], [1], [0, 0, 1, 1], [], []>} : vector<8x36xf32>, vector<36x729xf32>, vector<8x729xf32> -> vector<8x729xf32>
    %151 = arith.mulf %149, %150 : vector<8x729xf32>
    %152 = arith.truncf %151 : vector<8x729xf32> to vector<8x729xbf16>
    %c0_44 = arith.constant 0 : index
    %c0_45 = arith.constant 0 : index
    %153 = vector.load %arg3[%c0_44, %c0_45] : memref<729x288xbf16, #tpu.memory_space<vmem>>, vector<729x288xbf16>
    %cst_46 = arith.constant dense<0.000000e+00> : vector<8x288xf32>
    %154 = tpu.matmul %152, %153, %cst_46 {dimension_numbers = #tpu.dot_dimension_numbers<[1], [0], [0], [1], [0, 0, 1, 1], [], []>} : vector<8x729xbf16>, vector<729x288xbf16>, vector<8x288xf32> -> vector<8x288xf32>
    %155 = tpu.iota {dimensions = array<i32: 0>} : vector<36x288xi32>
    %156 = arith.sitofp %155 : vector<36x288xi32> to vector<36x288xf32>
    %157 = tpu.iota {dimensions = array<i32: 1>} : vector<36x288xi32>
    %158 = arith.sitofp %157 : vector<36x288xi32> to vector<36x288xf32>
    %cst_47 = arith.constant 2.700000e+01 : f32
    %159 = vector.broadcast %cst_47 : f32 to vector<36x288xf32>
    %160 = arith.cmpf oge, %156, %159 : vector<36x288xf32>
    %cst_48 = arith.constant 5.000000e-01 : f32
    %161 = vector.broadcast %cst_48 : f32 to vector<36x288xf32>
    %162 = arith.addf %158, %161 : vector<36x288xf32>
    %cst_49 = arith.constant 3.125000e-02 : f32
    %163 = vector.broadcast %cst_49 : f32 to vector<36x288xf32>
    %164 = arith.mulf %162, %163 : vector<36x288xf32>
    %165 = math.floor %164 : vector<36x288xf32>
    %cst_50 = arith.constant 2.700000e+01 : f32
    %166 = vector.broadcast %cst_50 : f32 to vector<36x288xf32>
    %167 = arith.subf %156, %166 : vector<36x288xf32>
    %168 = arith.cmpf oeq, %165, %167 : vector<36x288xf32>
    %169 = arith.andi %160, %168 : vector<36x288xi1>
    %170 = arith.extui %169 : vector<36x288xi1> to vector<36x288xi32>
    %171 = arith.sitofp %170 : vector<36x288xi32> to vector<36x288xf32>
    %cst_51 = arith.constant dense<0.000000e+00> : vector<8x288xf32>
    %172 = tpu.matmul %76, %171, %cst_51 {dimension_numbers = #tpu.dot_dimension_numbers<[1], [0], [0], [1], [0, 0, 1, 1], [], []>} : vector<8x36xf32>, vector<36x288xf32>, vector<8x288xf32> -> vector<8x288xf32>
    %173 = tpu.iota {dimensions = array<i32: 0>} : vector<288x32xi32>
    %174 = arith.sitofp %173 : vector<288x32xi32> to vector<288x32xf32>
    %175 = tpu.iota {dimensions = array<i32: 1>} : vector<288x32xi32>
    %176 = arith.sitofp %175 : vector<288x32xi32> to vector<288x32xf32>
    %cst_52 = arith.constant 5.000000e-01 : f32
    %177 = vector.broadcast %cst_52 : f32 to vector<288x32xf32>
    %178 = arith.addf %174, %177 : vector<288x32xf32>
    %cst_53 = arith.constant 3.125000e-02 : f32
    %179 = vector.broadcast %cst_53 : f32 to vector<288x32xf32>
    %180 = arith.mulf %178, %179 : vector<288x32xf32>
    %181 = math.floor %180 : vector<288x32xf32>
    %cst_54 = arith.constant 3.200000e+01 : f32
    %182 = vector.broadcast %cst_54 : f32 to vector<288x32xf32>
    %183 = arith.mulf %182, %181 : vector<288x32xf32>
    %184 = arith.subf %174, %183 : vector<288x32xf32>
    %185 = arith.cmpf oeq, %184, %176 : vector<288x32xf32>
    %186 = arith.extui %185 : vector<288x32xi1> to vector<288x32xi32>
    %187 = arith.sitofp %186 : vector<288x32xi32> to vector<288x32xf32>
    %188 = arith.mulf %154, %172 : vector<8x288xf32>
    %cst_55 = arith.constant dense<0.000000e+00> : vector<8x32xf32>
    %189 = tpu.matmul %188, %187, %cst_55 {dimension_numbers = #tpu.dot_dimension_numbers<[1], [0], [0], [1], [0, 0, 1, 1], [], []>} : vector<8x288xf32>, vector<288x32xf32>, vector<8x32xf32> -> vector<8x32xf32>
    %190 = vector.broadcast %11 : vector<1x32xf32> to vector<8x32xf32>
    %191 = arith.addf %189, %190 : vector<8x32xf32>
    %cst_56 = arith.constant 0.000000e+00 : f32
    %192 = vector.broadcast %cst_56 : f32 to vector<8x32xf32>
    %193 = arith.maximumf %191, %192 : vector<8x32xf32>
    %c0_57 = arith.constant 0 : index
    %c0_58 = arith.constant 0 : index
    %194 = vector.load %arg4[%c0_57, %c0_58] : memref<68x32xf32, #tpu.memory_space<vmem>>, vector<32x32xf32>
    %cst_59 = arith.constant dense<0.000000e+00> : vector<8x32xf32>
    %195 = tpu.matmul %193, %194, %cst_59 {dimension_numbers = #tpu.dot_dimension_numbers<[1], [0], [0], [1], [0, 0, 1, 1], [], []>} : vector<8x32xf32>, vector<32x32xf32>, vector<8x32xf32> -> vector<8x32xf32>
    %c32 = arith.constant 32 : index
    %c0_60 = arith.constant 0 : index
    %196 = vector.load %arg4[%c32, %c0_60] : memref<68x32xf32, #tpu.memory_space<vmem>>, vector<36x32xf32>
    %cst_61 = arith.constant dense<0.000000e+00> : vector<8x32xf32>
    %197 = tpu.matmul %76, %196, %cst_61 {dimension_numbers = #tpu.dot_dimension_numbers<[1], [0], [0], [1], [0, 0, 1, 1], [], []>} : vector<8x36xf32>, vector<36x32xf32>, vector<8x32xf32> -> vector<8x32xf32>
    %198 = arith.addf %195, %197 : vector<8x32xf32>
    %199 = vector.broadcast %12 : vector<1x32xf32> to vector<8x32xf32>
    %200 = arith.addf %198, %199 : vector<8x32xf32>
    %cst_62 = arith.constant 0.000000e+00 : f32
    %201 = vector.broadcast %cst_62 : f32 to vector<8x32xf32>
    %202 = arith.maximumf %200, %201 : vector<8x32xf32>
    %c0_63 = arith.constant 0 : index
    %c0_64 = arith.constant 0 : index
    %203 = vector.load %arg5[%c0_63, %c0_64] : memref<8x32xf32, #tpu.memory_space<vmem>>, vector<8x32xf32>
    tpu.vector_store %arg5[%c0_63, %c0_64], %202 {strides = array<i32>} : memref<8x32xf32, #tpu.memory_space<vmem>>, vector<8x32xf32>,
    return
  }
}

</mosaic_0001>

<llo_original>
// kernel: tpu_custom_call.1
$region0: #{tpu_custom_call.1}
  #allocation0 [shape = 'u32[]', space=smem, size = 0x4, offset = 0x4, fixed_abs, tag = 'smem constant byte address 0x4 - core index']
  #allocation1 [shape = 'u32[144,128]{1,0:T(1,128)}', space=vmem, size = 0x12000, scoped, tag = 'internal scratch']
  %s0 = inlined_call_operand.vmem [shape: f32[8,64], index: 0, kind: input, shape index: {}]
  %s1 = inlined_call_operand.vmem [shape: f32[32,512], index: 1, kind: input, shape index: {}]
  %s2 = inlined_call_operand.vmem [shape: f32[8,64], index: 2, kind: input, shape index: {}]
  %s3 = inlined_call_operand.vmem [shape: bf16[729,288], index: 3, kind: input, shape index: {}]
  %s4 = inlined_call_operand.vmem [shape: f32[68,32], index: 4, kind: input, shape index: {}]
  %s5 = inlined_call_operand.hbm [shape: f32[8,32], index: 5, kind: output, shape index: {}]
  %s6 = sld [smem:[#allocation0]]
  $region30: #{tpu_custom_call.1} parent=0
    _
  %s8 = ssub.s32 1, %s6
  %s9 = scalar_select 0, %s8, %s6
  $region1: #{tpu_custom_call.1} parent=0
    #allocation2 [shape = 'u8[4096]{0}', space=vmem, size = 0x1000, scoped, tag = 'output window, operand 0, single buffered']
    #allocation3 [shape = 's32[1]{0}', space=sflag, size = 0x4, scoped, tag = 'scoped memory for tpu_custom_call.1']
    %10 = vsyncpa [#allocation3], 0
    // Predicated region
    $region2: #{tpu_custom_call.1} parent=1 // pred_check
      _
    $region3: #{tpu_custom_call.1} parent=1 // pred_check_branch
      %12 = sbr.rel (0) target = $region5
    $region4: #{tpu_custom_call.1} parent=1 // pred_region
      _
    $region5: #{tpu_custom_call.1} parent=1 // pred_fallthru
      _
    // Predicated region
    $region6: #{tpu_custom_call.1} parent=1 // pred_check
      _
    $region7: #{tpu_custom_call.1} parent=1 // pred_check_branch
      %14 = sbr.rel (0) target = $region9
    $region8: #{tpu_custom_call.1} parent=1 // pred_region
      _
    $region9: #{tpu_custom_call.1} parent=1 // pred_fallthru
      _
    // Predicated region
    $region10: #{tpu_custom_call.1} parent=1 // pred_check
      _
    $region11: #{tpu_custom_call.1} parent=1 // pred_check_branch
      %16 = sbr.rel (0) target = $region13
    $region12: #{tpu_custom_call.1} parent=1 // pred_region
      _
    $region13: #{tpu_custom_call.1} parent=1 // pred_fallthru
      _
    // Predicated region
    $region14: #{tpu_custom_call.1} parent=1 // pred_check
      _
    $region15: #{tpu_custom_call.1} parent=1 // pred_check_branch
      %18 = sbr.rel (0) target = $region17
    $region16: #{tpu_custom_call.1} parent=1 // pred_region
      _
    $region17: #{tpu_custom_call.1} parent=1 // pred_fallthru
      _
    // Predicated region
    $region18: #{tpu_custom_call.1} parent=1 // pred_check
      _
    $region19: #{tpu_custom_call.1} parent=1 // pred_check_branch
      %20 = sbr.rel (0) target = $region21
    $region20: #{tpu_custom_call.1} parent=1 // pred_region
      _
    $region21: #{tpu_custom_call.1} parent=1 // pred_fallthru
      _
    %v22 = vld [vmem:[%s0] sm:$0xff]
    %v23 = vld [vmem:[%s1] sm:$0xff]
    %v24 = vld [vmem:[%s1 + $0x20] sm:$0xff]
    %v25 = vld [vmem:[%s1 + $0x40] sm:$0xff]
    %v26 = vld [vmem:[%s1 + $0x60] sm:$0xff]
    %v27 = vld [vmem:[%s1 + $0x8] sm:$0xff]
    %v28 = vld [vmem:[%s1 + $0x28] sm:$0xff]
    %v29 = vld [vmem:[%s1 + $0x48] sm:$0xff]
    %v30 = vld [vmem:[%s1 + $0x68] sm:$0xff]
    %v31 = vld [vmem:[%s1 + $0x10] sm:$0xff]
    %v32 = vld [vmem:[%s1 + $0x18] sm:$0xff]
    %v33 = vld [vmem:[%s1 + $0x30] sm:$0xff]
    %v34 = vld [vmem:[%s1 + $0x38] sm:$0xff]
    %v35 = vld [vmem:[%s1 + $0x50] sm:$0xff]
    %v36 = vld [vmem:[%s1 + $0x58] sm:$0xff]
    %v37 = vld [vmem:[%s1 + $0x70] sm:$0xff]
    %v38 = vld [vmem:[%s1 + $0x78] sm:$0xff]
    %v39 = vld [vmem:[%s2] sm:$0xff]
    %v40 = vlaneseq
    %v41 = vshrl.u32 %v40, 7
    %v42 = vsub.s32 0, %v41
    %v43 = vrot.slane %v39, %v42
    %vm44 = vcmask 261120
    %v46 = vsel %vm44, %v22, 0
    %48 = vmatprep.subr.mxu0 0.0
    %49 = vmatpush1.msra.mxu0 0.0
    %50 = vmatprep.subr.mxu0 0.0
    %51 = vmatpush1.msra.mxu0 0.0
    %52 = vmatprep.subr.mxu0 0.0
    %53 = vmatpush1.msra.mxu0 0.0
    %54 = vmatprep.subr.mxu0 0.0
    %55 = vmatpush1.msra.mxu0 0.0
    %56 = vmatprep.subr.mxu0 0.0
    %57 = vmatpush1.msra.mxu0 0.0
    %58 = vmatprep.subr.mxu0 0.0
    %59 = vmatpush1.msra.mxu0 0.0
    %60 = vmatprep.subr.mxu0 0.0
    %61 = vmatpush1.msra.mxu0 0.0
    %62 = vmatprep.subr.mxu0 0.0
    %63 = vmatpush1.msra.mxu0 0.0
    %64 = vmatprep.subr.mxu0 0.0
    %65 = vmatpush1.msra.mxu0 0.0
    %66 = vmatprep.subr.mxu0 0.0
    %67 = vmatpush1.msra.mxu0 0.0
    %68 = vmatprep.subr.mxu0 0.0
    %69 = vmatpush1.msra.mxu0 0.0
    %70 = vmatprep.subr.mxu0 0.0
    %71 = vmatpush1.msra.mxu0 0.0
    %72 = vmatprep.subr.mxu0 0.0
    %73 = vmatpush1.msra.mxu0 %v26
    %74 = vmatprep.subr.mxu0 0.0
    %75 = vmatpush1.msra.mxu0 %v25
    %76 = vmatprep.subr.mxu0 0.0
    %77 = vmatpush1.msra.mxu0 %v24
    %78 = vmatprep.subr.mxu0 0.0
    %79 = vmatpush1.msra.mxu0 %v23
    %80 = vmatprep.subr.mxu0 0.0
    %81 = vmatpush2.msra.mxu0 0.0
    %82 = vmatprep.subr.mxu0 0.0
    %83 = vmatpush2.msra.mxu0 0.0
    %84 = vmatprep.subr.mxu0 0.0
    %85 = vmatpush2.msra.mxu0 0.0
    %86 = vmatprep.subr.mxu0 0.0
    %87 = vmatpush2.msra.mxu0 0.0
    %88 = vmatprep.subr.mxu0 0.0
    %89 = vmatpush2.msra.mxu0 0.0
    %90 = vmatprep.subr.mxu0 0.0
    %91 = vmatpush2.msra.mxu0 0.0
    %92 = vmatprep.subr.mxu0 0.0
    %93 = vmatpush2.msra.mxu0 0.0
    %94 = vmatprep.subr.mxu0 0.0
    %95 = vmatpush2.msra.mxu0 0.0
    %96 = vmatprep.subr.mxu0 0.0
    %97 = vmatpush2.msra.mxu0 0.0
    %98 = vmatprep.subr.mxu0 0.0
    %99 = vmatpush2.msra.mxu0 0.0
    %100 = vmatprep.subr.mxu0 0.0
    %101 = vmatpush2.msra.mxu0 0.0
    %102 = vmatprep.subr.mxu0 0.0
    %103 = vmatpush2.msra.mxu0 0.0
    %104 = vmatprep.subr.mxu0 0.0
    %105 = vmatpush2.msra.mxu0 0.0
    %106 = vmatprep.subr.mxu0 0.0
    %107 = vmatpush2.msra.mxu0 0.0
    %108 = vmatprep.subr.mxu0 0.0
    %109 = vmatpush2.msra.mxu0 0.0
    %110 = vmatprep.subr.mxu0 0.0
    %111 = vmatpush2.msra.mxu0 0.0
    %112 = vmatprep.mubr.f32.mxu0 0.0
    %113 = vmatmul.mubr.f32.gmra.mxu0 %v46
    %v114 = vpop.f32.mrf.mxu0
    %v115 = vadd.f32 %v43, %v114
    %v116 = vpop.f32.mrf.mxu0
    %117 = vdwg.mxu0
    %v118 = vmax.f32 %v115, 0.0
    %119 = vrot.lane.b32.xlu0 %v22, 96
    %v120 = vpop.permute.xlu0 %119
    %v121 = vsel %vm44, %v120, 0
    %123 = vmatprep.subr.mxu0 0.0
    %124 = vmatpush1.msra.mxu0 0.0
    %125 = vmatprep.subr.mxu0 0.0
    %126 = vmatpush1.msra.mxu0 0.0
    %127 = vmatprep.subr.mxu0 0.0
    %128 = vmatpush1.msra.mxu0 0.0
    %129 = vmatprep.subr.mxu0 0.0
    %130 = vmatpush1.msra.mxu0 0.0
    %131 = vmatprep.subr.mxu0 0.0
    %132 = vmatpush1.msra.mxu0 0.0
    %133 = vmatprep.subr.mxu0 0.0
    %134 = vmatpush1.msra.mxu0 0.0
    %135 = vmatprep.subr.mxu0 0.0
    %136 = vmatpush1.msra.mxu0 0.0
    %137 = vmatprep.subr.mxu0 0.0
    %138 = vmatpush1.msra.mxu0 0.0
    %139 = vmatprep.subr.mxu0 0.0
    %140 = vmatpush1.msra.mxu0 0.0
    %141 = vmatprep.subr.mxu0 0.0
    %142 = vmatpush1.msra.mxu0 0.0
    %143 = vmatprep.subr.mxu0 0.0
    %144 = vmatpush1.msra.mxu0 0.0
    %145 = vmatprep.subr.mxu0 0.0
    %146 = vmatpush1.msra.mxu0 0.0
    %147 = vmatprep.subr.mxu0 %v38
    %148 = vmatpush1.msra.mxu0 %v37
    %149 = vmatprep.subr.mxu0 %v36
    %150 = vmatpush1.msra.mxu0 %v35
    %151 = vmatprep.subr.mxu0 %v34
    %152 = vmatpush1.msra.mxu0 %v33
    %153 = vmatprep.subr.mxu0 %v32
    %154 = vmatpush1.msra.mxu0 %v31
    %155 = vmatprep.subr.mxu0 0.0
    %156 = vmatpush2.msra.mxu0 0.0
    %157 = vmatprep.subr.mxu0 0.0
    %158 = vmatpush2.msra.mxu0 0.0
    %159 = vmatprep.subr.mxu0 0.0
    %160 = vmatpush2.msra.mxu0 0.0
    %161 = vmatprep.subr.mxu0 0.0
    %162 = vmatpush2.msra.mxu0 0.0
    %163 = vmatprep.subr.mxu0 0.0
    %164 = vmatpush2.msra.mxu0 0.0
    %165 = vmatprep.subr.mxu0 0.0
    %166 = vmatpush2.msra.mxu0 0.0
    %167 = vmatprep.subr.mxu0 0.0
    %168 = vmatpush2.msra.mxu0 0.0
    %169 = vmatprep.subr.mxu0 0.0
    %170 = vmatpush2.msra.mxu0 0.0
    %171 = vmatprep.subr.mxu0 0.0
    %172 = vmatpush2.msra.mxu0 0.0
    %173 = vmatprep.subr.mxu0 0.0
    %174 = vmatpush2.msra.mxu0 0.0
    %175 = vmatprep.subr.mxu0 0.0
    %176 = vmatpush2.msra.mxu0 0.0
    %177 = vmatprep.subr.mxu0 0.0
    %178 = vmatpush2.msra.mxu0 0.0
    %179 = vmatprep.subr.mxu0 0.0
    %180 = vmatpush2.msra.mxu0 0.0
    %181 = vmatprep.subr.mxu0 0.0
    %182 = vmatpush2.msra.mxu0 0.0
    %183 = vmatprep.subr.mxu0 0.0
    %184 = vmatpush2.msra.mxu0 0.0
    %185 = vmatprep.subr.mxu0 0.0
    %186 = vmatpush2.msra.mxu0 0.0
    %187 = vmatprep.mubr.f32.mxu0 0.0
    %188 = vmatmul.mubr.f32.gmra.mxu0 %v121
    %v189 = vpop.f32.mrf.mxu0
    %v190 = vadd.f32 0.0, %v189
    %v191 = vpop.f32.mrf.mxu0
    %v192 = vadd.f32 0.0, %v191
    %193 = vdwg.mxu0
    %v194 = vlaneseq
    %v195 = vshrl.u32 %v194, 7
    %v196 = vcvt.s32.f32 %v195
    %v197 = vlaneseq
    %v198 = vand.u32 %v197, 127
    %v199 = vadd.s32 %v198, 128
    %v200 = vcvt.s32.f32 %v198
    %v201 = vcvt.s32.f32 %v199
    %v202 = vadd.f32 %v200, 0.5
    %v203 = vadd.f32 %v201, 0.5
    %v204 = vmul.f32 %v202, 0.125
    %v205 = vmul.f32 %v203, 0.125
    %v206 = vfloor.f32 %v204
    %v207 = vfloor.f32 %v205
    %v208 = vmul.f32 %v206, 8.0
    %v209 = vmul.f32 %v207, 8.0
    %v210 = vsub.f32 %v200, %v208
    %v211 = vsub.f32 %v201, %v209
    %vm212 = vcmp.eq.f32.partialorder %v210, %v196
    %vm213 = vcmp.eq.f32.partialorder %v211, %v196
    %v214 = vsel %vm212, 1, 0
    %v215 = vsel %vm213, 1, 0
    %v216 = vcvt.s32.f32 %v214
    %v217 = vcvt.s32.f32 %v215
    %218 = vrot.lane.b32.xlu0 %v22, 112
    %v219 = vpop.permute.xlu0 %218
    %vm220 = vcmask 64512
    %v221 = vsel %vm220, %v219, 0
    %223 = vmatprep.subr.mxu0 0.0
    %224 = vmatpush1.msra.mxu0 0.0
    %225 = vmatprep.subr.mxu0 0.0
    %226 = vmatpush1.msra.mxu0 0.0
    %227 = vmatprep.subr.mxu0 0.0
    %228 = vmatpush1.msra.mxu0 0.0
    %229 = vmatprep.subr.mxu0 0.0
    %230 = vmatpush1.msra.mxu0 0.0
    %231 = vmatprep.subr.mxu0 0.0
    %232 = vmatpush1.msra.mxu0 0.0
    %233 = vmatprep.subr.mxu0 0.0
    %234 = vmatpush1.msra.mxu0 0.0
    %235 = vmatprep.subr.mxu0 0.0
    %236 = vmatpush1.msra.mxu0 0.0
    %237 = vmatprep.subr.mxu0 0.0
    %238 = vmatpush1.msra.mxu0 0.0
    %239 = vmatprep.subr.mxu0 0.0
    %240 = vmatpush1.msra.mxu0 0.0
    %241 = vmatprep.subr.mxu0 0.0
    %242 = vmatpush1.msra.mxu0 0.0
    %243 = vmatprep.subr.mxu0 0.0
    %244 = vmatpush1.msra.mxu0 0.0
    %245 = vmatprep.subr.mxu0 0.0
    %246 = vmatpush1.msra.mxu0 0.0
    %247 = vmatprep.subr.mxu0 0.0
    %248 = vmatpush1.msra.mxu0 0.0
    %249 = vmatprep.subr.mxu0 0.0
    %250 = vmatpush1.msra.mxu0 0.0
    %251 = vmatprep.subr.mxu0 0.0
    %252 = vmatpush1.msra.mxu0 0.0
    %253 = vmatprep.subr.mxu0 %v217
    %254 = vmatpush1.msra.mxu0 %v216
    %255 = vmatprep.subr.mxu0 0.0
    %256 = vmatpush2.msra.mxu0 0.0
    %257 = vmatprep.subr.mxu0 0.0
    %258 = vmatpush2.msra.mxu0 0.0
    %259 = vmatprep.subr.mxu0 0.0
    %260 = vmatpush2.msra.mxu0 0.0
    %261 = vmatprep.subr.mxu0 0.0
    %262 = vmatpush2.msra.mxu0 0.0
    %263 = vmatprep.subr.mxu0 0.0
    %264 = vmatpush2.msra.mxu0 0.0
    %265 = vmatprep.subr.mxu0 0.0
    %266 = vmatpush2.msra.mxu0 0.0
    %267 = vmatprep.subr.mxu0 0.0
    %268 = vmatpush2.msra.mxu0 0.0
    %269 = vmatprep.subr.mxu0 0.0
    %270 = vmatpush2.msra.mxu0 0.0
    %271 = vmatprep.subr.mxu0 0.0
    %272 = vmatpush2.msra.mxu0 0.0
    %273 = vmatprep.subr.mxu0 0.0
    %274 = vmatpush2.msra.mxu0 0.0
    %275 = vmatprep.subr.mxu0 0.0
    %276 = vmatpush2.msra.mxu0 0.0
    %277 = vmatprep.subr.mxu0 0.0
    %278 = vmatpush2.msra.mxu0 0.0
    %279 = vmatprep.subr.mxu0 0.0
    %280 = vmatpush2.msra.mxu0 0.0
    %281 = vmatprep.subr.mxu0 0.0
    %282 = vmatpush2.msra.mxu0 0.0
    %283 = vmatprep.subr.mxu0 0.0
    %284 = vmatpush2.msra.mxu0 0.0
    %285 = vmatprep.subr.mxu0 0.0
    %286 = vmatpush2.msra.mxu0 0.0
    %287 = vmatprep.mubr.f32.mxu0 0.0
    %288 = vmatmul.mubr.f32.gmra.mxu0 %v221
    %v289 = vpop.f32.mrf.mxu0
    %v290 = vadd.f32 0.0, %v289
    %v291 = vpop.f32.mrf.mxu0
    %v292 = vadd.f32 0.0, %v291
    %293 = vdwg.mxu0
    %v294 = vadd.s32 %v195, 8
    %v295 = vadd.s32 %v195, 16
    %v296 = vadd.s32 %v195, 24
    %v297 = vadd.s32 %v195, 32
    %v298 = vadd.s32 %v195, 40
    %v299 = vadd.s32 %v195, 48
    %v300 = vadd.s32 %v195, 56
    %v301 = vadd.s32 %v195, 64
    %v302 = vadd.s32 %v195, 72
    %v303 = vadd.s32 %v195, 80
    %v304 = vadd.s32 %v195, 88
    %v305 = vadd.s32 %v195, 96
    %v306 = vadd.s32 %v195, 104
    %v307 = vadd.s32 %v195, 112
    %v308 = vadd.s32 %v195, 120
    %v309 = vadd.s32 %v195, 128
    %v310 = vadd.s32 %v195, 136
    %v311 = vadd.s32 %v195, 144
    %v312 = vadd.s32 %v195, 152
    %v313 = vadd.s32 %v195, 160
    %v314 = vadd.s32 %v195, 168
    %v315 = vadd.s32 %v195, 176
    %v316 = vadd.s32 %v195, 184
    %v317 = vadd.s32 %v195, 192
    %v318 = vadd.s32 %v195, 200
    %v319 = vadd.s32 %v195, 208
    %v320 = vadd.s32 %v195, 216
    %v321 = vadd.s32 %v195, 224
    %v322 = vadd.s32 %v195, 232
    %v323 = vadd.s32 %v195, 240
    %v324 = vadd.s32 %v195, 248
    %v325 = vcvt.s32.f32 %v294
    %v326 = vcvt.s32.f32 %v295
    %v327 = vcvt.s32.f32 %v296
    %v328 = vcvt.s32.f32 %v297
    %v329 = vcvt.s32.f32 %v298
    %v330 = vcvt.s32.f32 %v299
    %v331 = vcvt.s32.f32 %v300
    %v332 = vcvt.s32.f32 %v301
    %v333 = vcvt.s32.f32 %v302
    %v334 = vcvt.s32.f32 %v303
    %v335 = vcvt.s32.f32 %v304
    %v336 = vcvt.s32.f32 %v305
    %v337 = vcvt.s32.f32 %v306
    %v338 = vcvt.s32.f32 %v307
    %v339 = vcvt.s32.f32 %v308
    %v340 = vcvt.s32.f32 %v309
    %v341 = vcvt.s32.f32 %v310
    %v342 = vcvt.s32.f32 %v311
    %v343 = vcvt.s32.f32 %v312
    %v344 = vcvt.s32.f32 %v313
    %v345 = vcvt.s32.f32 %v314
    %v346 = vcvt.s32.f32 %v315
    %v347 = vcvt.s32.f32 %v316
    %v348 = vcvt.s32.f32 %v317
    %v349 = vcvt.s32.f32 %v318
    %v350 = vcvt.s32.f32 %v319
    %v351 = vcvt.s32.f32 %v320
    %v352 = vcvt.s32.f32 %v321
    %v353 = vcvt.s32.f32 %v322
    %v354 = vcvt.s32.f32 %v323
    %v355 = vcvt.s32.f32 %v324
    %v356 = vadd.f32 %v196, 0.5
    %v357 = vadd.f32 %v325, 0.5
    %v358 = vadd.f32 %v326, 0.5
    %v359 = vadd.f32 %v327, 0.5
    %v360 = vadd.f32 %v328, 0.5
    %v361 = vadd.f32 %v329, 0.5
    %v362 = vadd.f32 %v330, 0.5
    %v363 = vadd.f32 %v331, 0.5
    %v364 = vadd.f32 %v332, 0.5
    %v365 = vadd.f32 %v333, 0.5
    %v366 = vadd.f32 %v334, 0.5
    %v367 = vadd.f32 %v335, 0.5
    %v368 = vadd.f32 %v336, 0.5
    %v369 = vadd.f32 %v337, 0.5
    %v370 = vadd.f32 %v338, 0.5
    %v371 = vadd.f32 %v339, 0.5
    %v372 = vadd.f32 %v340, 0.5
    %v373 = vadd.f32 %v341, 0.5
    %v374 = vadd.f32 %v342, 0.5
    %v375 = vadd.f32 %v343, 0.5
    %v376 = vadd.f32 %v344, 0.5
    %v377 = vadd.f32 %v345, 0.5
    %v378 = vadd.f32 %v346, 0.5
    %v379 = vadd.f32 %v347, 0.5
    %v380 = vadd.f32 %v348, 0.5
    %v381 = vadd.f32 %v349, 0.5
    %v382 = vadd.f32 %v350, 0.5
    %v383 = vadd.f32 %v351, 0.5
    %v384 = vadd.f32 %v352, 0.5
    %v385 = vadd.f32 %v353, 0.5
    %v386 = vadd.f32 %v354, 0.5
    %v387 = vadd.f32 %v355, 0.5
    %v388 = vmul.f32 %v356, 0.125
    %v389 = vmul.f32 %v357, 0.125
    %v390 = vmul.f32 %v358, 0.125
    %v391 = vmul.f32 %v359, 0.125
    %v392 = vmul.f32 %v360, 0.125
    %v393 = vmul.f32 %v361, 0.125
    %v394 = vmul.f32 %v362, 0.125
    %v395 = vmul.f32 %v363, 0.125
    %v396 = vmul.f32 %v364, 0.125
    %v397 = vmul.f32 %v365, 0.125
    %v398 = vmul.f32 %v366, 0.125
    %v399 = vmul.f32 %v367, 0.125
    %v400 = vmul.f32 %v368, 0.125
    %v401 = vmul.f32 %v369, 0.125
    %v402 = vmul.f32 %v370, 0.125
    %v403 = vmul.f32 %v371, 0.125
    %v404 = vmul.f32 %v372, 0.125
    %v405 = vmul.f32 %v373, 0.125
    %v406 = vmul.f32 %v374, 0.125
    %v407 = vmul.f32 %v375, 0.125
    %v408 = vmul.f32 %v376, 0.125
    %v409 = vmul.f32 %v377, 0.125
    %v410 = vmul.f32 %v378, 0.125
    %v411 = vmul.f32 %v379, 0.125
    %v412 = vmul.f32 %v380, 0.125
    %v413 = vmul.f32 %v381, 0.125
    %v414 = vmul.f32 %v382, 0.125
    %v415 = vmul.f32 %v383, 0.125
    %v416 = vmul.f32 %v384, 0.125
    %v417 = vmul.f32 %v385, 0.125
    %v418 = vmul.f32 %v386, 0.125
    %v419 = vmul.f32 %v387, 0.125
    %v420 = vfloor.f32 %v388
    %v421 = vfloor.f32 %v389
    %v422 = vfloor.f32 %v390
    %v423 = vfloor.f32 %v391
    %v424 = vfloor.f32 %v392
    %v425 = vfloor.f32 %v393
    %v426 = vfloor.f32 %v394
    %v427 = vfloor.f32 %v395
    %v428 = vfloor.f32 %v396
    %v429 = vfloor.f32 %v397
    %v430 = vfloor.f32 %v398
    %v431 = vfloor.f32 %v399
    %v432 = vfloor.f32 %v400
    %v433 = vfloor.f32 %v401
    %v434 = vfloor.f32 %v402
    %v435 = vfloor.f32 %v403
    %v436 = vfloor.f32 %v404
    %v437 = vfloor.f32 %v405
    %v438 = vfloor.f32 %v406
    %v439 = vfloor.f32 %v407
    %v440 = vfloor.f32 %v408
    %v441 = vfloor.f32 %v409
    %v442 = vfloor.f32 %v410
    %v443 = vfloor.f32 %v411
    %v444 = vfloor.f32 %v412
    %v445 = vfloor.f32 %v413
    %v446 = vfloor.f32 %v414
    %v447 = vfloor.f32 %v415
    %v448 = vfloor.f32 %v416
    %v449 = vfloor.f32 %v417
    %v450 = vfloor.f32 %v418
    %v451 = vfloor.f32 %v419
    %vm452 = vcmp.eq.f32.partialorder %v420, %v200
    %vm453 = vcmp.eq.f32.partialorder %v421, %v200
    %vm454 = vcmp.eq.f32.partialorder %v422, %v200
    %vm455 = vcmp.eq.f32.partialorder %v423, %v200
    %vm456 = vcmp.eq.f32.partialorder %v424, %v200
    %vm457 = vcmp.eq.f32.partialorder %v425, %v200
    %vm458 = vcmp.eq.f32.partialorder %v426, %v200
    %vm459 = vcmp.eq.f32.partialorder %v427, %v200
    %vm460 = vcmp.eq.f32.partialorder %v428, %v200
    %vm461 = vcmp.eq.f32.partialorder %v429, %v200
    %vm462 = vcmp.eq.f32.partialorder %v430, %v200
    %vm463 = vcmp.eq.f32.partialorder %v431, %v200
    %vm464 = vcmp.eq.f32.partialorder %v432, %v200
    %vm465 = vcmp.eq.f32.partialorder %v433, %v200
    %vm466 = vcmp.eq.f32.partialorder %v434, %v200
    %vm467 = vcmp.eq.f32.partialorder %v435, %v200
    %vm468 = vcmp.eq.f32.partialorder %v436, %v200
    %vm469 = vcmp.eq.f32.partialorder %v437, %v200
    %vm470 = vcmp.eq.f32.partialorder %v438, %v200
    %vm471 = vcmp.eq.f32.partialorder %v439, %v200
    %vm472 = vcmp.eq.f32.partialorder %v440, %v200
    %vm473 = vcmp.eq.f32.partialorder %v441, %v200
    %vm474 = vcmp.eq.f32.partialorder %v442, %v200
    %vm475 = vcmp.eq.f32.partialorder %v443, %v200
    %vm476 = vcmp.eq.f32.partialorder %v444, %v200
    %vm477 = vcmp.eq.f32.partialorder %v445, %v200
    %vm478 = vcmp.eq.f32.partialorder %v446, %v200
    %vm479 = vcmp.eq.f32.partialorder %v447, %v200
    %vm480 = vcmp.eq.f32.partialorder %v448, %v200
    %vm481 = vcmp.eq.f32.partialorder %v449, %v200
    %vm482 = vcmp.eq.f32.partialorder %v450, %v200
    %vm483 = vcmp.eq.f32.partialorder %v451, %v200
    %v484 = vsel %vm452, 1, 0
    %v485 = vsel %vm453, 1, 0
    %v486 = vsel %vm454, 1, 0
    %v487 = vsel %vm455, 1, 0
    %v488 = vsel %vm456, 1, 0
    %v489 = vsel %vm457, 1, 0
    %v490 = vsel %vm458, 1, 0
    %v491 = vsel %vm459, 1, 0
    %v492 = vsel %vm460, 1, 0
    %v493 = vsel %vm461, 1, 0
    %v494 = vsel %vm462, 1, 0
    %v495 = vsel %vm463, 1, 0
    %v496 = vsel %vm464, 1, 0
    %v497 = vsel %vm465, 1, 0
    %v498 = vsel %vm466, 1, 0
    %v499 = vsel %vm467, 1, 0
    %v500 = vsel %vm468, 1, 0
    %v501 = vsel %vm469, 1, 0
    %v502 = vsel %vm470, 1, 0
    %v503 = vsel %vm471, 1, 0
    %v504 = vsel %vm472, 1, 0
    %v505 = vsel %vm473, 1, 0
    %v506 = vsel %vm474, 1, 0
    %v507 = vsel %vm475, 1, 0
    %v508 = vsel %vm476, 1, 0
    %v509 = vsel %vm477, 1, 0
    %v510 = vsel %vm478, 1, 0
    %v511 = vsel %vm479, 1, 0
    %v512 = vsel %vm480, 1, 0
    %v513 = vsel %vm481, 1, 0
    %v514 = vsel %vm482, 1, 0
    %v515 = vsel %vm483, 1, 0
    %v516 = vcvt.s32.f32 %v484
    %v517 = vcvt.s32.f32 %v485
    %v518 = vcvt.s32.f32 %v486
    %v519 = vcvt.s32.f32 %v487
    %v520 = vcvt.s32.f32 %v488
    %v521 = vcvt.s32.f32 %v489
    %v522 = vcvt.s32.f32 %v490
    %v523 = vcvt.s32.f32 %v491
    %v524 = vcvt.s32.f32 %v492
    %v525 = vcvt.s32.f32 %v493
    %v526 = vcvt.s32.f32 %v494
    %v527 = vcvt.s32.f32 %v495
    %v528 = vcvt.s32.f32 %v496
    %v529 = vcvt.s32.f32 %v497
    %v530 = vcvt.s32.f32 %v498
    %v531 = vcvt.s32.f32 %v499
    %v532 = vcvt.s32.f32 %v500
    %v533 = vcvt.s32.f32 %v501
    %v534 = vcvt.s32.f32 %v502
    %v535 = vcvt.s32.f32 %v503
    %v536 = vcvt.s32.f32 %v504
    %v537 = vcvt.s32.f32 %v505
    %v538 = vcvt.s32.f32 %v506
    %v539 = vcvt.s32.f32 %v507
    %v540 = vcvt.s32.f32 %v508
    %v541 = vcvt.s32.f32 %v509
    %v542 = vcvt.s32.f32 %v510
    %v543 = vcvt.s32.f32 %v511
    %v544 = vcvt.s32.f32 %v512
    %v545 = vcvt.s32.f32 %v513
    %v546 = vcvt.s32.f32 %v514
    %v547 = vcvt.s32.f32 %v515
    %v548 = vmul.f32 %v190, %v290
    %v549 = vmul.f32 %v192, %v292
    %v550 = vlaneseq
    %v551 = vshrl.u32 %v550, 7
    %v552 = vsub.s32 1, %v551
    %v553 = vrot.slane %v39, %v552
    %554 = vmatprep.subr.mxu0 0.0
    %555 = vmatpush1.msra.mxu0 %v531
    %556 = vmatprep.subr.mxu0 0.0
    %557 = vmatpush1.msra.mxu0 %v530
    %558 = vmatprep.subr.mxu0 0.0
    %559 = vmatpush1.msra.mxu0 %v529
    %560 = vmatprep.subr.mxu0 0.0
    %561 = vmatpush1.msra.mxu0 %v528
    %562 = vmatprep.subr.mxu0 0.0
    %563 = vmatpush1.msra.mxu0 %v527
    %564 = vmatprep.subr.mxu0 0.0
    %565 = vmatpush1.msra.mxu0 %v526
    %566 = vmatprep.subr.mxu0 0.0
    %567 = vmatpush1.msra.mxu0 %v525
    %568 = vmatprep.subr.mxu0 0.0
    %569 = vmatpush1.msra.mxu0 %v524
    %570 = vmatprep.subr.mxu0 0.0
    %571 = vmatpush1.msra.mxu0 %v523
    %572 = vmatprep.subr.mxu0 0.0
    %573 = vmatpush1.msra.mxu0 %v522
    %574 = vmatprep.subr.mxu0 0.0
    %575 = vmatpush1.msra.mxu0 %v521
    %576 = vmatprep.subr.mxu0 0.0
    %577 = vmatpush1.msra.mxu0 %v520
    %578 = vmatprep.subr.mxu0 0.0
    %579 = vmatpush1.msra.mxu0 %v519
    %580 = vmatprep.subr.mxu0 0.0
    %581 = vmatpush1.msra.mxu0 %v518
    %582 = vmatprep.subr.mxu0 0.0
    %583 = vmatpush1.msra.mxu0 %v517
    %584 = vmatprep.subr.mxu0 0.0
    %585 = vmatpush1.msra.mxu0 %v516
    %586 = vmatprep.subr.mxu0 0.0
    %587 = vmatpush2.msra.mxu0 %v547
    %588 = vmatprep.subr.mxu0 0.0
    %589 = vmatpush2.msra.mxu0 %v546
    %590 = vmatprep.subr.mxu0 0.0
    %591 = vmatpush2.msra.mxu0 %v545
    %592 = vmatprep.subr.mxu0 0.0
    %593 = vmatpush2.msra.mxu0 %v544
    %594 = vmatprep.subr.mxu0 0.0
    %595 = vmatpush2.msra.mxu0 %v543
    %596 = vmatprep.subr.mxu0 0.0
    %597 = vmatpush2.msra.mxu0 %v542
    %598 = vmatprep.subr.mxu0 0.0
    %599 = vmatpush2.msra.mxu0 %v541
    %600 = vmatprep.subr.mxu0 0.0
    %601 = vmatpush2.msra.mxu0 %v540
    %602 = vmatprep.subr.mxu0 0.0
    %603 = vmatpush2.msra.mxu0 %v539
    %604 = vmatprep.subr.mxu0 0.0
    %605 = vmatpush2.msra.mxu0 %v538
    %606 = vmatprep.subr.mxu0 0.0
    %607 = vmatpush2.msra.mxu0 %v537
    %608 = vmatprep.subr.mxu0 0.0
    %609 = vmatpush2.msra.mxu0 %v536
    %610 = vmatprep.subr.mxu0 0.0
    %611 = vmatpush2.msra.mxu0 %v535
    %612 = vmatprep.subr.mxu0 0.0
    %613 = vmatpush2.msra.mxu0 %v534
    %614 = vmatprep.subr.mxu0 0.0
    %615 = vmatpush2.msra.mxu0 %v533
    %616 = vmatprep.subr.mxu0 0.0
    %617 = vmatpush2.msra.mxu0 %v532
    %618 = vmatprep.mubr.f32.mxu0 %v549
    %619 = vmatmul.mubr.f32.gmra.mxu0 %v548
    %v620 = vpop.f32.mrf.mxu0
    %v621 = vadd.f32 %v553, %v620
    %v622 = vpop.f32.mrf.mxu0
    %623 = vdwg.mxu0
    %v624 = vxor.u32 %v621, 2147483648
    %v625 = vmul.f32 %v624, 1.442695
    %v626 = vpow.pop %v625
    %v627 = vadd.f32 %v626, 1.0
    %v628 = vrcp.pop %v627
    %v629 = vmul.f32 1.0, %v628
    %v630 = vmul.f32 %v629, %v118
    %v631 = vmul.f32 %v202, 0.11111111
    %v632 = vfloor.f32 %v631
    %v633 = vmul.f32 %v632, 9.0
    %v634 = vsub.f32 %v200, %v633
    %vm635 = vcmp.eq.f32.partialorder %v634, 8.0
    %v636 = vsel %vm635, 1, 0
    %v637 = vcvt.s32.f32 %v636
    %v638 = vlaneseq
    %v639 = vshrl.u32 %v638, 7
    %v640 = vsub.s32 2, %v639
    %v641 = vrot.slane %v39, %v640
    %v643 = vsel %vm44, %v630, 0
    %645 = vmatprep.subr.mxu0 0.0
    %646 = vmatpush1.msra.mxu0 0.0
    %647 = vmatprep.subr.mxu0 0.0
    %648 = vmatpush1.msra.mxu0 0.0
    %649 = vmatprep.subr.mxu0 0.0
    %650 = vmatpush1.msra.mxu0 0.0
    %651 = vmatprep.subr.mxu0 0.0
    %652 = vmatpush1.msra.mxu0 0.0
    %653 = vmatprep.subr.mxu0 0.0
    %654 = vmatpush1.msra.mxu0 0.0
    %655 = vmatprep.subr.mxu0 0.0
    %656 = vmatpush1.msra.mxu0 0.0
    %657 = vmatprep.subr.mxu0 0.0
    %658 = vmatpush1.msra.mxu0 0.0
    %659 = vmatprep.subr.mxu0 0.0
    %660 = vmatpush1.msra.mxu0 0.0
    %661 = vmatprep.subr.mxu0 0.0
    %662 = vmatpush1.msra.mxu0 0.0
    %663 = vmatprep.subr.mxu0 0.0
    %664 = vmatpush1.msra.mxu0 0.0
    %665 = vmatprep.subr.mxu0 0.0
    %666 = vmatpush1.msra.mxu0 0.0
    %667 = vmatprep.subr.mxu0 0.0
    %668 = vmatpush1.msra.mxu0 0.0
    %669 = vmatprep.subr.mxu0 0.0
    %670 = vmatpush1.msra.mxu0 %v30
    %671 = vmatprep.subr.mxu0 0.0
    %672 = vmatpush1.msra.mxu0 %v29
    %673 = vmatprep.subr.mxu0 0.0
    %674 = vmatpush1.msra.mxu0 %v28
    %675 = vmatprep.subr.mxu0 0.0
    %676 = vmatpush1.msra.mxu0 %v27
    %677 = vmatprep.subr.mxu0 0.0
    %678 = vmatpush2.msra.mxu0 0.0
    %679 = vmatprep.subr.mxu0 0.0
    %680 = vmatpush2.msra.mxu0 0.0
    %681 = vmatprep.subr.mxu0 0.0
    %682 = vmatpush2.msra.mxu0 0.0
    %683 = vmatprep.subr.mxu0 0.0
    %684 = vmatpush2.msra.mxu0 0.0
    %685 = vmatprep.subr.mxu0 0.0
    %686 = vmatpush2.msra.mxu0 0.0
    %687 = vmatprep.subr.mxu0 0.0
    %688 = vmatpush2.msra.mxu0 0.0
    %689 = vmatprep.subr.mxu0 0.0
    %690 = vmatpush2.msra.mxu0 0.0
    %691 = vmatprep.subr.mxu0 0.0
    %692 = vmatpush2.msra.mxu0 0.0
    %693 = vmatprep.subr.mxu0 0.0
    %694 = vmatpush2.msra.mxu0 0.0
    %695 = vmatprep.subr.mxu0 0.0
    %696 = vmatpush2.msra.mxu0 0.0
    %697 = vmatprep.subr.mxu0 0.0
    %698 = vmatpush2.msra.mxu0 0.0
    %699 = vmatprep.subr.mxu0 0.0
    %700 = vmatpush2.msra.mxu0 0.0
    %701 = vmatprep.subr.mxu0 0.0
    %702 = vmatpush2.msra.mxu0 0.0
    %703 = vmatprep.subr.mxu0 0.0
    %704 = vmatpush2.msra.mxu0 0.0
    %705 = vmatprep.subr.mxu0 0.0
    %706 = vmatpush2.msra.mxu0 0.0
    %707 = vmatprep.subr.mxu0 0.0
    %708 = vmatpush2.msra.mxu0 0.0
    %709 = vmatprep.mubr.f32.mxu0 0.0
    %710 = vmatmul.mubr.f32.gmra.mxu0 %v643
    %v711 = vpop.f32.mrf.mxu0
    %v712 = vadd.f32 %v641, %v711
    %v713 = vpop.f32.mrf.mxu0
    %714 = vdwg.mxu0
    %v715 = vmax.f32 %v712, 0.0
    %v716 = vadd.f32 %v715, %v637
    %vm717 = vcmp.lt.f32.partialorder %v196, 9.0
    %vm718 = vcmp.lt.f32.partialorder %v325, 9.0
    %vm719 = vcmp.lt.f32.partialorder %v326, 9.0
    %vm720 = vcmp.lt.f32.partialorder %v327, 9.0
    %vm721 = vcmp.lt.f32.partialorder %v328, 9.0
    %vm722 = vcmp.eq.f32.partialorder %v632, %v196
    %vm723 = vcmp.eq.f32.partialorder %v632, %v325
    %vm724 = vcmp.eq.f32.partialorder %v632, %v326
    %vm725 = vcmp.eq.f32.partialorder %v632, %v327
    %vm726 = vcmp.eq.f32.partialorder %v632, %v328
    %vm727 = vmand %vm717, %vm722
    %vm728 = vmand %vm718, %vm723
    %vm729 = vmand %vm719, %vm724
    %vm730 = vmand %vm720, %vm725
    %vm731 = vmand %vm721, %vm726
    %v732 = vsel %vm727, 1, 0
    %v733 = vsel %vm728, 1, 0
    %v734 = vsel %vm729, 1, 0
    %v735 = vsel %vm730, 1, 0
    %v736 = vsel %vm731, 1, 0
    %v737 = vcvt.s32.f32 %v732
    %v738 = vcvt.s32.f32 %v733
    %v739 = vcvt.s32.f32 %v734
    %v740 = vcvt.s32.f32 %v735
    %v741 = vcvt.s32.f32 %v736
    %vm742 = vcmp.ge.f32.partialorder %v196, 9.0
    %vm743 = vcmp.ge.f32.partialorder %v325, 9.0
    %vm744 = vcmp.ge.f32.partialorder %v326, 9.0
    %vm745 = vcmp.ge.f32.partialorder %v327, 9.0
    %vm746 = vcmp.ge.f32.partialorder %v328, 9.0
    %vm747 = vcmp.lt.f32.partialorder %v196, 18.0
    %vm748 = vcmp.lt.f32.partialorder %v325, 18.0
    %vm749 = vcmp.lt.f32.partialorder %v326, 18.0
    %vm750 = vcmp.lt.f32.partialorder %v327, 18.0
    %vm751 = vcmp.lt.f32.partialorder %v328, 18.0
    %vm752 = vmand %vm742, %vm747
    %vm753 = vmand %vm743, %vm748
    %vm754 = vmand %vm744, %vm749
    %vm755 = vmand %vm745, %vm750
    %vm756 = vmand %vm746, %vm751
    %v757 = vsub.f32 %v196, 9.0
    %v758 = vsub.f32 %v325, 9.0
    %v759 = vsub.f32 %v326, 9.0
    %v760 = vsub.f32 %v327, 9.0
    %v761 = vsub.f32 %v328, 9.0
    %vm762 = vcmp.eq.f32.partialorder %v634, %v757
    %vm763 = vcmp.eq.f32.partialorder %v634, %v758
    %vm764 = vcmp.eq.f32.partialorder %v634, %v759
    %vm765 = vcmp.eq.f32.partialorder %v634, %v760
    %vm766 = vcmp.eq.f32.partialorder %v634, %v761
    %vm767 = vmand %vm752, %vm762
    %vm768 = vmand %vm753, %vm763
    %vm769 = vmand %vm754, %vm764
    %vm770 = vmand %vm755, %vm765
    %vm771 = vmand %vm756, %vm766
    %v772 = vsel %vm767, 1, 0
    %v773 = vsel %vm768, 1, 0
    %v774 = vsel %vm769, 1, 0
    %v775 = vsel %vm770, 1, 0
    %v776 = vsel %vm771, 1, 0
    %v777 = vcvt.s32.f32 %v772
    %v778 = vcvt.s32.f32 %v773
    %v779 = vcvt.s32.f32 %v774
    %v780 = vcvt.s32.f32 %v775
    %v781 = vcvt.s32.f32 %v776
    %vm782 = vcmask 293888
    %v784 = vsel %vm782, %v716, 0
    %vm786 = vcmask 1043456
    %v788 = vsel %vm786, %v741, 0
    %790 = vmatprep.subr.mxu0 0.0
    %791 = vmatpush1.msra.mxu0 0.0
    %792 = vmatprep.subr.mxu0 0.0
    %793 = vmatpush1.msra.mxu0 0.0
    %794 = vmatprep.subr.mxu0 0.0
    %795 = vmatpush1.msra.mxu0 0.0
    %796 = vmatprep.subr.mxu0 0.0
    %797 = vmatpush1.msra.mxu0 0.0
    %798 = vmatprep.subr.mxu0 0.0
    %799 = vmatpush1.msra.mxu0 0.0
    %800 = vmatprep.subr.mxu0 0.0
    %801 = vmatpush1.msra.mxu0 0.0
    %802 = vmatprep.subr.mxu0 0.0
    %803 = vmatpush1.msra.mxu0 0.0
    %804 = vmatprep.subr.mxu0 0.0
    %805 = vmatpush1.msra.mxu0 0.0
    %806 = vmatprep.subr.mxu0 0.0
    %807 = vmatpush1.msra.mxu0 0.0
    %808 = vmatprep.subr.mxu0 0.0
    %809 = vmatpush1.msra.mxu0 0.0
    %810 = vmatprep.subr.mxu0 0.0
    %811 = vmatpush1.msra.mxu0 0.0
    %812 = vmatprep.subr.mxu0 0.0
    %813 = vmatpush1.msra.mxu0 %v788
    %814 = vmatprep.subr.mxu0 0.0
    %815 = vmatpush1.msra.mxu0 %v740
    %816 = vmatprep.subr.mxu0 0.0
    %817 = vmatpush1.msra.mxu0 %v739
    %818 = vmatprep.subr.mxu0 0.0
    %819 = vmatpush1.msra.mxu0 %v738
    %820 = vmatprep.subr.mxu0 0.0
    %821 = vmatpush1.msra.mxu0 %v737
    %822 = vmatprep.subr.mxu0 0.0
    %823 = vmatpush2.msra.mxu0 0.0
    %824 = vmatprep.subr.mxu0 0.0
    %825 = vmatpush2.msra.mxu0 0.0
    %826 = vmatprep.subr.mxu0 0.0
    %827 = vmatpush2.msra.mxu0 0.0
    %828 = vmatprep.subr.mxu0 0.0
    %829 = vmatpush2.msra.mxu0 0.0
    %830 = vmatprep.subr.mxu0 0.0
    %831 = vmatpush2.msra.mxu0 0.0
    %832 = vmatprep.subr.mxu0 0.0
    %833 = vmatpush2.msra.mxu0 0.0
    %834 = vmatprep.subr.mxu0 0.0
    %835 = vmatpush2.msra.mxu0 0.0
    %836 = vmatprep.subr.mxu0 0.0
    %837 = vmatpush2.msra.mxu0 0.0
    %838 = vmatprep.subr.mxu0 0.0
    %839 = vmatpush2.msra.mxu0 0.0
    %840 = vmatprep.subr.mxu0 0.0
    %841 = vmatpush2.msra.mxu0 0.0
    %842 = vmatprep.subr.mxu0 0.0
    %843 = vmatpush2.msra.mxu0 0.0
    %844 = vmatprep.subr.mxu0 0.0
    %845 = vmatpush2.msra.mxu0 0.0
    %846 = vmatprep.subr.mxu0 0.0
    %847 = vmatpush2.msra.mxu0 0.0
    %848 = vmatprep.subr.mxu0 0.0
    %849 = vmatpush2.msra.mxu0 0.0
    %850 = vmatprep.subr.mxu0 0.0
    %851 = vmatpush2.msra.mxu0 0.0
    %852 = vmatprep.subr.mxu0 0.0
    %853 = vmatpush2.msra.mxu0 0.0
    %854 = vmatprep.mubr.f32.mxu0 0.0
    %855 = vmatmul.mubr.f32.gmra.mxu0 %v784
    %v856 = vpop.f32.mrf.mxu0
    %v857 = vadd.f32 0.0, %v856
    %v858 = vpop.f32.mrf.mxu0
    %859 = vdwg.mxu0
    %v861 = vsel %vm786, %v781, 0
    %863 = vmatprep.subr.mxu0 0.0
    %864 = vmatpush1.msra.mxu0 0.0
    %865 = vmatprep.subr.mxu0 0.0
    %866 = vmatpush1.msra.mxu0 0.0
    %867 = vmatprep.subr.mxu0 0.0
    %868 = vmatpush1.msra.mxu0 0.0
    %869 = vmatprep.subr.mxu0 0.0
    %870 = vmatpush1.msra.mxu0 0.0
    %871 = vmatprep.subr.mxu0 0.0
    %872 = vmatpush1.msra.mxu0 0.0
    %873 = vmatprep.subr.mxu0 0.0
    %874 = vmatpush1.msra.mxu0 0.0
    %875 = vmatprep.subr.mxu0 0.0
    %876 = vmatpush1.msra.mxu0 0.0
    %877 = vmatprep.subr.mxu0 0.0
    %878 = vmatpush1.msra.mxu0 0.0
    %879 = vmatprep.subr.mxu0 0.0
    %880 = vmatpush1.msra.mxu0 0.0
    %881 = vmatprep.subr.mxu0 0.0
    %882 = vmatpush1.msra.mxu0 0.0
    %883 = vmatprep.subr.mxu0 0.0
    %884 = vmatpush1.msra.mxu0 0.0
    %885 = vmatprep.subr.mxu0 0.0
    %886 = vmatpush1.msra.mxu0 %v861
    %887 = vmatprep.subr.mxu0 0.0
    %888 = vmatpush1.msra.mxu0 %v780
    %889 = vmatprep.subr.mxu0 0.0
    %890 = vmatpush1.msra.mxu0 %v779
    %891 = vmatprep.subr.mxu0 0.0
    %892 = vmatpush1.msra.mxu0 %v778
    %893 = vmatprep.subr.mxu0 0.0
    %894 = vmatpush1.msra.mxu0 %v777
    %895 = vmatprep.subr.mxu0 0.0
    %896 = vmatpush2.msra.mxu0 0.0
    %897 = vmatprep.subr.mxu0 0.0
    %898 = vmatpush2.msra.mxu0 0.0
    %899 = vmatprep.subr.mxu0 0.0
    %900 = vmatpush2.msra.mxu0 0.0
    %901 = vmatprep.subr.mxu0 0.0
    %902 = vmatpush2.msra.mxu0 0.0
    %903 = vmatprep.subr.mxu0 0.0
    %904 = vmatpush2.msra.mxu0 0.0
    %905 = vmatprep.subr.mxu0 0.0
    %906 = vmatpush2.msra.mxu0 0.0
    %907 = vmatprep.subr.mxu0 0.0
    %908 = vmatpush2.msra.mxu0 0.0
    %909 = vmatprep.subr.mxu0 0.0
    %910 = vmatpush2.msra.mxu0 0.0
    %911 = vmatprep.subr.mxu0 0.0
    %912 = vmatpush2.msra.mxu0 0.0
    %913 = vmatprep.subr.mxu0 0.0
    %914 = vmatpush2.msra.mxu0 0.0
    %915 = vmatprep.subr.mxu0 0.0
    %916 = vmatpush2.msra.mxu0 0.0
    %917 = vmatprep.subr.mxu0 0.0
    %918 = vmatpush2.msra.mxu0 0.0
    %919 = vmatprep.subr.mxu0 0.0
    %920 = vmatpush2.msra.mxu0 0.0
    %921 = vmatprep.subr.mxu0 0.0
    %922 = vmatpush2.msra.mxu0 0.0
    %923 = vmatprep.subr.mxu0 0.0
    %924 = vmatpush2.msra.mxu0 0.0
    %925 = vmatprep.subr.mxu0 0.0
    %926 = vmatpush2.msra.mxu0 0.0
    %927 = vmatprep.mubr.f32.mxu0 0.0
    %928 = vmatmul.mubr.f32.gmra.mxu0 %v784
    %v929 = vpop.f32.mrf.mxu0
    %v930 = vadd.f32 0.0, %v929
    %v931 = vpop.f32.mrf.mxu0
    %932 = vdwg.mxu0
    %v933 = vmul.f32 %v857, %v930
    %v934 = vadd.s32 %v198, 256
    %v935 = vadd.s32 %v198, 384
    %v936 = vadd.s32 %v198, 512
    %v937 = vadd.s32 %v198, 640
    %v938 = vcvt.s32.f32 %v934
    %v939 = vcvt.s32.f32 %v935
    %v940 = vcvt.s32.f32 %v936
    %v941 = vcvt.s32.f32 %v937
    %v942 = vadd.f32 %v938, 0.5
    %v943 = vadd.f32 %v939, 0.5
    %v944 = vadd.f32 %v940, 0.5
    %v945 = vadd.f32 %v941, 0.5
    %v946 = vmul.f32 %v203, 0.11111111
    %v947 = vmul.f32 %v942, 0.11111111
    %v948 = vmul.f32 %v943, 0.11111111
    %v949 = vmul.f32 %v944, 0.11111111
    %v950 = vmul.f32 %v945, 0.11111111
    %v951 = vfloor.f32 %v946
    %v952 = vfloor.f32 %v947
    %v953 = vfloor.f32 %v948
    %v954 = vfloor.f32 %v949
    %v955 = vfloor.f32 %v950
    %vm956 = vcmp.eq.f32.partialorder %v951, %v196
    %vm957 = vcmp.eq.f32.partialorder %v952, %v196
    %vm958 = vcmp.eq.f32.partialorder %v953, %v196
    %vm959 = vcmp.eq.f32.partialorder %v954, %v196
    %vm960 = vcmp.eq.f32.partialorder %v955, %v196
    %vm961 = vcmp.eq.f32.partialorder %v951, %v325
    %vm962 = vcmp.eq.f32.partialorder %v952, %v325
    %vm963 = vcmp.eq.f32.partialorder %v953, %v325
    %vm964 = vcmp.eq.f32.partialorder %v954, %v325
    %vm965 = vcmp.eq.f32.partialorder %v955, %v325
    %vm966 = vcmp.eq.f32.partialorder %v951, %v326
    %vm967 = vcmp.eq.f32.partialorder %v952, %v326
    %vm968 = vcmp.eq.f32.partialorder %v953, %v326
    %vm969 = vcmp.eq.f32.partialorder %v954, %v326
    %vm970 = vcmp.eq.f32.partialorder %v955, %v326
    %vm971 = vcmp.eq.f32.partialorder %v951, %v327
    %vm972 = vcmp.eq.f32.partialorder %v952, %v327
    %vm973 = vcmp.eq.f32.partialorder %v953, %v327
    %vm974 = vcmp.eq.f32.partialorder %v954, %v327
    %vm975 = vcmp.eq.f32.partialorder %v955, %v327
    %vm976 = vcmp.eq.f32.partialorder %v951, %v328
    %vm977 = vcmp.eq.f32.partialorder %v952, %v328
    %vm978 = vcmp.eq.f32.partialorder %v953, %v328
    %vm979 = vcmp.eq.f32.partialorder %v954, %v328
    %vm980 = vcmp.eq.f32.partialorder %v955, %v328
    %vm981 = vcmp.eq.f32.partialorder %v632, %v329
    %vm982 = vcmp.eq.f32.partialorder %v951, %v329
    %vm983 = vcmp.eq.f32.partialorder %v952, %v329
    %vm984 = vcmp.eq.f32.partialorder %v953, %v329
    %vm985 = vcmp.eq.f32.partialorder %v954, %v329
    %vm986 = vcmp.eq.f32.partialorder %v955, %v329
    %vm987 = vcmp.eq.f32.partialorder %v632, %v330
    %vm988 = vcmp.eq.f32.partialorder %v951, %v330
    %vm989 = vcmp.eq.f32.partialorder %v952, %v330
    %vm990 = vcmp.eq.f32.partialorder %v953, %v330
    %vm991 = vcmp.eq.f32.partialorder %v954, %v330
    %vm992 = vcmp.eq.f32.partialorder %v955, %v330
    %vm993 = vcmp.eq.f32.partialorder %v632, %v331
    %vm994 = vcmp.eq.f32.partialorder %v951, %v331
    %vm995 = vcmp.eq.f32.partialorder %v952, %v331
    %vm996 = vcmp.eq.f32.partialorder %v953, %v331
    %vm997 = vcmp.eq.f32.partialorder %v954, %v331
    %vm998 = vcmp.eq.f32.partialorder %v955, %v331
    %vm999 = vcmp.eq.f32.partialorder %v632, %v332
    %vm1000 = vcmp.eq.f32.partialorder %v951, %v332
    %vm1001 = vcmp.eq.f32.partialorder %v952, %v332
    %vm1002 = vcmp.eq.f32.partialorder %v953, %v332
    %vm1003 = vcmp.eq.f32.partialorder %v954, %v332
    %vm1004 = vcmp.eq.f32.partialorder %v955, %v332
    %vm1005 = vcmp.eq.f32.partialorder %v632, %v333
    %vm1006 = vcmp.eq.f32.partialorder %v951, %v333
    %vm1007 = vcmp.eq.f32.partialorder %v952, %v333
    %vm1008 = vcmp.eq.f32.partialorder %v953, %v333
    %vm1009 = vcmp.eq.f32.partialorder %v954, %v333
    %vm1010 = vcmp.eq.f32.partialorder %v955, %v333
    %vm1011 = vcmp.eq.f32.partialorder %v632, %v334
    %vm1012 = vcmp.eq.f32.partialorder %v951, %v334
    %vm1013 = vcmp.eq.f32.partialorder %v952, %v334
    %vm1014 = vcmp.eq.f32.partialorder %v953, %v334
    %vm1015 = vcmp.eq.f32.partialorder %v954, %v334
    %vm1016 = vcmp.eq.f32.partialorder %v955, %v334
    %v1017 = vsel %vm722, 1, 0
    %v1018 = vsel %vm956, 1, 0
    %v1019 = vsel %vm957, 1, 0
    %v1020 = vsel %vm958, 1, 0
    %v1021 = vsel %vm959, 1, 0
    %v1022 = vsel %vm960, 1, 0
    %v1023 = vsel %vm723, 1, 0
    %v1024 = vsel %vm961, 1, 0
    %v1025 = vsel %vm962, 1, 0
    %v1026 = vsel %vm963, 1, 0
    %v1027 = vsel %vm964, 1, 0
    %v1028 = vsel %vm965, 1, 0
    %v1029 = vsel %vm724, 1, 0
    %v1030 = vsel %vm966, 1, 0
    %v1031 = vsel %vm967, 1, 0
    %v1032 = vsel %vm968, 1, 0
    %v1033 = vsel %vm969, 1, 0
    %v1034 = vsel %vm970, 1, 0
    %v1035 = vsel %vm725, 1, 0
    %v1036 = vsel %vm971, 1, 0
    %v1037 = vsel %vm972, 1, 0
    %v1038 = vsel %vm973, 1, 0
    %v1039 = vsel %vm974, 1, 0
    %v1040 = vsel %vm975, 1, 0
    %v1041 = vsel %vm726, 1, 0
    %v1042 = vsel %vm976, 1, 0
    %v1043 = vsel %vm977, 1, 0
    %v1044 = vsel %vm978, 1, 0
    %v1045 = vsel %vm979, 1, 0
    %v1046 = vsel %vm980, 1, 0
    %v1047 = vsel %vm981, 1, 0
    %v1048 = vsel %vm982, 1, 0
    %v1049 = vsel %vm983, 1, 0
    %v1050 = vsel %vm984, 1, 0
    %v1051 = vsel %vm985, 1, 0
    %v1052 = vsel %vm986, 1, 0
    %v1053 = vsel %vm987, 1, 0
    %v1054 = vsel %vm988, 1, 0
    %v1055 = vsel %vm989, 1, 0
    %v1056 = vsel %vm990, 1, 0
    %v1057 = vsel %vm991, 1, 0
    %v1058 = vsel %vm992, 1, 0
    %v1059 = vsel %vm993, 1, 0
    %v1060 = vsel %vm994, 1, 0
    %v1061 = vsel %vm995, 1, 0
    %v1062 = vsel %vm996, 1, 0
    %v1063 = vsel %vm997, 1, 0
    %v1064 = vsel %vm998, 1, 0
    %v1065 = vsel %vm999, 1, 0
    %v1066 = vsel %vm1000, 1, 0
    %v1067 = vsel %vm1001, 1, 0
    %v1068 = vsel %vm1002, 1, 0
    %v1069 = vsel %vm1003, 1, 0
    %v1070 = vsel %vm1004, 1, 0
    %v1071 = vsel %vm1005, 1, 0
    %v1072 = vsel %vm1006, 1, 0
    %v1073 = vsel %vm1007, 1, 0
    %v1074 = vsel %vm1008, 1, 0
    %v1075 = vsel %vm1009, 1, 0
    %v1076 = vsel %vm1010, 1, 0
    %v1077 = vsel %vm1011, 1, 0
    %v1078 = vsel %vm1012, 1, 0
    %v1079 = vsel %vm1013, 1, 0
    %v1080 = vsel %vm1014, 1, 0
    %v1081 = vsel %vm1015, 1, 0
    %v1082 = vsel %vm1016, 1, 0
    %v1083 = vcvt.s32.f32 %v1017
    %v1084 = vcvt.s32.f32 %v1018
    %v1085 = vcvt.s32.f32 %v1019
    %v1086 = vcvt.s32.f32 %v1020
    %v1087 = vcvt.s32.f32 %v1021
    %v1088 = vcvt.s32.f32 %v1022
    %v1089 = vcvt.s32.f32 %v1023
    %v1090 = vcvt.s32.f32 %v1024
    %v1091 = vcvt.s32.f32 %v1025
    %v1092 = vcvt.s32.f32 %v1026
    %v1093 = vcvt.s32.f32 %v1027
    %v1094 = vcvt.s32.f32 %v1028
    %v1095 = vcvt.s32.f32 %v1029
    %v1096 = vcvt.s32.f32 %v1030
    %v1097 = vcvt.s32.f32 %v1031
    %v1098 = vcvt.s32.f32 %v1032
    %v1099 = vcvt.s32.f32 %v1033
    %v1100 = vcvt.s32.f32 %v1034
    %v1101 = vcvt.s32.f32 %v1035
    %v1102 = vcvt.s32.f32 %v1036
    %v1103 = vcvt.s32.f32 %v1037
    %v1104 = vcvt.s32.f32 %v1038
    %v1105 = vcvt.s32.f32 %v1039
    %v1106 = vcvt.s32.f32 %v1040
    %v1107 = vcvt.s32.f32 %v1041
    %v1108 = vcvt.s32.f32 %v1042
    %v1109 = vcvt.s32.f32 %v1043
    %v1110 = vcvt.s32.f32 %v1044
    %v1111 = vcvt.s32.f32 %v1045
    %v1112 = vcvt.s32.f32 %v1046
    %v1113 = vcvt.s32.f32 %v1047
    %v1114 = vcvt.s32.f32 %v1048
    %v1115 = vcvt.s32.f32 %v1049
    %v1116 = vcvt.s32.f32 %v1050
    %v1117 = vcvt.s32.f32 %v1051
    %v1118 = vcvt.s32.f32 %v1052
    %v1119 = vcvt.s32.f32 %v1053
    %v1120 = vcvt.s32.f32 %v1054
    %v1121 = vcvt.s32.f32 %v1055
    %v1122 = vcvt.s32.f32 %v1056
    %v1123 = vcvt.s32.f32 %v1057
    %v1124 = vcvt.s32.f32 %v1058
    %v1125 = vcvt.s32.f32 %v1059
    %v1126 = vcvt.s32.f32 %v1060
    %v1127 = vcvt.s32.f32 %v1061
    %v1128 = vcvt.s32.f32 %v1062
    %v1129 = vcvt.s32.f32 %v1063
    %v1130 = vcvt.s32.f32 %v1064
    %v1131 = vcvt.s32.f32 %v1065
    %v1132 = vcvt.s32.f32 %v1066
    %v1133 = vcvt.s32.f32 %v1067
    %v1134 = vcvt.s32.f32 %v1068
    %v1135 = vcvt.s32.f32 %v1069
    %v1136 = vcvt.s32.f32 %v1070
    %v1137 = vcvt.s32.f32 %v1071
    %v1138 = vcvt.s32.f32 %v1072
    %v1139 = vcvt.s32.f32 %v1073
    %v1140 = vcvt.s32.f32 %v1074
    %v1141 = vcvt.s32.f32 %v1075
    %v1142 = vcvt.s32.f32 %v1076
    %v1143 = vcvt.s32.f32 %v1077
    %v1144 = vcvt.s32.f32 %v1078
    %v1145 = vcvt.s32.f32 %v1079
    %v1146 = vcvt.s32.f32 %v1080
    %v1147 = vcvt.s32.f32 %v1081
    %v1148 = vcvt.s32.f32 %v1082
    %vm1149 = vcmp.ge.f32.partialorder %v196, 18.0
    %vm1150 = vcmp.ge.f32.partialorder %v325, 18.0
    %vm1151 = vcmp.ge.f32.partialorder %v326, 18.0
    %vm1152 = vcmp.ge.f32.partialorder %v327, 18.0
    %vm1153 = vcmp.ge.f32.partialorder %v328, 18.0
    %vm1154 = vcmp.lt.f32.partialorder %v196, 27.0
    %vm1155 = vcmp.lt.f32.partialorder %v325, 27.0
    %vm1156 = vcmp.lt.f32.partialorder %v326, 27.0
    %vm1157 = vcmp.lt.f32.partialorder %v327, 27.0
    %vm1158 = vcmp.lt.f32.partialorder %v328, 27.0
    %vm1159 = vmand %vm1149, %vm1154
    %vm1160 = vmand %vm1150, %vm1155
    %vm1161 = vmand %vm1151, %vm1156
    %vm1162 = vmand %vm1152, %vm1157
    %vm1163 = vmand %vm1153, %vm1158
    %v1164 = vmul.f32 %v951, 9.0
    %v1165 = vmul.f32 %v952, 9.0
    %v1166 = vmul.f32 %v953, 9.0
    %v1167 = vmul.f32 %v954, 9.0
    %v1168 = vmul.f32 %v955, 9.0
    %v1169 = vsub.f32 %v201, %v1164
    %v1170 = vsub.f32 %v938, %v1165
    %v1171 = vsub.f32 %v939, %v1166
    %v1172 = vsub.f32 %v940, %v1167
    %v1173 = vsub.f32 %v941, %v1168
    %v1174 = vsub.f32 %v196, 18.0
    %v1175 = vsub.f32 %v325, 18.0
    %v1176 = vsub.f32 %v326, 18.0
    %v1177 = vsub.f32 %v327, 18.0
    %v1178 = vsub.f32 %v328, 18.0
    %vm1179 = vcmp.eq.f32.partialorder %v634, %v1174
    %vm1180 = vcmp.eq.f32.partialorder %v1169, %v1174
    %vm1181 = vcmp.eq.f32.partialorder %v1170, %v1174
    %vm1182 = vcmp.eq.f32.partialorder %v1171, %v1174
    %vm1183 = vcmp.eq.f32.partialorder %v1172, %v1174
    %vm1184 = vcmp.eq.f32.partialorder %v1173, %v1174
    %vm1185 = vcmp.eq.f32.partialorder %v634, %v1175
    %vm1186 = vcmp.eq.f32.partialorder %v1169, %v1175
    %vm1187 = vcmp.eq.f32.partialorder %v1170, %v1175
    %vm1188 = vcmp.eq.f32.partialorder %v1171, %v1175
    %vm1189 = vcmp.eq.f32.partialorder %v1172, %v1175
    %vm1190 = vcmp.eq.f32.partialorder %v1173, %v1175
    %vm1191 = vcmp.eq.f32.partialorder %v634, %v1176
    %vm1192 = vcmp.eq.f32.partialorder %v1169, %v1176
    %vm1193 = vcmp.eq.f32.partialorder %v1170, %v1176
    %vm1194 = vcmp.eq.f32.partialorder %v1171, %v1176
    %vm1195 = vcmp.eq.f32.partialorder %v1172, %v1176
    %vm1196 = vcmp.eq.f32.partialorder %v1173, %v1176
    %vm1197 = vcmp.eq.f32.partialorder %v634, %v1177
    %vm1198 = vcmp.eq.f32.partialorder %v1169, %v1177
    %vm1199 = vcmp.eq.f32.partialorder %v1170, %v1177
    %vm1200 = vcmp.eq.f32.partialorder %v1171, %v1177
    %vm1201 = vcmp.eq.f32.partialorder %v1172, %v1177
    %vm1202 = vcmp.eq.f32.partialorder %v1173, %v1177
    %vm1203 = vcmp.eq.f32.partialorder %v634, %v1178
    %vm1204 = vcmp.eq.f32.partialorder %v1169, %v1178
    %vm1205 = vcmp.eq.f32.partialorder %v1170, %v1178
    %vm1206 = vcmp.eq.f32.partialorder %v1171, %v1178
    %vm1207 = vcmp.eq.f32.partialorder %v1172, %v1178
    %vm1208 = vcmp.eq.f32.partialorder %v1173, %v1178
    %vm1209 = vmand %vm1159, %vm1179
    %vm1210 = vmand %vm1159, %vm1180
    %vm1211 = vmand %vm1159, %vm1181
    %vm1212 = vmand %vm1159, %vm1182
    %vm1213 = vmand %vm1159, %vm1183
    %vm1214 = vmand %vm1159, %vm1184
    %vm1215 = vmand %vm1160, %vm1185
    %vm1216 = vmand %vm1160, %vm1186
    %vm1217 = vmand %vm1160, %vm1187
    %vm1218 = vmand %vm1160, %vm1188
    %vm1219 = vmand %vm1160, %vm1189
    %vm1220 = vmand %vm1160, %vm1190
    %vm1221 = vmand %vm1161, %vm1191
    %vm1222 = vmand %vm1161, %vm1192
    %vm1223 = vmand %vm1161, %vm1193
    %vm1224 = vmand %vm1161, %vm1194
    %vm1225 = vmand %vm1161, %vm1195
    %vm1226 = vmand %vm1161, %vm1196
    %vm1227 = vmand %vm1162, %vm1197
    %vm1228 = vmand %vm1162, %vm1198
    %vm1229 = vmand %vm1162, %vm1199
    %vm1230 = vmand %vm1162, %vm1200
    %vm1231 = vmand %vm1162, %vm1201
    %vm1232 = vmand %vm1162, %vm1202
    %vm1233 = vmand %vm1163, %vm1203
    %vm1234 = vmand %vm1163, %vm1204
    %vm1235 = vmand %vm1163, %vm1205
    %vm1236 = vmand %vm1163, %vm1206
    %vm1237 = vmand %vm1163, %vm1207
    %vm1238 = vmand %vm1163, %vm1208
    %v1239 = vsel %vm1209, 1, 0
    %v1240 = vsel %vm1210, 1, 0
    %v1241 = vsel %vm1211, 1, 0
    %v1242 = vsel %vm1212, 1, 0
    %v1243 = vsel %vm1213, 1, 0
    %v1244 = vsel %vm1214, 1, 0
    %v1245 = vsel %vm1215, 1, 0
    %v1246 = vsel %vm1216, 1, 0
    %v1247 = vsel %vm1217, 1, 0
    %v1248 = vsel %vm1218, 1, 0
    %v1249 = vsel %vm1219, 1, 0
    %v1250 = vsel %vm1220, 1, 0
    %v1251 = vsel %vm1221, 1, 0
    %v1252 = vsel %vm1222, 1, 0
    %v1253 = vsel %vm1223, 1, 0
    %v1254 = vsel %vm1224, 1, 0
    %v1255 = vsel %vm1225, 1, 0
    %v1256 = vsel %vm1226, 1, 0
    %v1257 = vsel %vm1227, 1, 0
    %v1258 = vsel %vm1228, 1, 0
    %v1259 = vsel %vm1229, 1, 0
    %v1260 = vsel %vm1230, 1, 0
    %v1261 = vsel %vm1231, 1, 0
    %v1262 = vsel %vm1232, 1, 0
    %v1263 = vsel %vm1233, 1, 0
    %v1264 = vsel %vm1234, 1, 0
    %v1265 = vsel %vm1235, 1, 0
    %v1266 = vsel %vm1236, 1, 0
    %v1267 = vsel %vm1237, 1, 0
    %v1268 = vsel %vm1238, 1, 0
    %v1269 = vcvt.s32.f32 %v1239
    %v1270 = vcvt.s32.f32 %v1240
    %v1271 = vcvt.s32.f32 %v1241
    %v1272 = vcvt.s32.f32 %v1242
    %v1273 = vcvt.s32.f32 %v1243
    %v1274 = vcvt.s32.f32 %v1244
    %v1275 = vcvt.s32.f32 %v1245
    %v1276 = vcvt.s32.f32 %v1246
    %v1277 = vcvt.s32.f32 %v1247
    %v1278 = vcvt.s32.f32 %v1248
    %v1279 = vcvt.s32.f32 %v1249
    %v1280 = vcvt.s32.f32 %v1250
    %v1281 = vcvt.s32.f32 %v1251
    %v1282 = vcvt.s32.f32 %v1252
    %v1283 = vcvt.s32.f32 %v1253
    %v1284 = vcvt.s32.f32 %v1254
    %v1285 = vcvt.s32.f32 %v1255
    %v1286 = vcvt.s32.f32 %v1256
    %v1287 = vcvt.s32.f32 %v1257
    %v1288 = vcvt.s32.f32 %v1258
    %v1289 = vcvt.s32.f32 %v1259
    %v1290 = vcvt.s32.f32 %v1260
    %v1291 = vcvt.s32.f32 %v1261
    %v1292 = vcvt.s32.f32 %v1262
    %v1293 = vcvt.s32.f32 %v1263
    %v1294 = vcvt.s32.f32 %v1264
    %v1295 = vcvt.s32.f32 %v1265
    %v1296 = vcvt.s32.f32 %v1266
    %v1297 = vcvt.s32.f32 %v1267
    %v1298 = vcvt.s32.f32 %v1268
    %vm1299 = vcmask 662528
    %v1301 = vsel %vm1299, %v933, 0
    %vm1303 = vcmask 1040384
    %v1305 = vsel %vm1303, %v1143, 0
    %v1308 = vsel %vm1303, %v1144, 0
    %v1311 = vsel %vm1303, %v1145, 0
    %v1314 = vsel %vm1303, %v1146, 0
    %v1317 = vsel %vm1303, %v1147, 0
    %v1320 = vsel %vm1303, %v1148, 0
    %1322 = vmatprep.subr.mxu0 0.0
    %1323 = vmatpush1.msra.mxu0 0.0
    %1324 = vmatprep.subr.mxu0 0.0
    %1325 = vmatpush1.msra.mxu0 0.0
    %1326 = vmatprep.subr.mxu0 0.0
    %1327 = vmatpush1.msra.mxu0 0.0
    %1328 = vmatprep.subr.mxu0 0.0
    %1329 = vmatpush1.msra.mxu0 0.0
    %1330 = vmatprep.subr.mxu0 0.0
    %1331 = vmatpush1.msra.mxu0 0.0
    %1332 = vmatprep.subr.mxu0 %v1308
    %1333 = vmatpush1.msra.mxu0 %v1305
    %1334 = vmatprep.subr.mxu0 %v1138
    %1335 = vmatpush1.msra.mxu0 %v1137
    %1336 = vmatprep.subr.mxu0 %v1132
    %1337 = vmatpush1.msra.mxu0 %v1131
    %1338 = vmatprep.subr.mxu0 %v1126
    %1339 = vmatpush1.msra.mxu0 %v1125
    %1340 = vmatprep.subr.mxu0 %v1120
    %1341 = vmatpush1.msra.mxu0 %v1119
    %1342 = vmatprep.subr.mxu0 %v1114
    %1343 = vmatpush1.msra.mxu0 %v1113
    %1344 = vmatprep.subr.mxu0 %v1108
    %1345 = vmatpush1.msra.mxu0 %v1107
    %1346 = vmatprep.subr.mxu0 %v1102
    %1347 = vmatpush1.msra.mxu0 %v1101
    %1348 = vmatprep.subr.mxu0 %v1096
    %1349 = vmatpush1.msra.mxu0 %v1095
    %1350 = vmatprep.subr.mxu0 %v1090
    %1351 = vmatpush1.msra.mxu0 %v1089
    %1352 = vmatprep.subr.mxu0 %v1084
    %1353 = vmatpush1.msra.mxu0 %v1083
    %1354 = vmatprep.subr.mxu0 0.0
    %1355 = vmatpush2.msra.mxu0 0.0
    %1356 = vmatprep.subr.mxu0 0.0
    %1357 = vmatpush2.msra.mxu0 0.0
    %1358 = vmatprep.subr.mxu0 0.0
    %1359 = vmatpush2.msra.mxu0 0.0
    %1360 = vmatprep.subr.mxu0 0.0
    %1361 = vmatpush2.msra.mxu0 0.0
    %1362 = vmatprep.subr.mxu0 0.0
    %1363 = vmatpush2.msra.mxu0 0.0
    %1364 = vmatprep.subr.mxu0 0.0
    %1365 = vmatpush2.msra.mxu0 0.0
    %1366 = vmatprep.subr.mxu0 0.0
    %1367 = vmatpush2.msra.mxu0 0.0
    %1368 = vmatprep.subr.mxu0 0.0
    %1369 = vmatpush2.msra.mxu0 0.0
    %1370 = vmatprep.subr.mxu0 0.0
    %1371 = vmatpush2.msra.mxu0 0.0
    %1372 = vmatprep.subr.mxu0 0.0
    %1373 = vmatpush2.msra.mxu0 0.0
    %1374 = vmatprep.subr.mxu0 0.0
    %1375 = vmatpush2.msra.mxu0 0.0
    %1376 = vmatprep.subr.mxu0 0.0
    %1377 = vmatpush2.msra.mxu0 0.0
    %1378 = vmatprep.subr.mxu0 0.0
    %1379 = vmatpush2.msra.mxu0 0.0
    %1380 = vmatprep.subr.mxu0 0.0
    %1381 = vmatpush2.msra.mxu0 0.0
    %1382 = vmatprep.subr.mxu0 0.0
    %1383 = vmatpush2.msra.mxu0 0.0
    %1384 = vmatprep.subr.mxu0 0.0
    %1385 = vmatpush2.msra.mxu0 0.0
    %1386 = vmatprep.mubr.f32.mxu0 0.0
    %1387 = vmatmul.mubr.f32.gmra.mxu0 %v1301
    %v1388 = vpop.f32.mrf.mxu0
    %v1389 = vadd.f32 0.0, %v1388
    %v1390 = vpop.f32.mrf.mxu0
    %v1391 = vadd.f32 0.0, %v1390
    %1392 = vdwg.mxu0
    %1393 = vmatprep.subr.mxu0 0.0
    %1394 = vmatpush1.msra.mxu0 0.0
    %1395 = vmatprep.subr.mxu0 0.0
    %1396 = vmatpush1.msra.mxu0 0.0
    %1397 = vmatprep.subr.mxu0 0.0
    %1398 = vmatpush1.msra.mxu0 0.0
    %1399 = vmatprep.subr.mxu0 0.0
    %1400 = vmatpush1.msra.mxu0 0.0
    %1401 = vmatprep.subr.mxu0 0.0
    %1402 = vmatpush1.msra.mxu0 0.0
    %1403 = vmatprep.subr.mxu0 %v1314
    %1404 = vmatpush1.msra.mxu0 %v1311
    %1405 = vmatprep.subr.mxu0 %v1140
    %1406 = vmatpush1.msra.mxu0 %v1139
    %1407 = vmatprep.subr.mxu0 %v1134
    %1408 = vmatpush1.msra.mxu0 %v1133
    %1409 = vmatprep.subr.mxu0 %v1128
    %1410 = vmatpush1.msra.mxu0 %v1127
    %1411 = vmatprep.subr.mxu0 %v1122
    %1412 = vmatpush1.msra.mxu0 %v1121
    %1413 = vmatprep.subr.mxu0 %v1116
    %1414 = vmatpush1.msra.mxu0 %v1115
    %1415 = vmatprep.subr.mxu0 %v1110
    %1416 = vmatpush1.msra.mxu0 %v1109
    %1417 = vmatprep.subr.mxu0 %v1104
    %1418 = vmatpush1.msra.mxu0 %v1103
    %1419 = vmatprep.subr.mxu0 %v1098
    %1420 = vmatpush1.msra.mxu0 %v1097
    %1421 = vmatprep.subr.mxu0 %v1092
    %1422 = vmatpush1.msra.mxu0 %v1091
    %1423 = vmatprep.subr.mxu0 %v1086
    %1424 = vmatpush1.msra.mxu0 %v1085
    %1425 = vmatprep.subr.mxu0 0.0
    %1426 = vmatpush2.msra.mxu0 0.0
    %1427 = vmatprep.subr.mxu0 0.0
    %1428 = vmatpush2.msra.mxu0 0.0
    %1429 = vmatprep.subr.mxu0 0.0
    %1430 = vmatpush2.msra.mxu0 0.0
    %1431 = vmatprep.subr.mxu0 0.0
    %1432 = vmatpush2.msra.mxu0 0.0
    %1433 = vmatprep.subr.mxu0 0.0
    %1434 = vmatpush2.msra.mxu0 0.0
    %1435 = vmatprep.subr.mxu0 0.0
    %1436 = vmatpush2.msra.mxu0 0.0
    %1437 = vmatprep.subr.mxu0 0.0
    %1438 = vmatpush2.msra.mxu0 0.0
    %1439 = vmatprep.subr.mxu0 0.0
    %1440 = vmatpush2.msra.mxu0 0.0
    %1441 = vmatprep.subr.mxu0 0.0
    %1442 = vmatpush2.msra.mxu0 0.0
    %1443 = vmatprep.subr.mxu0 0.0
    %1444 = vmatpush2.msra.mxu0 0.0
    %1445 = vmatprep.subr.mxu0 0.0
    %1446 = vmatpush2.msra.mxu0 0.0
    %1447 = vmatprep.subr.mxu0 0.0
    %1448 = vmatpush2.msra.mxu0 0.0
    %1449 = vmatprep.subr.mxu0 0.0
    %1450 = vmatpush2.msra.mxu0 0.0
    %1451 = vmatprep.subr.mxu0 0.0
    %1452 = vmatpush2.msra.mxu0 0.0
    %1453 = vmatprep.subr.mxu0 0.0
    %1454 = vmatpush2.msra.mxu0 0.0
    %1455 = vmatprep.subr.mxu0 0.0
    %1456 = vmatpush2.msra.mxu0 0.0
    %1457 = vmatprep.mubr.f32.mxu0 0.0
    %1458 = vmatmul.mubr.f32.gmra.mxu0 %v1301
    %v1459 = vpop.f32.mrf.mxu0
    %v1460 = vadd.f32 0.0, %v1459
    %v1461 = vpop.f32.mrf.mxu0
    %v1462 = vadd.f32 0.0, %v1461
    %1463 = vdwg.mxu0
    %1464 = vmatprep.subr.mxu0 0.0
    %1465 = vmatpush1.msra.mxu0 0.0
    %1466 = vmatprep.subr.mxu0 0.0
    %1467 = vmatpush1.msra.mxu0 0.0
    %1468 = vmatprep.subr.mxu0 0.0
    %1469 = vmatpush1.msra.mxu0 0.0
    %1470 = vmatprep.subr.mxu0 0.0
    %1471 = vmatpush1.msra.mxu0 0.0
    %1472 = vmatprep.subr.mxu0 0.0
    %1473 = vmatpush1.msra.mxu0 0.0
    %1474 = vmatprep.subr.mxu0 %v1320
    %1475 = vmatpush1.msra.mxu0 %v1317
    %1476 = vmatprep.subr.mxu0 %v1142
    %1477 = vmatpush1.msra.mxu0 %v1141
    %1478 = vmatprep.subr.mxu0 %v1136
    %1479 = vmatpush1.msra.mxu0 %v1135
    %1480 = vmatprep.subr.mxu0 %v1130
    %1481 = vmatpush1.msra.mxu0 %v1129
    %1482 = vmatprep.subr.mxu0 %v1124
    %1483 = vmatpush1.msra.mxu0 %v1123
    %1484 = vmatprep.subr.mxu0 %v1118
    %1485 = vmatpush1.msra.mxu0 %v1117
    %1486 = vmatprep.subr.mxu0 %v1112
    %1487 = vmatpush1.msra.mxu0 %v1111
    %1488 = vmatprep.subr.mxu0 %v1106
    %1489 = vmatpush1.msra.mxu0 %v1105
    %1490 = vmatprep.subr.mxu0 %v1100
    %1491 = vmatpush1.msra.mxu0 %v1099
    %1492 = vmatprep.subr.mxu0 %v1094
    %1493 = vmatpush1.msra.mxu0 %v1093
    %1494 = vmatprep.subr.mxu0 %v1088
    %1495 = vmatpush1.msra.mxu0 %v1087
    %1496 = vmatprep.subr.mxu0 0.0
    %1497 = vmatpush2.msra.mxu0 0.0
    %1498 = vmatprep.subr.mxu0 0.0
    %1499 = vmatpush2.msra.mxu0 0.0
    %1500 = vmatprep.subr.mxu0 0.0
    %1501 = vmatpush2.msra.mxu0 0.0
    %1502 = vmatprep.subr.mxu0 0.0
    %1503 = vmatpush2.msra.mxu0 0.0
    %1504 = vmatprep.subr.mxu0 0.0
    %1505 = vmatpush2.msra.mxu0 0.0
    %1506 = vmatprep.subr.mxu0 0.0
    %1507 = vmatpush2.msra.mxu0 0.0
    %1508 = vmatprep.subr.mxu0 0.0
    %1509 = vmatpush2.msra.mxu0 0.0
    %1510 = vmatprep.subr.mxu0 0.0
    %1511 = vmatpush2.msra.mxu0 0.0
    %1512 = vmatprep.subr.mxu0 0.0
    %1513 = vmatpush2.msra.mxu0 0.0
    %1514 = vmatprep.subr.mxu0 0.0
    %1515 = vmatpush2.msra.mxu0 0.0
    %1516 = vmatprep.subr.mxu0 0.0
    %1517 = vmatpush2.msra.mxu0 0.0
    %1518 = vmatprep.subr.mxu0 0.0
    %1519 = vmatpush2.msra.mxu0 0.0
    %1520 = vmatprep.subr.mxu0 0.0
    %1521 = vmatpush2.msra.mxu0 0.0
    %1522 = vmatprep.subr.mxu0 0.0
    %1523 = vmatpush2.msra.mxu0 0.0
    %1524 = vmatprep.subr.mxu0 0.0
    %1525 = vmatpush2.msra.mxu0 0.0
    %1526 = vmatprep.subr.mxu0 0.0
    %1527 = vmatpush2.msra.mxu0 0.0
    %1528 = vmatprep.mubr.f32.mxu0 0.0
    %1529 = vmatmul.mubr.f32.gmra.mxu0 %v1301
    %v1530 = vpop.f32.mrf.mxu0
    %v1531 = vadd.f32 0.0, %v1530
    %v1532 = vpop.f32.mrf.mxu0
    %v1533 = vadd.f32 0.0, %v1532
    %1534 = vdwg.mxu0
    %v1536 = vsel %vm786, %v1293, 0
    %v1539 = vsel %vm786, %v1294, 0
    %v1542 = vsel %vm786, %v1295, 0
    %v1545 = vsel %vm786, %v1296, 0
    %v1548 = vsel %vm786, %v1297, 0
    %v1551 = vsel %vm786, %v1298, 0
    %1553 = vmatprep.subr.mxu0 0.0
    %1554 = vmatpush1.msra.mxu0 0.0
    %1555 = vmatprep.subr.mxu0 0.0
    %1556 = vmatpush1.msra.mxu0 0.0
    %1557 = vmatprep.subr.mxu0 0.0
    %1558 = vmatpush1.msra.mxu0 0.0
    %1559 = vmatprep.subr.mxu0 0.0
    %1560 = vmatpush1.msra.mxu0 0.0
    %1561 = vmatprep.subr.mxu0 0.0
    %1562 = vmatpush1.msra.mxu0 0.0
    %1563 = vmatprep.subr.mxu0 0.0
    %1564 = vmatpush1.msra.mxu0 0.0
    %1565 = vmatprep.subr.mxu0 0.0
    %1566 = vmatpush1.msra.mxu0 0.0
    %1567 = vmatprep.subr.mxu0 0.0
    %1568 = vmatpush1.msra.mxu0 0.0
    %1569 = vmatprep.subr.mxu0 0.0
    %1570 = vmatpush1.msra.mxu0 0.0
    %1571 = vmatprep.subr.mxu0 0.0
    %1572 = vmatpush1.msra.mxu0 0.0
    %1573 = vmatprep.subr.mxu0 0.0
    %1574 = vmatpush1.msra.mxu0 0.0
    %1575 = vmatprep.subr.mxu0 %v1539
    %1576 = vmatpush1.msra.mxu0 %v1536
    %1577 = vmatprep.subr.mxu0 %v1288
    %1578 = vmatpush1.msra.mxu0 %v1287
    %1579 = vmatprep.subr.mxu0 %v1282
    %1580 = vmatpush1.msra.mxu0 %v1281
    %1581 = vmatprep.subr.mxu0 %v1276
    %1582 = vmatpush1.msra.mxu0 %v1275
    %1583 = vmatprep.subr.mxu0 %v1270
    %1584 = vmatpush1.msra.mxu0 %v1269
    %1585 = vmatprep.subr.mxu0 0.0
    %1586 = vmatpush2.msra.mxu0 0.0
    %1587 = vmatprep.subr.mxu0 0.0
    %1588 = vmatpush2.msra.mxu0 0.0
    %1589 = vmatprep.subr.mxu0 0.0
    %1590 = vmatpush2.msra.mxu0 0.0
    %1591 = vmatprep.subr.mxu0 0.0
    %1592 = vmatpush2.msra.mxu0 0.0
    %1593 = vmatprep.subr.mxu0 0.0
    %1594 = vmatpush2.msra.mxu0 0.0
    %1595 = vmatprep.subr.mxu0 0.0
    %1596 = vmatpush2.msra.mxu0 0.0
    %1597 = vmatprep.subr.mxu0 0.0
    %1598 = vmatpush2.msra.mxu0 0.0
    %1599 = vmatprep.subr.mxu0 0.0
    %1600 = vmatpush2.msra.mxu0 0.0
    %1601 = vmatprep.subr.mxu0 0.0
    %1602 = vmatpush2.msra.mxu0 0.0
    %1603 = vmatprep.subr.mxu0 0.0
    %1604 = vmatpush2.msra.mxu0 0.0
    %1605 = vmatprep.subr.mxu0 0.0
    %1606 = vmatpush2.msra.mxu0 0.0
    %1607 = vmatprep.subr.mxu0 0.0
    %1608 = vmatpush2.msra.mxu0 0.0
    %1609 = vmatprep.subr.mxu0 0.0
    %1610 = vmatpush2.msra.mxu0 0.0
    %1611 = vmatprep.subr.mxu0 0.0
    %1612 = vmatpush2.msra.mxu0 0.0
    %1613 = vmatprep.subr.mxu0 0.0
    %1614 = vmatpush2.msra.mxu0 0.0
    %1615 = vmatprep.subr.mxu0 0.0
    %1616 = vmatpush2.msra.mxu0 0.0
    %1617 = vmatprep.mubr.f32.mxu0 0.0
    %1618 = vmatmul.mubr.f32.gmra.mxu0 %v784
    %v1619 = vpop.f32.mrf.mxu0
    %v1620 = vadd.f32 0.0, %v1619
    %v1621 = vpop.f32.mrf.mxu0
    %v1622 = vadd.f32 0.0, %v1621
    %1623 = vdwg.mxu0
    %1624 = vmatprep.subr.mxu0 0.0
    %1625 = vmatpush1.msra.mxu0 0.0
    %1626 = vmatprep.subr.mxu0 0.0
    %1627 = vmatpush1.msra.mxu0 0.0
    %1628 = vmatprep.subr.mxu0 0.0
    %1629 = vmatpush1.msra.mxu0 0.0
    %1630 = vmatprep.subr.mxu0 0.0
    %1631 = vmatpush1.msra.mxu0 0.0
    %1632 = vmatprep.subr.mxu0 0.0
    %1633 = vmatpush1.msra.mxu0 0.0
    %1634 = vmatprep.subr.mxu0 0.0
    %1635 = vmatpush1.msra.mxu0 0.0
    %1636 = vmatprep.subr.mxu0 0.0
    %1637 = vmatpush1.msra.mxu0 0.0
    %1638 = vmatprep.subr.mxu0 0.0
    %1639 = vmatpush1.msra.mxu0 0.0
    %1640 = vmatprep.subr.mxu0 0.0
    %1641 = vmatpush1.msra.mxu0 0.0
    %1642 = vmatprep.subr.mxu0 0.0
    %1643 = vmatpush1.msra.mxu0 0.0
    %1644 = vmatprep.subr.mxu0 0.0
    %1645 = vmatpush1.msra.mxu0 0.0
    %1646 = vmatprep.subr.mxu0 %v1545
    %1647 = vmatpush1.msra.mxu0 %v1542
    %1648 = vmatprep.subr.mxu0 %v1290
    %1649 = vmatpush1.msra.mxu0 %v1289
    %1650 = vmatprep.subr.mxu0 %v1284
    %1651 = vmatpush1.msra.mxu0 %v1283
    %1652 = vmatprep.subr.mxu0 %v1278
    %1653 = vmatpush1.msra.mxu0 %v1277
    %1654 = vmatprep.subr.mxu0 %v1272
    %1655 = vmatpush1.msra.mxu0 %v1271
    %1656 = vmatprep.subr.mxu0 0.0
    %1657 = vmatpush2.msra.mxu0 0.0
    %1658 = vmatprep.subr.mxu0 0.0
    %1659 = vmatpush2.msra.mxu0 0.0
    %1660 = vmatprep.subr.mxu0 0.0
    %1661 = vmatpush2.msra.mxu0 0.0
    %1662 = vmatprep.subr.mxu0 0.0
    %1663 = vmatpush2.msra.mxu0 0.0
    %1664 = vmatprep.subr.mxu0 0.0
    %1665 = vmatpush2.msra.mxu0 0.0
    %1666 = vmatprep.subr.mxu0 0.0
    %1667 = vmatpush2.msra.mxu0 0.0
    %1668 = vmatprep.subr.mxu0 0.0
    %1669 = vmatpush2.msra.mxu0 0.0
    %1670 = vmatprep.subr.mxu0 0.0
    %1671 = vmatpush2.msra.mxu0 0.0
    %1672 = vmatprep.subr.mxu0 0.0
    %1673 = vmatpush2.msra.mxu0 0.0
    %1674 = vmatprep.subr.mxu0 0.0
    %1675 = vmatpush2.msra.mxu0 0.0
    %1676 = vmatprep.subr.mxu0 0.0
    %1677 = vmatpush2.msra.mxu0 0.0
    %1678 = vmatprep.subr.mxu0 0.0
    %1679 = vmatpush2.msra.mxu0 0.0
    %1680 = vmatprep.subr.mxu0 0.0
    %1681 = vmatpush2.msra.mxu0 0.0
    %1682 = vmatprep.subr.mxu0 0.0
    %1683 = vmatpush2.msra.mxu0 0.0
    %1684 = vmatprep.subr.mxu0 0.0
    %1685 = vmatpush2.msra.mxu0 0.0
    %1686 = vmatprep.subr.mxu0 0.0
    %1687 = vmatpush2.msra.mxu0 0.0
    %1688 = vmatprep.mubr.f32.mxu0 0.0
    %1689 = vmatmul.mubr.f32.gmra.mxu0 %v784
    %v1690 = vpop.f32.mrf.mxu0
    %v1691 = vadd.f32 0.0, %v1690
    %v1692 = vpop.f32.mrf.mxu0
    %v1693 = vadd.f32 0.0, %v1692
    %1694 = vdwg.mxu0
    %1695 = vmatprep.subr.mxu0 0.0
    %1696 = vmatpush1.msra.mxu0 0.0
    %1697 = vmatprep.subr.mxu0 0.0
    %1698 = vmatpush1.msra.mxu0 0.0
    %1699 = vmatprep.subr.mxu0 0.0
    %1700 = vmatpush1.msra.mxu0 0.0
    %1701 = vmatprep.subr.mxu0 0.0
    %1702 = vmatpush1.msra.mxu0 0.0
    %1703 = vmatprep.subr.mxu0 0.0
    %1704 = vmatpush1.msra.mxu0 0.0
    %1705 = vmatprep.subr.mxu0 0.0
    %1706 = vmatpush1.msra.mxu0 0.0
    %1707 = vmatprep.subr.mxu0 0.0
    %1708 = vmatpush1.msra.mxu0 0.0
    %1709 = vmatprep.subr.mxu0 0.0
    %1710 = vmatpush1.msra.mxu0 0.0
    %1711 = vmatprep.subr.mxu0 0.0
    %1712 = vmatpush1.msra.mxu0 0.0
    %1713 = vmatprep.subr.mxu0 0.0
    %1714 = vmatpush1.msra.mxu0 0.0
    %1715 = vmatprep.subr.mxu0 0.0
    %1716 = vmatpush1.msra.mxu0 0.0
    %1717 = vmatprep.subr.mxu0 %v1551
    %1718 = vmatpush1.msra.mxu0 %v1548
    %1719 = vmatprep.subr.mxu0 %v1292
    %1720 = vmatpush1.msra.mxu0 %v1291
    %1721 = vmatprep.subr.mxu0 %v1286
    %1722 = vmatpush1.msra.mxu0 %v1285
    %1723 = vmatprep.subr.mxu0 %v1280
    %1724 = vmatpush1.msra.mxu0 %v1279
    %1725 = vmatprep.subr.mxu0 %v1274
    %1726 = vmatpush1.msra.mxu0 %v1273
    %1727 = vmatprep.subr.mxu0 0.0
    %1728 = vmatpush2.msra.mxu0 0.0
    %1729 = vmatprep.subr.mxu0 0.0
    %1730 = vmatpush2.msra.mxu0 0.0
    %1731 = vmatprep.subr.mxu0 0.0
    %1732 = vmatpush2.msra.mxu0 0.0
    %1733 = vmatprep.subr.mxu0 0.0
    %1734 = vmatpush2.msra.mxu0 0.0
    %1735 = vmatprep.subr.mxu0 0.0
    %1736 = vmatpush2.msra.mxu0 0.0
    %1737 = vmatprep.subr.mxu0 0.0
    %1738 = vmatpush2.msra.mxu0 0.0
    %1739 = vmatprep.subr.mxu0 0.0
    %1740 = vmatpush2.msra.mxu0 0.0
    %1741 = vmatprep.subr.mxu0 0.0
    %1742 = vmatpush2.msra.mxu0 0.0
    %1743 = vmatprep.subr.mxu0 0.0
    %1744 = vmatpush2.msra.mxu0 0.0
    %1745 = vmatprep.subr.mxu0 0.0
    %1746 = vmatpush2.msra.mxu0 0.0
    %1747 = vmatprep.subr.mxu0 0.0
    %1748 = vmatpush2.msra.mxu0 0.0
    %1749 = vmatprep.subr.mxu0 0.0
    %1750 = vmatpush2.msra.mxu0 0.0
    %1751 = vmatprep.subr.mxu0 0.0
    %1752 = vmatpush2.msra.mxu0 0.0
    %1753 = vmatprep.subr.mxu0 0.0
    %1754 = vmatpush2.msra.mxu0 0.0
    %1755 = vmatprep.subr.mxu0 0.0
    %1756 = vmatpush2.msra.mxu0 0.0
    %1757 = vmatprep.subr.mxu0 0.0
    %1758 = vmatpush2.msra.mxu0 0.0
    %1759 = vmatprep.mubr.f32.mxu0 0.0
    %1760 = vmatmul.mubr.f32.gmra.mxu0 %v784
    %v1761 = vpop.f32.mrf.mxu0
    %v1762 = vadd.f32 0.0, %v1761
    %v1763 = vpop.f32.mrf.mxu0
    %v1764 = vadd.f32 0.0, %v1763
    %1765 = vdwg.mxu0
    %v1766 = vmul.f32 %v1389, %v1620
    %v1767 = vmul.f32 %v1391, %v1622
    %v1768 = vmul.f32 %v1460, %v1691
    %v1769 = vmul.f32 %v1462, %v1693
    %v1770 = vmul.f32 %v1531, %v1762
    %v1771 = vmul.f32 %v1533, %v1764
    %v1772 = vpack.c.bf16 %v1766, %v1766
    %v1773 = vpack.c.bf16 %v1767, %v1767
    %v1774 = vpack.c.bf16 %v1768, %v1768
    %v1775 = vpack.c.bf16 %v1769, %v1769
    %v1776 = vpack.c.bf16 %v1770, %v1770
    %v1777 = vpack.c.bf16 %v1771, %v1771
    %v1778 = vld [vmem:[%s3] sm:$0xff]
    %v1779 = vld [vmem:[%s3 + $0x8] sm:$0xf]
    %v1780 = vld [vmem:[%s3 + $0xc] sm:$0xff]
    %v1781 = vld [vmem:[%s3 + $0x14] sm:$0xf]
    %v1782 = vld [vmem:[%s3 + $0x18] sm:$0xff]
    %v1783 = vld [vmem:[%s3 + $0x20] sm:$0xf]
    %v1784 = vld [vmem:[%s3 + $0x24] sm:$0xff]
    %v1785 = vld [vmem:[%s3 + $0x2c] sm:$0xf]
    %v1786 = vld [vmem:[%s3 + $0x30] sm:$0xff]
    %v1787 = vld [vmem:[%s3 + $0x38] sm:$0xf]
    %v1788 = vld [vmem:[%s3 + $0x3c] sm:$0xff]
    %v1789 = vld [vmem:[%s3 + $0x44] sm:$0xf]
    %v1790 = vld [vmem:[%s3 + $0x48] sm:$0xff]
    %v1791 = vld [vmem:[%s3 + $0x50] sm:$0xf]
    %v1792 = vld [vmem:[%s3 + $0x54] sm:$0xff]
    %v1793 = vld [vmem:[%s3 + $0x5c] sm:$0xf]
    %v1794 = vld [vmem:[%s3 + $0x60] sm:$0xff]
    %v1795 = vld [vmem:[%s3 + $0x68] sm:$0xf]
    %v1796 = vld [vmem:[%s3 + $0x6c] sm:$0xff]
    %v1797 = vld [vmem:[%s3 + $0x74] sm:$0xf]
    %v1798 = vld [vmem:[%s3 + $0x78] sm:$0xff]
    %v1799 = vld [vmem:[%s3 + $0x80] sm:$0xf]
    %v1800 = vld [vmem:[%s3 + $0x84] sm:$0xff]
    %v1801 = vld [vmem:[%s3 + $0x8c] sm:$0xf]
    %v1802 = vld [vmem:[%s3 + $0x90] sm:$0xff]
    %v1803 = vld [vmem:[%s3 + $0x98] sm:$0xf]
    %v1804 = vld [vmem:[%s3 + $0x9c] sm:$0xff]
    %v1805 = vld [vmem:[%s3 + $0xa4] sm:$0xf]
    %v1806 = vld [vmem:[%s3 + $0xa8] sm:$0xff]
    %v1807 = vld [vmem:[%s3 + $0xb0] sm:$0xf]
    %v1808 = vld [vmem:[%s3 + $0xb4] sm:$0xff]
    %v1809 = vld [vmem:[%s3 + $0xbc] sm:$0xf]
    %v1810 = vld [vmem:[%s3 + $0xc0] sm:$0xff]
    %v1811 = vld [vmem:[%s3 + $0xc8] sm:$0xf]
    %v1812 = vld [vmem:[%s3 + $0xcc] sm:$0xff]
    %v1813 = vld [vmem:[%s3 + $0xd4] sm:$0xf]
    %v1814 = vld [vmem:[%s3 + $0xd8] sm:$0xff]
    %v1815 = vld [vmem:[%s3 + $0xe0] sm:$0xf]
    %v1816 = vld [vmem:[%s3 + $0xe4] sm:$0xff]
    %v1817 = vld [vmem:[%s3 + $0xec] sm:$0xf]
    %v1818 = vld [vmem:[%s3 + $0xf0] sm:$0xff]
    %v1819 = vld [vmem:[%s3 + $0xf8] sm:$0xf]
    %v1820 = vld [vmem:[%s3 + $0xfc] sm:$0xff]
    %v1821 = vld [vmem:[%s3 + $0x104] sm:$0xf]
    %v1822 = vld [vmem:[%s3 + $0x108] sm:$0xff]
    %v1823 = vld [vmem:[%s3 + $0x110] sm:$0xf]
    %v1824 = vld [vmem:[%s3 + $0x114] sm:$0xff]
    %v1825 = vld [vmem:[%s3 + $0x11c] sm:$0xf]
    %v1826 = vld [vmem:[%s3 + $0x120] sm:$0xff]
    %v1827 = vld [vmem:[%s3 + $0x128] sm:$0xf]
    %v1828 = vld [vmem:[%s3 + $0x12c] sm:$0xff]
    %v1829 = vld [vmem:[%s3 + $0x134] sm:$0xf]
    %v1830 = vld [vmem:[%s3 + $0x138] sm:$0xff]
    %v1831 = vld [vmem:[%s3 + $0x140] sm:$0xf]
    %v1832 = vld [vmem:[%s3 + $0x144] sm:$0xff]
    %v1833 = vld [vmem:[%s3 + $0x14c] sm:$0xf]
    %v1834 = vld [vmem:[%s3 + $0x150] sm:$0xff]
    %v1835 = vld [vmem:[%s3 + $0x158] sm:$0xf]
    %v1836 = vld [vmem:[%s3 + $0x15c] sm:$0xff]
    %v1837 = vld [vmem:[%s3 + $0x164] sm:$0xf]
    %v1838 = vld [vmem:[%s3 + $0x168] sm:$0xff]
    %v1839 = vld [vmem:[%s3 + $0x170] sm:$0xf]
    %v1840 = vld [vmem:[%s3 + $0x174] sm:$0xff]
    %v1841 = vld [vmem:[%s3 + $0x17c] sm:$0xf]
    %v1842 = vld [vmem:[%s3 + $0x180] sm:$0xff]
    %v1843 = vld [vmem:[%s3 + $0x188] sm:$0xf]
    %v1844 = vld [vmem:[%s3 + $0x18c] sm:$0xff]
    %v1845 = vld [vmem:[%s3 + $0x194] sm:$0xf]
    %v1846 = vld [vmem:[%s3 + $0x198] sm:$0xff]
    %v1847 = vld [vmem:[%s3 + $0x1a0] sm:$0xf]
    %v1848 = vld [vmem:[%s3 + $0x1a4] sm:$0xff]
    %v1849 = vld [vmem:[%s3 + $0x1ac] sm:$0xf]
    %v1850 = vld [vmem:[%s3 + $0x1b0] sm:$0xff]
    %v1851 = vld [vmem:[%s3 + $0x1b8] sm:$0xf]
    %v1852 = vld [vmem:[%s3 + $0x1bc] sm:$0xff]
    %v1853 = vld [vmem:[%s3 + $0x1c4] sm:$0xf]
    %v1854 = vld [vmem:[%s3 + $0x1c8] sm:$0xff]
    %v1855 = vld [vmem:[%s3 + $0x1d0] sm:$0xf]
    %v1856 = vld [vmem:[%s3 + $0x1d4] sm:$0xff]
    %v1857 = vld [vmem:[%s3 + $0x1dc] sm:$0xf]
    %v1858 = vld [vmem:[%s3 + $0x1e0] sm:$0xff]
    %v1859 = vld [vmem:[%s3 + $0x1e8] sm:$0xf]
    %v1860 = vld [vmem:[%s3 + $0x1ec] sm:$0xff]
    %v1861 = vld [vmem:[%s3 + $0x1f4] sm:$0xf]
    %v1862 = vld [vmem:[%s3 + $0x1f8] sm:$0xff]
    %v1863 = vld [vmem:[%s3 + $0x200] sm:$0xf]
    %v1864 = vld [vmem:[%s3 + $0x204] sm:$0xff]
    %v1865 = vld [vmem:[%s3 + $0x20c] sm:$0xf]
    %v1866 = vld [vmem:[%s3 + $0x210] sm:$0xff]
    %v1867 = vld [vmem:[%s3 + $0x218] sm:$0xf]
    %v1868 = vld [vmem:[%s3 + $0x21c] sm:$0xff]
    %v1869 = vld [vmem:[%s3 + $0x224] sm:$0xf]
    %v1870 = vld [vmem:[%s3 + $0x228] sm:$0xff]
    %v1871 = vld [vmem:[%s3 + $0x230] sm:$0xf]
    %v1872 = vld [vmem:[%s3 + $0x234] sm:$0xff]
    %v1873 = vld [vmem:[%s3 + $0x23c] sm:$0xf]
    %v1874 = vld [vmem:[%s3 + $0x240] sm:$0xff]
    %v1875 = vld [vmem:[%s3 + $0x248] sm:$0xf]
    %v1876 = vld [vmem:[%s3 + $0x24c] sm:$0xff]
    %v1877 = vld [vmem:[%s3 + $0x254] sm:$0xf]
    %v1878 = vld [vmem:[%s3 + $0x258] sm:$0xff]
    %v1879 = vld [vmem:[%s3 + $0x260] sm:$0xf]
    %v1880 = vld [vmem:[%s3 + $0x264] sm:$0xff]
    %v1881 = vld [vmem:[%s3 + $0x26c] sm:$0xf]
    %v1882 = vld [vmem:[%s3 + $0x270] sm:$0xff]
    %v1883 = vld [vmem:[%s3 + $0x278] sm:$0xf]
    %v1884 = vld [vmem:[%s3 + $0x27c] sm:$0xff]
    %v1885 = vld [vmem:[%s3 + $0x284] sm:$0xf]
    %v1886 = vld [vmem:[%s3 + $0x288] sm:$0xff]
    %v1887 = vld [vmem:[%s3 + $0x290] sm:$0xf]
    %v1888 = vld [vmem:[%s3 + $0x294] sm:$0xff]
    %v1889 = vld [vmem:[%s3 + $0x29c] sm:$0xf]
    %v1890 = vld [vmem:[%s3 + $0x2a0] sm:$0xff]
    %v1891 = vld [vmem:[%s3 + $0x2a8] sm:$0xf]
    %v1892 = vld [vmem:[%s3 + $0x2ac] sm:$0xff]
    %v1893 = vld [vmem:[%s3 + $0x2b4] sm:$0xf]
    %v1894 = vld [vmem:[%s3 + $0x2b8] sm:$0xff]
    %v1895 = vld [vmem:[%s3 + $0x2c0] sm:$0xf]
    %v1896 = vld [vmem:[%s3 + $0x2c4] sm:$0xff]
    %v1897 = vld [vmem:[%s3 + $0x2cc] sm:$0xf]
    %v1898 = vld [vmem:[%s3 + $0x2d0] sm:$0xff]
    %v1899 = vld [vmem:[%s3 + $0x2d8] sm:$0xf]
    %v1900 = vld [vmem:[%s3 + $0x2dc] sm:$0xff]
    %v1901 = vld [vmem:[%s3 + $0x2e4] sm:$0xf]
    %v1902 = vld [vmem:[%s3 + $0x2e8] sm:$0xff]
    %v1903 = vld [vmem:[%s3 + $0x2f0] sm:$0xf]
    %v1904 = vld [vmem:[%s3 + $0x2f4] sm:$0xff]
    %v1905 = vld [vmem:[%s3 + $0x2fc] sm:$0xf]
    %v1906 = vld [vmem:[%s3 + $0x300] sm:$0xff]
    %v1907 = vld [vmem:[%s3 + $0x308] sm:$0xf]
    %v1908 = vld [vmem:[%s3 + $0x30c] sm:$0xff]
    %v1909 = vld [vmem:[%s3 + $0x314] sm:$0xf]
    %v1910 = vld [vmem:[%s3 + $0x318] sm:$0xff]
    %v1911 = vld [vmem:[%s3 + $0x320] sm:$0xf]
    %v1912 = vld [vmem:[%s3 + $0x324] sm:$0xff]
    %v1913 = vld [vmem:[%s3 + $0x32c] sm:$0xf]
    %v1914 = vld [vmem:[%s3 + $0x330] sm:$0xff]
    %v1915 = vld [vmem:[%s3 + $0x338] sm:$0xf]
    %v1916 = vld [vmem:[%s3 + $0x33c] sm:$0xff]
    %v1917 = vld [vmem:[%s3 + $0x344] sm:$0xf]
    %v1918 = vld [vmem:[%s3 + $0x348] sm:$0xff]
    %v1919 = vld [vmem:[%s3 + $0x350] sm:$0xf]
    %v1920 = vld [vmem:[%s3 + $0x354] sm:$0xff]
    %v1921 = vld [vmem:[%s3 + $0x35c] sm:$0xf]
    %v1922 = vld [vmem:[%s3 + $0x360] sm:$0xff]
    %v1923 = vld [vmem:[%s3 + $0x368] sm:$0xf]
    %v1924 = vld [vmem:[%s3 + $0x36c] sm:$0xff]
    %v1925 = vld [vmem:[%s3 + $0x374] sm:$0xf]
    %v1926 = vld [vmem:[%s3 + $0x378] sm:$0xff]
    %v1927 = vld [vmem:[%s3 + $0x380] sm:$0xf]
    %v1928 = vld [vmem:[%s3 + $0x384] sm:$0xff]
    %v1929 = vld [vmem:[%s3 + $0x38c] sm:$0xf]
    %v1930 = vld [vmem:[%s3 + $0x390] sm:$0xff]
    %v1931 = vld [vmem:[%s3 + $0x398] sm:$0xf]
    %v1932 = vld [vmem:[%s3 + $0x39c] sm:$0xff]
    %v1933 = vld [vmem:[%s3 + $0x3a4] sm:$0xf]
    %v1934 = vld [vmem:[%s3 + $0x3a8] sm:$0xff]
    %v1935 = vld [vmem:[%s3 + $0x3b0] sm:$0xf]
    %v1936 = vld [vmem:[%s3 + $0x3b4] sm:$0xff]
    %v1937 = vld [vmem:[%s3 + $0x3bc] sm:$0xf]
    %v1938 = vld [vmem:[%s3 + $0x3c0] sm:$0xff]
    %v1939 = vld [vmem:[%s3 + $0x3c8] sm:$0xf]
    %v1940 = vld [vmem:[%s3 + $0x3cc] sm:$0xff]
    %v1941 = vld [vmem:[%s3 + $0x3d4] sm:$0xf]
    %v1942 = vld [vmem:[%s3 + $0x3d8] sm:$0xff]
    %v1943 = vld [vmem:[%s3 + $0x3e0] sm:$0xf]
    %v1944 = vld [vmem:[%s3 + $0x3e4] sm:$0xff]
    %v1945 = vld [vmem:[%s3 + $0x3ec] sm:$0xf]
    %v1946 = vld [vmem:[%s3 + $0x3f0] sm:$0xff]
    %v1947 = vld [vmem:[%s3 + $0x3f8] sm:$0xf]
    %v1948 = vld [vmem:[%s3 + $0x3fc] sm:$0xff]
    %v1949 = vld [vmem:[%s3 + $0x404] sm:$0xf]
    %v1950 = vld [vmem:[%s3 + $0x408] sm:$0xff]
    %v1951 = vld [vmem:[%s3 + $0x410] sm:$0xf]
    %v1952 = vld [vmem:[%s3 + $0x414] sm:$0xff]
    %v1953 = vld [vmem:[%s3 + $0x41c] sm:$0xf]
    %v1954 = vld [vmem:[%s3 + $0x420] sm:$0xff]
    %v1955 = vld [vmem:[%s3 + $0x428] sm:$0xf]
    %v1956 = vld [vmem:[%s3 + $0x42c] sm:$0xff]
    %v1957 = vld [vmem:[%s3 + $0x434] sm:$0xf]
    %v1958 = vld [vmem:[%s3 + $0x438] sm:$0xff]
    %v1959 = vld [vmem:[%s3 + $0x440] sm:$0xf]
    %v1960 = vld [vmem:[%s3 + $0x444] sm:$0x11]
    %v1961 = vld [vmem:[%s3 + $0x44c] sm:$0x1]
    %v2146 = vunpack.c.l.b16 %v1778
    %v2147 = vunpack.c.h.b16 %v1778
    %v2148 = vunpack.c.l.b16 %v1779
    %v2149 = vunpack.c.l.b16 %v1780
    %v2150 = vunpack.c.h.b16 %v1780
    %v2151 = vunpack.c.l.b16 %v1781
    %v2152 = vunpack.c.l.b16 %v1782
    %v2153 = vunpack.c.h.b16 %v1782
    %v2154 = vunpack.c.l.b16 %v1783
    %v2155 = vunpack.c.l.b16 %v1784
    %v2156 = vunpack.c.h.b16 %v1784
    %v2157 = vunpack.c.l.b16 %v1785
    %v2158 = vunpack.c.l.b16 %v1786
    %v2159 = vunpack.c.h.b16 %v1786
    %v2160 = vunpack.c.l.b16 %v1787
    %v2161 = vunpack.c.l.b16 %v1788
    %v2162 = vunpack.c.h.b16 %v1788
    %v2163 = vunpack.c.l.b16 %v1789
    %v2164 = vunpack.c.l.b16 %v1790
    %v2165 = vunpack.c.h.b16 %v1790
    %v2166 = vunpack.c.l.b16 %v1791
    %v2167 = vunpack.c.l.b16 %v1792
    %v2168 = vunpack.c.h.b16 %v1792
    %v2169 = vunpack.c.l.b16 %v1793
    %v2170 = vunpack.c.l.b16 %v1794
    %v2171 = vunpack.c.h.b16 %v1794
    %v2172 = vunpack.c.l.b16 %v1795
    %v2173 = vunpack.c.l.b16 %v1796
    %v2174 = vunpack.c.h.b16 %v1796
    %v2175 = vunpack.c.l.b16 %v1797
    %v2176 = vunpack.c.l.b16 %v1798
    %v2177 = vunpack.c.h.b16 %v1798
    %v2178 = vunpack.c.l.b16 %v1799
    %v2179 = vunpack.c.l.b16 %v1800
    %v2180 = vunpack.c.h.b16 %v1800
    %v2181 = vunpack.c.l.b16 %v1801
    %v2182 = vunpack.c.l.b16 %v1802
    %v2183 = vunpack.c.h.b16 %v1802
    %v2184 = vunpack.c.l.b16 %v1803
    %v2185 = vunpack.c.l.b16 %v1804
    %v2186 = vunpack.c.h.b16 %v1804
    %v2187 = vunpack.c.l.b16 %v1805
    %v2188 = vunpack.c.l.b16 %v1806
    %v2189 = vunpack.c.h.b16 %v1806
    %v2190 = vunpack.c.l.b16 %v1807
    %v2191 = vunpack.c.l.b16 %v1808
    %v2192 = vunpack.c.h.b16 %v1808
    %v2193 = vunpack.c.l.b16 %v1809
    %v2194 = vunpack.c.l.b16 %v1810
    %v2195 = vunpack.c.h.b16 %v1810
    %v2196 = vunpack.c.l.b16 %v1811
    %v2197 = vunpack.c.l.b16 %v1812
    %v2198 = vunpack.c.h.b16 %v1812
    %v2199 = vunpack.c.l.b16 %v1813
    %v2200 = vunpack.c.l.b16 %v1814
    %v2201 = vunpack.c.h.b16 %v1814
    %v2202 = vunpack.c.l.b16 %v1815
    %v2203 = vunpack.c.l.b16 %v1816
    %v2204 = vunpack.c.h.b16 %v1816
    %v2205 = vunpack.c.l.b16 %v1817
    %v2206 = vunpack.c.l.b16 %v1818
    %v2207 = vunpack.c.h.b16 %v1818
    %v2208 = vunpack.c.l.b16 %v1819
    %v2209 = vunpack.c.l.b16 %v1820
    %v2210 = vunpack.c.h.b16 %v1820
    %v2211 = vunpack.c.l.b16 %v1821
    %v2212 = vunpack.c.l.b16 %v1822
    %v2213 = vunpack.c.h.b16 %v1822
    %v2214 = vunpack.c.l.b16 %v1823
    %v2215 = vunpack.c.l.b16 %v1824
    %v2216 = vunpack.c.h.b16 %v1824
    %v2217 = vunpack.c.l.b16 %v1825
    %v2218 = vunpack.c.l.b16 %v1826
    %v2219 = vunpack.c.h.b16 %v1826
    %v2220 = vunpack.c.l.b16 %v1827
    %v2221 = vunpack.c.l.b16 %v1828
    %v2222 = vunpack.c.h.b16 %v1828
    %v2223 = vunpack.c.l.b16 %v1829
    %v2224 = vunpack.c.l.b16 %v1830
    %v2225 = vunpack.c.h.b16 %v1830
    %v2226 = vunpack.c.l.b16 %v1831
    %v2227 = vunpack.c.l.b16 %v1832
    %v2228 = vunpack.c.h.b16 %v1832
    %v2229 = vunpack.c.l.b16 %v1833
    %v2230 = vunpack.c.l.b16 %v1834
    %v2231 = vunpack.c.h.b16 %v1834
    %v2232 = vunpack.c.l.b16 %v1835
    %v2233 = vunpack.c.l.b16 %v1836
    %v2234 = vunpack.c.h.b16 %v1836
    %v2235 = vunpack.c.l.b16 %v1837
    %v2236 = vunpack.c.l.b16 %v1838
    %v2237 = vunpack.c.h.b16 %v1838
    %v2238 = vunpack.c.l.b16 %v1839
    %v2239 = vunpack.c.l.b16 %v1840
    %v2240 = vunpack.c.h.b16 %v1840
    %v2241 = vunpack.c.l.b16 %v1841
    %v2242 = vunpack.c.l.b16 %v1842
    %v2243 = vunpack.c.h.b16 %v1842
    %v2244 = vunpack.c.l.b16 %v1843
    %v2245 = vunpack.c.l.b16 %v1844
    %v2246 = vunpack.c.h.b16 %v1844
    %v2247 = vunpack.c.l.b16 %v1845
    %v2248 = vunpack.c.l.b16 %v1846
    %v2249 = vunpack.c.h.b16 %v1846
    %v2250 = vunpack.c.l.b16 %v1847
    %v2251 = vunpack.c.l.b16 %v1848
    %v2252 = vunpack.c.h.b16 %v1848
    %v2253 = vunpack.c.l.b16 %v1849
    %v2254 = vunpack.c.l.b16 %v1850
    %v2255 = vunpack.c.h.b16 %v1850
    %v2256 = vunpack.c.l.b16 %v1851
    %v2257 = vunpack.c.l.b16 %v1852
    %v2258 = vunpack.c.h.b16 %v1852
    %v2259 = vunpack.c.l.b16 %v1853
    %v2260 = vunpack.c.l.b16 %v1854
    %v2261 = vunpack.c.h.b16 %v1854
    %v2262 = vunpack.c.l.b16 %v1855
    %v2263 = vunpack.c.l.b16 %v1856
    %v2264 = vunpack.c.h.b16 %v1856
    %v2265 = vunpack.c.l.b16 %v1857
    %v2266 = vunpack.c.l.b16 %v1858
    %v2267 = vunpack.c.h.b16 %v1858
    %v2268 = vunpack.c.l.b16 %v1859
    %v2269 = vunpack.c.l.b16 %v1860
    %v2270 = vunpack.c.h.b16 %v1860
    %v2271 = vunpack.c.l.b16 %v1861
    %v2272 = vunpack.c.l.b16 %v1862
    %v2273 = vunpack.c.h.b16 %v1862
    %v2274 = vunpack.c.l.b16 %v1863
    %v2275 = vunpack.c.l.b16 %v1864
    %v2276 = vunpack.c.h.b16 %v1864
    %v2277 = vunpack.c.l.b16 %v1865
    %v2278 = vunpack.c.l.b16 %v1866
    %v2279 = vunpack.c.h.b16 %v1866
    %v2280 = vunpack.c.l.b16 %v1867
    %v2281 = vunpack.c.l.b16 %v1868
    %v2282 = vunpack.c.h.b16 %v1868
    %v2283 = vunpack.c.l.b16 %v1869
    %v2284 = vunpack.c.l.b16 %v1870
    %v2285 = vunpack.c.h.b16 %v1870
    %v2286 = vunpack.c.l.b16 %v1871
    %v2287 = vunpack.c.l.b16 %v1872
    %v2288 = vunpack.c.h.b16 %v1872
    %v2289 = vunpack.c.l.b16 %v1873
    %v2290 = vunpack.c.l.b16 %v1874
    %v2291 = vunpack.c.h.b16 %v1874
    %v2292 = vunpack.c.l.b16 %v1875
    %v2293 = vunpack.c.l.b16 %v1876
    %v2294 = vunpack.c.h.b16 %v1876
    %v2295 = vunpack.c.l.b16 %v1877
    %v2296 = vunpack.c.l.b16 %v1878
    %v2297 = vunpack.c.h.b16 %v1878
    %v2298 = vunpack.c.l.b16 %v1879
    %v2299 = vunpack.c.l.b16 %v1880
    %v2300 = vunpack.c.h.b16 %v1880
    %v2301 = vunpack.c.l.b16 %v1881
    %v2302 = vunpack.c.l.b16 %v1882
    %v2303 = vunpack.c.h.b16 %v1882
    %v2304 = vunpack.c.l.b16 %v1883
    %v2305 = vunpack.c.l.b16 %v1884
    %v2306 = vunpack.c.h.b16 %v1884
    %v2307 = vunpack.c.l.b16 %v1885
    %v2308 = vunpack.c.l.b16 %v1886
    %v2309 = vunpack.c.h.b16 %v1886
    %v2310 = vunpack.c.l.b16 %v1887
    %v2311 = vunpack.c.l.b16 %v1888
    %v2312 = vunpack.c.h.b16 %v1888
    %v2313 = vunpack.c.l.b16 %v1889
    %v2314 = vunpack.c.l.b16 %v1890
    %v2315 = vunpack.c.h.b16 %v1890
    %v2316 = vunpack.c.l.b16 %v1891
    %v2317 = vunpack.c.l.b16 %v1892
    %v2318 = vunpack.c.h.b16 %v1892
    %v2319 = vunpack.c.l.b16 %v1893
    %v2320 = vunpack.c.l.b16 %v1894
    %v2321 = vunpack.c.h.b16 %v1894
    %v2322 = vunpack.c.l.b16 %v1895
    %v2323 = vunpack.c.l.b16 %v1896
    %v2324 = vunpack.c.h.b16 %v1896
    %v2325 = vunpack.c.l.b16 %v1897
    %v2326 = vunpack.c.l.b16 %v1898
    %v2327 = vunpack.c.h.b16 %v1898
    %v2328 = vunpack.c.l.b16 %v1899
    %v2329 = vunpack.c.l.b16 %v1900
    %v2330 = vunpack.c.h.b16 %v1900
    %v2331 = vunpack.c.l.b16 %v1901
    %v2332 = vunpack.c.l.b16 %v1902
    %v2333 = vunpack.c.h.b16 %v1902
    %v2334 = vunpack.c.l.b16 %v1903
    %v2335 = vunpack.c.l.b16 %v1904
    %v2336 = vunpack.c.h.b16 %v1904
    %v2337 = vunpack.c.l.b16 %v1905
    %v2338 = vunpack.c.l.b16 %v1906
    %v2339 = vunpack.c.h.b16 %v1906
    %v2340 = vunpack.c.l.b16 %v1907
    %v2341 = vunpack.c.l.b16 %v1908
    %v2342 = vunpack.c.h.b16 %v1908
    %v2343 = vunpack.c.l.b16 %v1909
    %v2344 = vunpack.c.l.b16 %v1910
    %v2345 = vunpack.c.h.b16 %v1910
    %v2346 = vunpack.c.l.b16 %v1911
    %v2347 = vunpack.c.l.b16 %v1912
    %v2348 = vunpack.c.h.b16 %v1912
    %v2349 = vunpack.c.l.b16 %v1913
    %v2350 = vunpack.c.l.b16 %v1914
    %v2351 = vunpack.c.h.b16 %v1914
    %v2352 = vunpack.c.l.b16 %v1915
    %v2353 = vunpack.c.l.b16 %v1916
    %v2354 = vunpack.c.h.b16 %v1916
    %v2355 = vunpack.c.l.b16 %v1917
    %v2356 = vunpack.c.l.b16 %v1918
    %v2357 = vunpack.c.h.b16 %v1918
    %v2358 = vunpack.c.l.b16 %v1919
    %v2359 = vunpack.c.l.b16 %v1920
    %v2360 = vunpack.c.h.b16 %v1920
    %v2361 = vunpack.c.l.b16 %v1921
    %v2362 = vunpack.c.l.b16 %v1922
    %v2363 = vunpack.c.h.b16 %v1922
    %v2364 = vunpack.c.l.b16 %v1923
    %v2365 = vunpack.c.l.b16 %v1924
    %v2366 = vunpack.c.h.b16 %v1924
    %v2367 = vunpack.c.l.b16 %v1925
    %v2368 = vunpack.c.l.b16 %v1926
    %v2369 = vunpack.c.h.b16 %v1926
    %v2370 = vunpack.c.l.b16 %v1927
    %v2371 = vunpack.c.l.b16 %v1928
    %v2372 = vunpack.c.h.b16 %v1928
    %v2373 = vunpack.c.l.b16 %v1929
    %v2374 = vunpack.c.l.b16 %v1930
    %v2375 = vunpack.c.h.b16 %v1930
    %v2376 = vunpack.c.l.b16 %v1931
    %v2377 = vunpack.c.l.b16 %v1932
    %v2378 = vunpack.c.h.b16 %v1932
    %v2379 = vunpack.c.l.b16 %v1933
    %v2380 = vunpack.c.l.b16 %v1934
    %v2381 = vunpack.c.h.b16 %v1934
    %v2382 = vunpack.c.l.b16 %v1935
    %v2383 = vunpack.c.l.b16 %v1936
    %v2384 = vunpack.c.h.b16 %v1936
    %v2385 = vunpack.c.l.b16 %v1937
    %v2386 = vunpack.c.l.b16 %v1938
    %v2387 = vunpack.c.h.b16 %v1938
    %v2388 = vunpack.c.l.b16 %v1939
    %v2389 = vunpack.c.l.b16 %v1940
    %v2390 = vunpack.c.h.b16 %v1940
    %v2391 = vunpack.c.l.b16 %v1941
    %v2392 = vunpack.c.l.b16 %v1942
    %v2393 = vunpack.c.h.b16 %v1942
    %v2394 = vunpack.c.l.b16 %v1943
    %v2395 = vunpack.c.l.b16 %v1944
    %v2396 = vunpack.c.h.b16 %v1944
    %v2397 = vunpack.c.l.b16 %v1945
    %v2398 = vunpack.c.l.b16 %v1946
    %v2399 = vunpack.c.h.b16 %v1946
    %v2400 = vunpack.c.l.b16 %v1947
    %v2401 = vunpack.c.l.b16 %v1948
    %v2402 = vunpack.c.h.b16 %v1948
    %v2403 = vunpack.c.l.b16 %v1949
    %v2404 = vunpack.c.l.b16 %v1950
    %v2405 = vunpack.c.h.b16 %v1950
    %v2406 = vunpack.c.l.b16 %v1951
    %v2407 = vunpack.c.l.b16 %v1952
    %v2408 = vunpack.c.h.b16 %v1952
    %v2409 = vunpack.c.l.b16 %v1953
    %v2410 = vunpack.c.l.b16 %v1954
    %v2411 = vunpack.c.h.b16 %v1954
    %v2412 = vunpack.c.l.b16 %v1955
    %v2413 = vunpack.c.l.b16 %v1956
    %v2414 = vunpack.c.h.b16 %v1956
    %v2415 = vunpack.c.l.b16 %v1957
    %v2416 = vunpack.c.l.b16 %v1958
    %v2417 = vunpack.c.h.b16 %v1958
    %v2418 = vunpack.c.l.b16 %v1959
    %v2419 = vunpack.c.l.b16 %v1960
    %v2420 = vunpack.c.h.b16 %v1960
    %v2421 = vunpack.c.l.b16 %v1961
    %v2422 = vpack.c.b16 %v2149, %v2146
    %v2423 = vpack.c.b16 %v2150, %v2147
    %v2424 = vpack.c.b16 %v2151, %v2148
    %v2425 = vpack.c.b16 %v2155, %v2152
    %v2426 = vpack.c.b16 %v2156, %v2153
    %v2427 = vpack.c.b16 %v2157, %v2154
    %v2428 = vpack.c.b16 %v2161, %v2158
    %v2429 = vpack.c.b16 %v2162, %v2159
    %v2430 = vpack.c.b16 %v2163, %v2160
    %v2431 = vpack.c.b16 %v2167, %v2164
    %v2432 = vpack.c.b16 %v2168, %v2165
    %v2433 = vpack.c.b16 %v2169, %v2166
    %v2434 = vpack.c.b16 %v2173, %v2170
    %v2435 = vpack.c.b16 %v2174, %v2171
    %v2436 = vpack.c.b16 %v2175, %v2172
    %v2437 = vpack.c.b16 %v2179, %v2176
    %v2438 = vpack.c.b16 %v2180, %v2177
    %v2439 = vpack.c.b16 %v2181, %v2178
    %v2440 = vpack.c.b16 %v2185, %v2182
    %v2441 = vpack.c.b16 %v2186, %v2183
    %v2442 = vpack.c.b16 %v2187, %v2184
    %v2443 = vpack.c.b16 %v2191, %v2188
    %v2444 = vpack.c.b16 %v2192, %v2189
    %v2445 = vpack.c.b16 %v2193, %v2190
    %v2446 = vpack.c.b16 %v2197, %v2194
    %v2447 = vpack.c.b16 %v2198, %v2195
    %v2448 = vpack.c.b16 %v2199, %v2196
    %v2449 = vpack.c.b16 %v2203, %v2200
    %v2450 = vpack.c.b16 %v2204, %v2201
    %v2451 = vpack.c.b16 %v2205, %v2202
    %v2452 = vpack.c.b16 %v2209, %v2206
    %v2453 = vpack.c.b16 %v2210, %v2207
    %v2454 = vpack.c.b16 %v2211, %v2208
    %v2455 = vpack.c.b16 %v2215, %v2212
    %v2456 = vpack.c.b16 %v2216, %v2213
    %v2457 = vpack.c.b16 %v2217, %v2214
    %v2458 = vpack.c.b16 %v2221, %v2218
    %v2459 = vpack.c.b16 %v2222, %v2219
    %v2460 = vpack.c.b16 %v2223, %v2220
    %v2461 = vpack.c.b16 %v2227, %v2224
    %v2462 = vpack.c.b16 %v2228, %v2225
    %v2463 = vpack.c.b16 %v2229, %v2226
    %v2464 = vpack.c.b16 %v2233, %v2230
    %v2465 = vpack.c.b16 %v2234, %v2231
    %v2466 = vpack.c.b16 %v2235, %v2232
    %v2467 = vpack.c.b16 %v2239, %v2236
    %v2468 = vpack.c.b16 %v2240, %v2237
    %v2469 = vpack.c.b16 %v2241, %v2238
    %v2470 = vpack.c.b16 %v2245, %v2242
    %v2471 = vpack.c.b16 %v2246, %v2243
    %v2472 = vpack.c.b16 %v2247, %v2244
    %v2473 = vpack.c.b16 %v2251, %v2248
    %v2474 = vpack.c.b16 %v2252, %v2249
    %v2475 = vpack.c.b16 %v2253, %v2250
    %v2476 = vpack.c.b16 %v2257, %v2254
    %v2477 = vpack.c.b16 %v2258, %v2255
    %v2478 = vpack.c.b16 %v2259, %v2256
    %v2479 = vpack.c.b16 %v2263, %v2260
    %v2480 = vpack.c.b16 %v2264, %v2261
    %v2481 = vpack.c.b16 %v2265, %v2262
    %v2482 = vpack.c.b16 %v2269, %v2266
    %v2483 = vpack.c.b16 %v2270, %v2267
    %v2484 = vpack.c.b16 %v2271, %v2268
    %v2485 = vpack.c.b16 %v2275, %v2272
    %v2486 = vpack.c.b16 %v2276, %v2273
    %v2487 = vpack.c.b16 %v2277, %v2274
    %v2488 = vpack.c.b16 %v2281, %v2278
    %v2489 = vpack.c.b16 %v2282, %v2279
    %v2490 = vpack.c.b16 %v2283, %v2280
    %v2491 = vpack.c.b16 %v2287, %v2284
    %v2492 = vpack.c.b16 %v2288, %v2285
    %v2493 = vpack.c.b16 %v2289, %v2286
    %v2494 = vpack.c.b16 %v2293, %v2290
    %v2495 = vpack.c.b16 %v2294, %v2291
    %v2496 = vpack.c.b16 %v2295, %v2292
    %v2497 = vpack.c.b16 %v2299, %v2296
    %v2498 = vpack.c.b16 %v2300, %v2297
    %v2499 = vpack.c.b16 %v2301, %v2298
    %v2500 = vpack.c.b16 %v2305, %v2302
    %v2501 = vpack.c.b16 %v2306, %v2303
    %v2502 = vpack.c.b16 %v2307, %v2304
    %v2503 = vpack.c.b16 %v2311, %v2308
    %v2504 = vpack.c.b16 %v2312, %v2309
    %v2505 = vpack.c.b16 %v2313, %v2310
    %v2506 = vpack.c.b16 %v2317, %v2314
    %v2507 = vpack.c.b16 %v2318, %v2315
    %v2508 = vpack.c.b16 %v2319, %v2316
    %v2509 = vpack.c.b16 %v2323, %v2320
    %v2510 = vpack.c.b16 %v2324, %v2321
    %v2511 = vpack.c.b16 %v2325, %v2322
    %v2512 = vpack.c.b16 %v2329, %v2326
    %v2513 = vpack.c.b16 %v2330, %v2327
    %v2514 = vpack.c.b16 %v2331, %v2328
    %v2515 = vpack.c.b16 %v2335, %v2332
    %v2516 = vpack.c.b16 %v2336, %v2333
    %v2517 = vpack.c.b16 %v2337, %v2334
    %v2518 = vpack.c.b16 %v2341, %v2338
    %v2519 = vpack.c.b16 %v2342, %v2339
    %v2520 = vpack.c.b16 %v2343, %v2340
    %v2521 = vpack.c.b16 %v2347, %v2344
    %v2522 = vpack.c.b16 %v2348, %v2345
    %v2523 = vpack.c.b16 %v2349, %v2346
    %v2524 = vpack.c.b16 %v2353, %v2350
    %v2525 = vpack.c.b16 %v2354, %v2351
    %v2526 = vpack.c.b16 %v2355, %v2352
    %v2527 = vpack.c.b16 %v2359, %v2356
    %v2528 = vpack.c.b16 %v2360, %v2357
    %v2529 = vpack.c.b16 %v2361, %v2358
    %v2530 = vpack.c.b16 %v2365, %v2362
    %v2531 = vpack.c.b16 %v2366, %v2363
    %v2532 = vpack.c.b16 %v2367, %v2364
    %v2533 = vpack.c.b16 %v2371, %v2368
    %v2534 = vpack.c.b16 %v2372, %v2369
    %v2535 = vpack.c.b16 %v2373, %v2370
    %v2536 = vpack.c.b16 %v2377, %v2374
    %v2537 = vpack.c.b16 %v2378, %v2375
    %v2538 = vpack.c.b16 %v2379, %v2376
    %v2539 = vpack.c.b16 %v2383, %v2380
    %v2540 = vpack.c.b16 %v2384, %v2381
    %v2541 = vpack.c.b16 %v2385, %v2382
    %v2542 = vpack.c.b16 %v2389, %v2386
    %v2543 = vpack.c.b16 %v2390, %v2387
    %v2544 = vpack.c.b16 %v2391, %v2388
    %v2545 = vpack.c.b16 %v2395, %v2392
    %v2546 = vpack.c.b16 %v2396, %v2393
    %v2547 = vpack.c.b16 %v2397, %v2394
    %v2548 = vpack.c.b16 %v2401, %v2398
    %v2549 = vpack.c.b16 %v2402, %v2399
    %v2550 = vpack.c.b16 %v2403, %v2400
    %v2551 = vpack.c.b16 %v2407, %v2404
    %v2552 = vpack.c.b16 %v2408, %v2405
    %v2553 = vpack.c.b16 %v2409, %v2406
    %v2554 = vpack.c.b16 %v2413, %v2410
    %v2555 = vpack.c.b16 %v2414, %v2411
    %v2556 = vpack.c.b16 %v2415, %v2412
    %v2557 = vpack.c.b16 %v2419, %v2416
    %v2558 = vpack.c.b16 %v2420, %v2417
    %v2559 = vpack.c.b16 %v2421, %v2418
    %vm2695 = vcmask 728064
    %v2697 = vsel %vm2695, %v1777, 0
    %vm2699 = vcmask 1044480
    %v2700 = vsel %vm786, 4294967295, 65535
    %v2701 = vsel %vm2699, %v2700, 0
    %v2703 = vand.u32 %v2557, %v2701
    %v2706 = vand.u32 %v2558, %v2701
    %v2709 = vand.u32 %v2559, %v2701
    %2711 = vmatprep.subr.bf16.mxu0 %v2444
    %2712 = vmatpush1.bf16.msra.mxu0 %v2443
    %2713 = vmatprep.subr.bf16.mxu0 %v2441
    %2714 = vmatpush1.bf16.msra.mxu0 %v2440
    %2715 = vmatprep.subr.bf16.mxu0 %v2438
    %2716 = vmatpush1.bf16.msra.mxu0 %v2437
    %2717 = vmatprep.subr.bf16.mxu0 %v2435
    %2718 = vmatpush1.bf16.msra.mxu0 %v2434
    %2719 = vmatprep.subr.bf16.mxu0 %v2432
    %2720 = vmatpush1.bf16.msra.mxu0 %v2431
    %2721 = vmatprep.subr.bf16.mxu0 %v2429
    %2722 = vmatpush1.bf16.msra.mxu0 %v2428
    %2723 = vmatprep.subr.bf16.mxu0 %v2426
    %2724 = vmatpush1.bf16.msra.mxu0 %v2425
    %2725 = vmatprep.subr.bf16.mxu0 %v2423
    %2726 = vmatpush1.bf16.msra.mxu0 %v2422
    %2727 = vmatprep.subr.bf16.mxu0 %v2468
    %2728 = vmatpush2.bf16.msra.mxu0 %v2467
    %2729 = vmatprep.subr.bf16.mxu0 %v2465
    %2730 = vmatpush2.bf16.msra.mxu0 %v2464
    %2731 = vmatprep.subr.bf16.mxu0 %v2462
    %2732 = vmatpush2.bf16.msra.mxu0 %v2461
    %2733 = vmatprep.subr.bf16.mxu0 %v2459
    %2734 = vmatpush2.bf16.msra.mxu0 %v2458
    %2735 = vmatprep.subr.bf16.mxu0 %v2456
    %2736 = vmatpush2.bf16.msra.mxu0 %v2455
    %2737 = vmatprep.subr.bf16.mxu0 %v2453
    %2738 = vmatpush2.bf16.msra.mxu0 %v2452
    %2739 = vmatprep.subr.bf16.mxu0 %v2450
    %2740 = vmatpush2.bf16.msra.mxu0 %v2449
    %2741 = vmatprep.subr.bf16.mxu0 %v2447
    %2742 = vmatpush2.bf16.msra.mxu0 %v2446
    %2743 = vmatprep.mubr.bf16.mxu0 %v1773
    %2744 = vmatmul.mubr.bf16.gmra.mxu0 %v1772
    %v2745 = vpop.f32.mrf.mxu0
    %v2746 = vadd.f32 0.0, %v2745
    %v2747 = vpop.f32.mrf.mxu0
    %v2748 = vadd.f32 0.0, %v2747
    %v2749 = vpop.f32.mrf.mxu0
    %v2750 = vpop.f32.mrf.mxu0
    %2751 = vdwg.mxu0
    %2752 = vmatprep.subr.bf16.mxu0 %v2492
    %2753 = vmatpush1.bf16.msra.mxu0 %v2491
    %2754 = vmatprep.subr.bf16.mxu0 %v2489
    %2755 = vmatpush1.bf16.msra.mxu0 %v2488
    %2756 = vmatprep.subr.bf16.mxu0 %v2486
    %2757 = vmatpush1.bf16.msra.mxu0 %v2485
    %2758 = vmatprep.subr.bf16.mxu0 %v2483
    %2759 = vmatpush1.bf16.msra.mxu0 %v2482
    %2760 = vmatprep.subr.bf16.mxu0 %v2480
    %2761 = vmatpush1.bf16.msra.mxu0 %v2479
    %2762 = vmatprep.subr.bf16.mxu0 %v2477
    %2763 = vmatpush1.bf16.msra.mxu0 %v2476
    %2764 = vmatprep.subr.bf16.mxu0 %v2474
    %2765 = vmatpush1.bf16.msra.mxu0 %v2473
    %2766 = vmatprep.subr.bf16.mxu0 %v2471
    %2767 = vmatpush1.bf16.msra.mxu0 %v2470
    %2768 = vmatprep.subr.bf16.mxu0 %v2516
    %2769 = vmatpush2.bf16.msra.mxu0 %v2515
    %2770 = vmatprep.subr.bf16.mxu0 %v2513
    %2771 = vmatpush2.bf16.msra.mxu0 %v2512
    %2772 = vmatprep.subr.bf16.mxu0 %v2510
    %2773 = vmatpush2.bf16.msra.mxu0 %v2509
    %2774 = vmatprep.subr.bf16.mxu0 %v2507
    %2775 = vmatpush2.bf16.msra.mxu0 %v2506
    %2776 = vmatprep.subr.bf16.mxu0 %v2504
    %2777 = vmatpush2.bf16.msra.mxu0 %v2503
    %2778 = vmatprep.subr.bf16.mxu0 %v2501
    %2779 = vmatpush2.bf16.msra.mxu0 %v2500
    %2780 = vmatprep.subr.bf16.mxu0 %v2498
    %2781 = vmatpush2.bf16.msra.mxu0 %v2497
    %2782 = vmatprep.subr.bf16.mxu0 %v2495
    %2783 = vmatpush2.bf16.msra.mxu0 %v2494
    %2784 = vmatprep.mubr.bf16.mxu0 %v1775
    %2785 = vmatmul.mubr.bf16.gmra.mxu0 %v1774
    %v2786 = vpop.f32.mrf.mxu0
    %v2787 = vadd.f32 %v2746, %v2786
    %v2788 = vpop.f32.mrf.mxu0
    %v2789 = vadd.f32 %v2748, %v2788
    %v2790 = vpop.f32.mrf.mxu0
    %v2791 = vpop.f32.mrf.mxu0
    %2792 = vdwg.mxu0
    %2793 = vmatprep.subr.bf16.mxu0 %v2540
    %2794 = vmatpush1.bf16.msra.mxu0 %v2539
    %2795 = vmatprep.subr.bf16.mxu0 %v2537
    %2796 = vmatpush1.bf16.msra.mxu0 %v2536
    %2797 = vmatprep.subr.bf16.mxu0 %v2534
    %2798 = vmatpush1.bf16.msra.mxu0 %v2533
    %2799 = vmatprep.subr.bf16.mxu0 %v2531
    %2800 = vmatpush1.bf16.msra.mxu0 %v2530
    %2801 = vmatprep.subr.bf16.mxu0 %v2528
    %2802 = vmatpush1.bf16.msra.mxu0 %v2527
    %2803 = vmatprep.subr.bf16.mxu0 %v2525
    %2804 = vmatpush1.bf16.msra.mxu0 %v2524
    %2805 = vmatprep.subr.bf16.mxu0 %v2522
    %2806 = vmatpush1.bf16.msra.mxu0 %v2521
    %2807 = vmatprep.subr.bf16.mxu0 %v2519
    %2808 = vmatpush1.bf16.msra.mxu0 %v2518
    %2809 = vmatprep.subr.bf16.mxu0 0
    %2810 = vmatpush2.bf16.msra.mxu0 0
    %2811 = vmatprep.subr.bf16.mxu0 0
    %2812 = vmatpush2.bf16.msra.mxu0 0
    %2813 = vmatprep.subr.bf16.mxu0 %v2706
    %2814 = vmatpush2.bf16.msra.mxu0 %v2703
    %2815 = vmatprep.subr.bf16.mxu0 %v2555
    %2816 = vmatpush2.bf16.msra.mxu0 %v2554
    %2817 = vmatprep.subr.bf16.mxu0 %v2552
    %2818 = vmatpush2.bf16.msra.mxu0 %v2551
    %2819 = vmatprep.subr.bf16.mxu0 %v2549
    %2820 = vmatpush2.bf16.msra.mxu0 %v2548
    %2821 = vmatprep.subr.bf16.mxu0 %v2546
    %2822 = vmatpush2.bf16.msra.mxu0 %v2545
    %2823 = vmatprep.subr.bf16.mxu0 %v2543
    %2824 = vmatpush2.bf16.msra.mxu0 %v2542
    %2825 = vmatprep.mubr.bf16.mxu0 %v2697
    %2826 = vmatmul.mubr.bf16.gmra.mxu0 %v1776
    %v2827 = vpop.f32.mrf.mxu0
    %v2828 = vadd.f32 %v2787, %v2827
    %v2829 = vpop.f32.mrf.mxu0
    %v2830 = vadd.f32 %v2789, %v2829
    %v2831 = vpop.f32.mrf.mxu0
    %v2832 = vpop.f32.mrf.mxu0
    %2833 = vdwg.mxu0
    %2834 = vmatprep.subr.bf16.mxu0 0
    %2835 = vmatpush1.bf16.msra.mxu0 %v2445
    %2836 = vmatprep.subr.bf16.mxu0 0
    %2837 = vmatpush1.bf16.msra.mxu0 %v2442
    %2838 = vmatprep.subr.bf16.mxu0 0
    %2839 = vmatpush1.bf16.msra.mxu0 %v2439
    %2840 = vmatprep.subr.bf16.mxu0 0
    %2841 = vmatpush1.bf16.msra.mxu0 %v2436
    %2842 = vmatprep.subr.bf16.mxu0 0
    %2843 = vmatpush1.bf16.msra.mxu0 %v2433
    %2844 = vmatprep.subr.bf16.mxu0 0
    %2845 = vmatpush1.bf16.msra.mxu0 %v2430
    %2846 = vmatprep.subr.bf16.mxu0 0
    %2847 = vmatpush1.bf16.msra.mxu0 %v2427
    %2848 = vmatprep.subr.bf16.mxu0 0
    %2849 = vmatpush1.bf16.msra.mxu0 %v2424
    %2850 = vmatprep.subr.bf16.mxu0 0
    %2851 = vmatpush2.bf16.msra.mxu0 %v2469
    %2852 = vmatprep.subr.bf16.mxu0 0
    %2853 = vmatpush2.bf16.msra.mxu0 %v2466
    %2854 = vmatprep.subr.bf16.mxu0 0
    %2855 = vmatpush2.bf16.msra.mxu0 %v2463
    %2856 = vmatprep.subr.bf16.mxu0 0
    %2857 = vmatpush2.bf16.msra.mxu0 %v2460
    %2858 = vmatprep.subr.bf16.mxu0 0
    %2859 = vmatpush2.bf16.msra.mxu0 %v2457
    %2860 = vmatprep.subr.bf16.mxu0 0
    %2861 = vmatpush2.bf16.msra.mxu0 %v2454
    %2862 = vmatprep.subr.bf16.mxu0 0
    %2863 = vmatpush2.bf16.msra.mxu0 %v2451
    %2864 = vmatprep.subr.bf16.mxu0 0
    %2865 = vmatpush2.bf16.msra.mxu0 %v2448
    %2866 = vmatprep.mubr.bf16.mxu0 %v1773
    %2867 = vmatmul.mubr.bf16.gmra.mxu0 %v1772
    %v2868 = vpop.f32.mrf.mxu0
    %v2869 = vadd.f32 0.0, %v2868
    %v2870 = vpop.f32.mrf.mxu0
    %v2871 = vpop.f32.mrf.mxu0
    %v2872 = vpop.f32.mrf.mxu0
    %2873 = vdwg.mxu0
    %2874 = vmatprep.subr.bf16.mxu0 0
    %2875 = vmatpush1.bf16.msra.mxu0 %v2493
    %2876 = vmatprep.subr.bf16.mxu0 0
    %2877 = vmatpush1.bf16.msra.mxu0 %v2490
    %2878 = vmatprep.subr.bf16.mxu0 0
    %2879 = vmatpush1.bf16.msra.mxu0 %v2487
    %2880 = vmatprep.subr.bf16.mxu0 0
    %2881 = vmatpush1.bf16.msra.mxu0 %v2484
    %2882 = vmatprep.subr.bf16.mxu0 0
    %2883 = vmatpush1.bf16.msra.mxu0 %v2481
    %2884 = vmatprep.subr.bf16.mxu0 0
    %2885 = vmatpush1.bf16.msra.mxu0 %v2478
    %2886 = vmatprep.subr.bf16.mxu0 0
    %2887 = vmatpush1.bf16.msra.mxu0 %v2475
    %2888 = vmatprep.subr.bf16.mxu0 0
    %2889 = vmatpush1.bf16.msra.mxu0 %v2472
    %2890 = vmatprep.subr.bf16.mxu0 0
    %2891 = vmatpush2.bf16.msra.mxu0 %v2517
    %2892 = vmatprep.subr.bf16.mxu0 0
    %2893 = vmatpush2.bf16.msra.mxu0 %v2514
    %2894 = vmatprep.subr.bf16.mxu0 0
    %2895 = vmatpush2.bf16.msra.mxu0 %v2511
    %2896 = vmatprep.subr.bf16.mxu0 0
    %2897 = vmatpush2.bf16.msra.mxu0 %v2508
    %2898 = vmatprep.subr.bf16.mxu0 0
    %2899 = vmatpush2.bf16.msra.mxu0 %v2505
    %2900 = vmatprep.subr.bf16.mxu0 0
    %2901 = vmatpush2.bf16.msra.mxu0 %v2502
    %2902 = vmatprep.subr.bf16.mxu0 0
    %2903 = vmatpush2.bf16.msra.mxu0 %v2499
    %2904 = vmatprep.subr.bf16.mxu0 0
    %2905 = vmatpush2.bf16.msra.mxu0 %v2496
    %2906 = vmatprep.mubr.bf16.mxu0 %v1775
    %2907 = vmatmul.mubr.bf16.gmra.mxu0 %v1774
    %v2908 = vpop.f32.mrf.mxu0
    %v2909 = vadd.f32 %v2869, %v2908
    %v2910 = vpop.f32.mrf.mxu0
    %v2911 = vpop.f32.mrf.mxu0
    %v2912 = vpop.f32.mrf.mxu0
    %2913 = vdwg.mxu0
    %2914 = vmatprep.subr.bf16.mxu0 0
    %2915 = vmatpush1.bf16.msra.mxu0 %v2541
    %2916 = vmatprep.subr.bf16.mxu0 0
    %2917 = vmatpush1.bf16.msra.mxu0 %v2538
    %2918 = vmatprep.subr.bf16.mxu0 0
    %2919 = vmatpush1.bf16.msra.mxu0 %v2535
    %2920 = vmatprep.subr.bf16.mxu0 0
    %2921 = vmatpush1.bf16.msra.mxu0 %v2532
    %2922 = vmatprep.subr.bf16.mxu0 0
    %2923 = vmatpush1.bf16.msra.mxu0 %v2529
    %2924 = vmatprep.subr.bf16.mxu0 0
    %2925 = vmatpush1.bf16.msra.mxu0 %v2526
    %2926 = vmatprep.subr.bf16.mxu0 0
    %2927 = vmatpush1.bf16.msra.mxu0 %v2523
    %2928 = vmatprep.subr.bf16.mxu0 0
    %2929 = vmatpush1.bf16.msra.mxu0 %v2520
    %2930 = vmatprep.subr.bf16.mxu0 0
    %2931 = vmatpush2.bf16.msra.mxu0 0
    %2932 = vmatprep.subr.bf16.mxu0 0
    %2933 = vmatpush2.bf16.msra.mxu0 0
    %2934 = vmatprep.subr.bf16.mxu0 0
    %2935 = vmatpush2.bf16.msra.mxu0 %v2709
    %2936 = vmatprep.subr.bf16.mxu0 0
    %2937 = vmatpush2.bf16.msra.mxu0 %v2556
    %2938 = vmatprep.subr.bf16.mxu0 0
    %2939 = vmatpush2.bf16.msra.mxu0 %v2553
    %2940 = vmatprep.subr.bf16.mxu0 0
    %2941 = vmatpush2.bf16.msra.mxu0 %v2550
    %2942 = vmatprep.subr.bf16.mxu0 0
    %2943 = vmatpush2.bf16.msra.mxu0 %v2547
    %2944 = vmatprep.subr.bf16.mxu0 0
    %2945 = vmatpush2.bf16.msra.mxu0 %v2544
    %2946 = vmatprep.mubr.bf16.mxu0 %v2697
    %2947 = vmatmul.mubr.bf16.gmra.mxu0 %v1776
    %v2948 = vpop.f32.mrf.mxu0
    %v2949 = vadd.f32 %v2909, %v2948
    %v2950 = vpop.f32.mrf.mxu0
    %v2951 = vpop.f32.mrf.mxu0
    %v2952 = vpop.f32.mrf.mxu0
    %2953 = vdwg.mxu0
    %vm2954 = vcmp.ge.f32.partialorder %v196, 27.0
    %vm2955 = vcmp.ge.f32.partialorder %v325, 27.0
    %vm2956 = vcmp.ge.f32.partialorder %v326, 27.0
    %vm2957 = vcmp.ge.f32.partialorder %v327, 27.0
    %vm2958 = vcmp.ge.f32.partialorder %v328, 27.0
    %v2959 = vmul.f32 %v202, 0.03125
    %v2960 = vmul.f32 %v203, 0.03125
    %v2961 = vmul.f32 %v942, 0.03125
    %v2962 = vfloor.f32 %v2959
    %v2963 = vfloor.f32 %v2960
    %v2964 = vfloor.f32 %v2961
    %v2965 = vsub.f32 %v196, 27.0
    %v2966 = vsub.f32 %v325, 27.0
    %v2967 = vsub.f32 %v326, 27.0
    %v2968 = vsub.f32 %v327, 27.0
    %v2969 = vsub.f32 %v328, 27.0
    %vm2970 = vcmp.eq.f32.partialorder %v2962, %v2965
    %vm2971 = vcmp.eq.f32.partialorder %v2963, %v2965
    %vm2972 = vcmp.eq.f32.partialorder %v2964, %v2965
    %vm2973 = vcmp.eq.f32.partialorder %v2962, %v2966
    %vm2974 = vcmp.eq.f32.partialorder %v2963, %v2966
    %vm2975 = vcmp.eq.f32.partialorder %v2964, %v2966
    %vm2976 = vcmp.eq.f32.partialorder %v2962, %v2967
    %vm2977 = vcmp.eq.f32.partialorder %v2963, %v2967
    %vm2978 = vcmp.eq.f32.partialorder %v2964, %v2967
    %vm2979 = vcmp.eq.f32.partialorder %v2962, %v2968
    %vm2980 = vcmp.eq.f32.partialorder %v2963, %v2968
    %vm2981 = vcmp.eq.f32.partialorder %v2964, %v2968
    %vm2982 = vcmp.eq.f32.partialorder %v2962, %v2969
    %vm2983 = vcmp.eq.f32.partialorder %v2963, %v2969
    %vm2984 = vcmp.eq.f32.partialorder %v2964, %v2969
    %vm2985 = vmand %vm2954, %vm2970
    %vm2986 = vmand %vm2954, %vm2971
    %vm2987 = vmand %vm2954, %vm2972
    %vm2988 = vmand %vm2955, %vm2973
    %vm2989 = vmand %vm2955, %vm2974
    %vm2990 = vmand %vm2955, %vm2975
    %vm2991 = vmand %vm2956, %vm2976
    %vm2992 = vmand %vm2956, %vm2977
    %vm2993 = vmand %vm2956, %vm2978
    %vm2994 = vmand %vm2957, %vm2979
    %vm2995 = vmand %vm2957, %vm2980
    %vm2996 = vmand %vm2957, %vm2981
    %vm2997 = vmand %vm2958, %vm2982
    %vm2998 = vmand %vm2958, %vm2983
    %vm2999 = vmand %vm2958, %vm2984
    %v3000 = vsel %vm2985, 1, 0
    %v3001 = vsel %vm2986, 1, 0
    %v3002 = vsel %vm2987, 1, 0
    %v3003 = vsel %vm2988, 1, 0
    %v3004 = vsel %vm2989, 1, 0
    %v3005 = vsel %vm2990, 1, 0
    %v3006 = vsel %vm2991, 1, 0
    %v3007 = vsel %vm2992, 1, 0
    %v3008 = vsel %vm2993, 1, 0
    %v3009 = vsel %vm2994, 1, 0
    %v3010 = vsel %vm2995, 1, 0
    %v3011 = vsel %vm2996, 1, 0
    %v3012 = vsel %vm2997, 1, 0
    %v3013 = vsel %vm2998, 1, 0
    %v3014 = vsel %vm2999, 1, 0
    %v3015 = vcvt.s32.f32 %v3000
    %v3016 = vcvt.s32.f32 %v3001
    %v3017 = vcvt.s32.f32 %v3002
    %v3018 = vcvt.s32.f32 %v3003
    %v3019 = vcvt.s32.f32 %v3004
    %v3020 = vcvt.s32.f32 %v3005
    %v3021 = vcvt.s32.f32 %v3006
    %v3022 = vcvt.s32.f32 %v3007
    %v3023 = vcvt.s32.f32 %v3008
    %v3024 = vcvt.s32.f32 %v3009
    %v3025 = vcvt.s32.f32 %v3010
    %v3026 = vcvt.s32.f32 %v3011
    %v3027 = vcvt.s32.f32 %v3012
    %v3028 = vcvt.s32.f32 %v3013
    %v3029 = vcvt.s32.f32 %v3014
    %v3031 = vsel %vm786, %v3027, 0
    %v3034 = vsel %vm786, %v3028, 0
    %v3037 = vsel %vm786, %v3029, 0
    %3039 = vmatprep.subr.mxu0 0.0
    %3040 = vmatpush1.msra.mxu0 0.0
    %3041 = vmatprep.subr.mxu0 0.0
    %3042 = vmatpush1.msra.mxu0 0.0
    %3043 = vmatprep.subr.mxu0 0.0
    %3044 = vmatpush1.msra.mxu0 0.0
    %3045 = vmatprep.subr.mxu0 0.0
    %3046 = vmatpush1.msra.mxu0 0.0
    %3047 = vmatprep.subr.mxu0 0.0
    %3048 = vmatpush1.msra.mxu0 0.0
    %3049 = vmatprep.subr.mxu0 0.0
    %3050 = vmatpush1.msra.mxu0 0.0
    %3051 = vmatprep.subr.mxu0 0.0
    %3052 = vmatpush1.msra.mxu0 0.0
    %3053 = vmatprep.subr.mxu0 0.0
    %3054 = vmatpush1.msra.mxu0 0.0
    %3055 = vmatprep.subr.mxu0 0.0
    %3056 = vmatpush1.msra.mxu0 0.0
    %3057 = vmatprep.subr.mxu0 0.0
    %3058 = vmatpush1.msra.mxu0 0.0
    %3059 = vmatprep.subr.mxu0 0.0
    %3060 = vmatpush1.msra.mxu0 0.0
    %3061 = vmatprep.subr.mxu0 %v3034
    %3062 = vmatpush1.msra.mxu0 %v3031
    %3063 = vmatprep.subr.mxu0 %v3025
    %3064 = vmatpush1.msra.mxu0 %v3024
    %3065 = vmatprep.subr.mxu0 %v3022
    %3066 = vmatpush1.msra.mxu0 %v3021
    %3067 = vmatprep.subr.mxu0 %v3019
    %3068 = vmatpush1.msra.mxu0 %v3018
    %3069 = vmatprep.subr.mxu0 %v3016
    %3070 = vmatpush1.msra.mxu0 %v3015
    %3071 = vmatprep.subr.mxu0 0.0
    %3072 = vmatpush2.msra.mxu0 0.0
    %3073 = vmatprep.subr.mxu0 0.0
    %3074 = vmatpush2.msra.mxu0 0.0
    %3075 = vmatprep.subr.mxu0 0.0
    %3076 = vmatpush2.msra.mxu0 0.0
    %3077 = vmatprep.subr.mxu0 0.0
    %3078 = vmatpush2.msra.mxu0 0.0
    %3079 = vmatprep.subr.mxu0 0.0
    %3080 = vmatpush2.msra.mxu0 0.0
    %3081 = vmatprep.subr.mxu0 0.0
    %3082 = vmatpush2.msra.mxu0 0.0
    %3083 = vmatprep.subr.mxu0 0.0
    %3084 = vmatpush2.msra.mxu0 0.0
    %3085 = vmatprep.subr.mxu0 0.0
    %3086 = vmatpush2.msra.mxu0 0.0
    %3087 = vmatprep.subr.mxu0 0.0
    %3088 = vmatpush2.msra.mxu0 0.0
    %3089 = vmatprep.subr.mxu0 0.0
    %3090 = vmatpush2.msra.mxu0 0.0
    %3091 = vmatprep.subr.mxu0 0.0
    %3092 = vmatpush2.msra.mxu0 0.0
    %3093 = vmatprep.subr.mxu0 0.0
    %3094 = vmatpush2.msra.mxu0 0.0
    %3095 = vmatprep.subr.mxu0 0.0
    %3096 = vmatpush2.msra.mxu0 0.0
    %3097 = vmatprep.subr.mxu0 0.0
    %3098 = vmatpush2.msra.mxu0 0.0
    %3099 = vmatprep.subr.mxu0 0.0
    %3100 = vmatpush2.msra.mxu0 0.0
    %3101 = vmatprep.subr.mxu0 0.0
    %3102 = vmatpush2.msra.mxu0 0.0
    %3103 = vmatprep.mubr.f32.mxu0 0.0
    %3104 = vmatmul.mubr.f32.gmra.mxu0 %v784
    %v3105 = vpop.f32.mrf.mxu0
    %v3106 = vadd.f32 0.0, %v3105
    %v3107 = vpop.f32.mrf.mxu0
    %v3108 = vadd.f32 0.0, %v3107
    %3109 = vdwg.mxu0
    %3110 = vmatprep.subr.mxu0 0.0
    %3111 = vmatpush1.msra.mxu0 0.0
    %3112 = vmatprep.subr.mxu0 0.0
    %3113 = vmatpush1.msra.mxu0 0.0
    %3114 = vmatprep.subr.mxu0 0.0
    %3115 = vmatpush1.msra.mxu0 0.0
    %3116 = vmatprep.subr.mxu0 0.0
    %3117 = vmatpush1.msra.mxu0 0.0
    %3118 = vmatprep.subr.mxu0 0.0
    %3119 = vmatpush1.msra.mxu0 0.0
    %3120 = vmatprep.subr.mxu0 0.0
    %3121 = vmatpush1.msra.mxu0 0.0
    %3122 = vmatprep.subr.mxu0 0.0
    %3123 = vmatpush1.msra.mxu0 0.0
    %3124 = vmatprep.subr.mxu0 0.0
    %3125 = vmatpush1.msra.mxu0 0.0
    %3126 = vmatprep.subr.mxu0 0.0
    %3127 = vmatpush1.msra.mxu0 0.0
    %3128 = vmatprep.subr.mxu0 0.0
    %3129 = vmatpush1.msra.mxu0 0.0
    %3130 = vmatprep.subr.mxu0 0.0
    %3131 = vmatpush1.msra.mxu0 0.0
    %3132 = vmatprep.subr.mxu0 0.0
    %3133 = vmatpush1.msra.mxu0 %v3037
    %3134 = vmatprep.subr.mxu0 0.0
    %3135 = vmatpush1.msra.mxu0 %v3026
    %3136 = vmatprep.subr.mxu0 0.0
    %3137 = vmatpush1.msra.mxu0 %v3023
    %3138 = vmatprep.subr.mxu0 0.0
    %3139 = vmatpush1.msra.mxu0 %v3020
    %3140 = vmatprep.subr.mxu0 0.0
    %3141 = vmatpush1.msra.mxu0 %v3017
    %3142 = vmatprep.subr.mxu0 0.0
    %3143 = vmatpush2.msra.mxu0 0.0
    %3144 = vmatprep.subr.mxu0 0.0
    %3145 = vmatpush2.msra.mxu0 0.0
    %3146 = vmatprep.subr.mxu0 0.0
    %3147 = vmatpush2.msra.mxu0 0.0
    %3148 = vmatprep.subr.mxu0 0.0
    %3149 = vmatpush2.msra.mxu0 0.0
    %3150 = vmatprep.subr.mxu0 0.0
    %3151 = vmatpush2.msra.mxu0 0.0
    %3152 = vmatprep.subr.mxu0 0.0
    %3153 = vmatpush2.msra.mxu0 0.0
    %3154 = vmatprep.subr.mxu0 0.0
    %3155 = vmatpush2.msra.mxu0 0.0
    %3156 = vmatprep.subr.mxu0 0.0
    %3157 = vmatpush2.msra.mxu0 0.0
    %3158 = vmatprep.subr.mxu0 0.0
    %3159 = vmatpush2.msra.mxu0 0.0
    %3160 = vmatprep.subr.mxu0 0.0
    %3161 = vmatpush2.msra.mxu0 0.0
    %3162 = vmatprep.subr.mxu0 0.0
    %3163 = vmatpush2.msra.mxu0 0.0
    %3164 = vmatprep.subr.mxu0 0.0
    %3165 = vmatpush2.msra.mxu0 0.0
    %3166 = vmatprep.subr.mxu0 0.0
    %3167 = vmatpush2.msra.mxu0 0.0
    %3168 = vmatprep.subr.mxu0 0.0
    %3169 = vmatpush2.msra.mxu0 0.0
    %3170 = vmatprep.subr.mxu0 0.0
    %3171 = vmatpush2.msra.mxu0 0.0
    %3172 = vmatprep.subr.mxu0 0.0
    %3173 = vmatpush2.msra.mxu0 0.0
    %3174 = vmatprep.mubr.f32.mxu0 0.0
    %3175 = vmatmul.mubr.f32.gmra.mxu0 %v784
    %v3176 = vpop.f32.mrf.mxu0
    %v3177 = vadd.f32 0.0, %v3176
    %v3178 = vpop.f32.mrf.mxu0
    %3179 = vdwg.mxu0
    %v3180 = vadd.s32 %v195, 256
    %v3181 = vadd.s32 %v195, 264
    %v3182 = vadd.s32 %v195, 272
    %v3183 = vadd.s32 %v195, 280
    %v3184 = vcvt.s32.f32 %v3180
    %v3185 = vcvt.s32.f32 %v3181
    %v3186 = vcvt.s32.f32 %v3182
    %v3187 = vcvt.s32.f32 %v3183
    %v3188 = vadd.f32 %v3184, 0.5
    %v3189 = vadd.f32 %v3185, 0.5
    %v3190 = vadd.f32 %v3186, 0.5
    %v3191 = vadd.f32 %v3187, 0.5
    %v3192 = vmul.f32 %v356, 0.03125
    %v3193 = vmul.f32 %v357, 0.03125
    %v3194 = vmul.f32 %v358, 0.03125
    %v3195 = vmul.f32 %v359, 0.03125
    %v3196 = vmul.f32 %v360, 0.03125
    %v3197 = vmul.f32 %v361, 0.03125
    %v3198 = vmul.f32 %v362, 0.03125
    %v3199 = vmul.f32 %v363, 0.03125
    %v3200 = vmul.f32 %v364, 0.03125
    %v3201 = vmul.f32 %v365, 0.03125
    %v3202 = vmul.f32 %v366, 0.03125
    %v3203 = vmul.f32 %v367, 0.03125
    %v3204 = vmul.f32 %v368, 0.03125
    %v3205 = vmul.f32 %v369, 0.03125
    %v3206 = vmul.f32 %v370, 0.03125
    %v3207 = vmul.f32 %v371, 0.03125
    %v3208 = vmul.f32 %v372, 0.03125
    %v3209 = vmul.f32 %v373, 0.03125
    %v3210 = vmul.f32 %v374, 0.03125
    %v3211 = vmul.f32 %v375, 0.03125
    %v3212 = vmul.f32 %v376, 0.03125
    %v3213 = vmul.f32 %v377, 0.03125
    %v3214 = vmul.f32 %v378, 0.03125
    %v3215 = vmul.f32 %v379, 0.03125
    %v3216 = vmul.f32 %v380, 0.03125
    %v3217 = vmul.f32 %v381, 0.03125
    %v3218 = vmul.f32 %v382, 0.03125
    %v3219 = vmul.f32 %v383, 0.03125
    %v3220 = vmul.f32 %v384, 0.03125
    %v3221 = vmul.f32 %v385, 0.03125
    %v3222 = vmul.f32 %v386, 0.03125
    %v3223 = vmul.f32 %v387, 0.03125
    %v3224 = vmul.f32 %v3188, 0.03125
    %v3225 = vmul.f32 %v3189, 0.03125
    %v3226 = vmul.f32 %v3190, 0.03125
    %v3227 = vmul.f32 %v3191, 0.03125
    %v3228 = vfloor.f32 %v3192
    %v3229 = vfloor.f32 %v3193
    %v3230 = vfloor.f32 %v3194
    %v3231 = vfloor.f32 %v3195
    %v3232 = vfloor.f32 %v3196
    %v3233 = vfloor.f32 %v3197
    %v3234 = vfloor.f32 %v3198
    %v3235 = vfloor.f32 %v3199
    %v3236 = vfloor.f32 %v3200
    %v3237 = vfloor.f32 %v3201
    %v3238 = vfloor.f32 %v3202
    %v3239 = vfloor.f32 %v3203
    %v3240 = vfloor.f32 %v3204
    %v3241 = vfloor.f32 %v3205
    %v3242 = vfloor.f32 %v3206
    %v3243 = vfloor.f32 %v3207
    %v3244 = vfloor.f32 %v3208
    %v3245 = vfloor.f32 %v3209
    %v3246 = vfloor.f32 %v3210
    %v3247 = vfloor.f32 %v3211
    %v3248 = vfloor.f32 %v3212
    %v3249 = vfloor.f32 %v3213
    %v3250 = vfloor.f32 %v3214
    %v3251 = vfloor.f32 %v3215
    %v3252 = vfloor.f32 %v3216
    %v3253 = vfloor.f32 %v3217
    %v3254 = vfloor.f32 %v3218
    %v3255 = vfloor.f32 %v3219
    %v3256 = vfloor.f32 %v3220
    %v3257 = vfloor.f32 %v3221
    %v3258 = vfloor.f32 %v3222
    %v3259 = vfloor.f32 %v3223
    %v3260 = vfloor.f32 %v3224
    %v3261 = vfloor.f32 %v3225
    %v3262 = vfloor.f32 %v3226
    %v3263 = vfloor.f32 %v3227
    %v3264 = vmul.f32 %v3228, 32.0
    %v3265 = vmul.f32 %v3229, 32.0
    %v3266 = vmul.f32 %v3230, 32.0
    %v3267 = vmul.f32 %v3231, 32.0
    %v3268 = vmul.f32 %v3232, 32.0
    %v3269 = vmul.f32 %v3233, 32.0
    %v3270 = vmul.f32 %v3234, 32.0
    %v3271 = vmul.f32 %v3235, 32.0
    %v3272 = vmul.f32 %v3236, 32.0
    %v3273 = vmul.f32 %v3237, 32.0
    %v3274 = vmul.f32 %v3238, 32.0
    %v3275 = vmul.f32 %v3239, 32.0
    %v3276 = vmul.f32 %v3240, 32.0
    %v3277 = vmul.f32 %v3241, 32.0
    %v3278 = vmul.f32 %v3242, 32.0
    %v3279 = vmul.f32 %v3243, 32.0
    %v3280 = vmul.f32 %v3244, 32.0
    %v3281 = vmul.f32 %v3245, 32.0
    %v3282 = vmul.f32 %v3246, 32.0
    %v3283 = vmul.f32 %v3247, 32.0
    %v3284 = vmul.f32 %v3248, 32.0
    %v3285 = vmul.f32 %v3249, 32.0
    %v3286 = vmul.f32 %v3250, 32.0
    %v3287 = vmul.f32 %v3251, 32.0
    %v3288 = vmul.f32 %v3252, 32.0
    %v3289 = vmul.f32 %v3253, 32.0
    %v3290 = vmul.f32 %v3254, 32.0
    %v3291 = vmul.f32 %v3255, 32.0
    %v3292 = vmul.f32 %v3256, 32.0
    %v3293 = vmul.f32 %v3257, 32.0
    %v3294 = vmul.f32 %v3258, 32.0
    %v3295 = vmul.f32 %v3259, 32.0
    %v3296 = vmul.f32 %v3260, 32.0
    %v3297 = vmul.f32 %v3261, 32.0
    %v3298 = vmul.f32 %v3262, 32.0
    %v3299 = vmul.f32 %v3263, 32.0
    %v3300 = vsub.f32 %v196, %v3264
    %v3301 = vsub.f32 %v325, %v3265
    %v3302 = vsub.f32 %v326, %v3266
    %v3303 = vsub.f32 %v327, %v3267
    %v3304 = vsub.f32 %v328, %v3268
    %v3305 = vsub.f32 %v329, %v3269
    %v3306 = vsub.f32 %v330, %v3270
    %v3307 = vsub.f32 %v331, %v3271
    %v3308 = vsub.f32 %v332, %v3272
    %v3309 = vsub.f32 %v333, %v3273
    %v3310 = vsub.f32 %v334, %v3274
    %v3311 = vsub.f32 %v335, %v3275
    %v3312 = vsub.f32 %v336, %v3276
    %v3313 = vsub.f32 %v337, %v3277
    %v3314 = vsub.f32 %v338, %v3278
    %v3315 = vsub.f32 %v339, %v3279
    %v3316 = vsub.f32 %v340, %v3280
    %v3317 = vsub.f32 %v341, %v3281
    %v3318 = vsub.f32 %v342, %v3282
    %v3319 = vsub.f32 %v343, %v3283
    %v3320 = vsub.f32 %v344, %v3284
    %v3321 = vsub.f32 %v345, %v3285
    %v3322 = vsub.f32 %v346, %v3286
    %v3323 = vsub.f32 %v347, %v3287
    %v3324 = vsub.f32 %v348, %v3288
    %v3325 = vsub.f32 %v349, %v3289
    %v3326 = vsub.f32 %v350, %v3290
    %v3327 = vsub.f32 %v351, %v3291
    %v3328 = vsub.f32 %v352, %v3292
    %v3329 = vsub.f32 %v353, %v3293
    %v3330 = vsub.f32 %v354, %v3294
    %v3331 = vsub.f32 %v355, %v3295
    %v3332 = vsub.f32 %v3184, %v3296
    %v3333 = vsub.f32 %v3185, %v3297
    %v3334 = vsub.f32 %v3186, %v3298
    %v3335 = vsub.f32 %v3187, %v3299
    %vm3336 = vcmp.eq.f32.partialorder %v3300, %v200
    %vm3337 = vcmp.eq.f32.partialorder %v3301, %v200
    %vm3338 = vcmp.eq.f32.partialorder %v3302, %v200
    %vm3339 = vcmp.eq.f32.partialorder %v3303, %v200
    %vm3340 = vcmp.eq.f32.partialorder %v3304, %v200
    %vm3341 = vcmp.eq.f32.partialorder %v3305, %v200
    %vm3342 = vcmp.eq.f32.partialorder %v3306, %v200
    %vm3343 = vcmp.eq.f32.partialorder %v3307, %v200
    %vm3344 = vcmp.eq.f32.partialorder %v3308, %v200
    %vm3345 = vcmp.eq.f32.partialorder %v3309, %v200
    %vm3346 = vcmp.eq.f32.partialorder %v3310, %v200
    %vm3347 = vcmp.eq.f32.partialorder %v3311, %v200
    %vm3348 = vcmp.eq.f32.partialorder %v3312, %v200
    %vm3349 = vcmp.eq.f32.partialorder %v3313, %v200
    %vm3350 = vcmp.eq.f32.partialorder %v3314, %v200
    %vm3351 = vcmp.eq.f32.partialorder %v3315, %v200
    %vm3352 = vcmp.eq.f32.partialorder %v3316, %v200
    %vm3353 = vcmp.eq.f32.partialorder %v3317, %v200
    %vm3354 = vcmp.eq.f32.partialorder %v3318, %v200
    %vm3355 = vcmp.eq.f32.partialorder %v3319, %v200
    %vm3356 = vcmp.eq.f32.partialorder %v3320, %v200
    %vm3357 = vcmp.eq.f32.partialorder %v3321, %v200
    %vm3358 = vcmp.eq.f32.partialorder %v3322, %v200
    %vm3359 = vcmp.eq.f32.partialorder %v3323, %v200
    %vm3360 = vcmp.eq.f32.partialorder %v3324, %v200
    %vm3361 = vcmp.eq.f32.partialorder %v3325, %v200
    %vm3362 = vcmp.eq.f32.partialorder %v3326, %v200
    %vm3363 = vcmp.eq.f32.partialorder %v3327, %v200
    %vm3364 = vcmp.eq.f32.partialorder %v3328, %v200
    %vm3365 = vcmp.eq.f32.partialorder %v3329, %v200
    %vm3366 = vcmp.eq.f32.partialorder %v3330, %v200
    %vm3367 = vcmp.eq.f32.partialorder %v3331, %v200
    %vm3368 = vcmp.eq.f32.partialorder %v3332, %v200
    %vm3369 = vcmp.eq.f32.partialorder %v3333, %v200
    %vm3370 = vcmp.eq.f32.partialorder %v3334, %v200
    %vm3371 = vcmp.eq.f32.partialorder %v3335, %v200
    %v3372 = vsel %vm3336, 1, 0
    %v3373 = vsel %vm3337, 1, 0
    %v3374 = vsel %vm3338, 1, 0
    %v3375 = vsel %vm3339, 1, 0
    %v3376 = vsel %vm3340, 1, 0
    %v3377 = vsel %vm3341, 1, 0
    %v3378 = vsel %vm3342, 1, 0
    %v3379 = vsel %vm3343, 1, 0
    %v3380 = vsel %vm3344, 1, 0
    %v3381 = vsel %vm3345, 1, 0
    %v3382 = vsel %vm3346, 1, 0
    %v3383 = vsel %vm3347, 1, 0
    %v3384 = vsel %vm3348, 1, 0
    %v3385 = vsel %vm3349, 1, 0
    %v3386 = vsel %vm3350, 1, 0
    %v3387 = vsel %vm3351, 1, 0
    %v3388 = vsel %vm3352, 1, 0
    %v3389 = vsel %vm3353, 1, 0
    %v3390 = vsel %vm3354, 1, 0
    %v3391 = vsel %vm3355, 1, 0
    %v3392 = vsel %vm3356, 1, 0
    %v3393 = vsel %vm3357, 1, 0
    %v3394 = vsel %vm3358, 1, 0
    %v3395 = vsel %vm3359, 1, 0
    %v3396 = vsel %vm3360, 1, 0
    %v3397 = vsel %vm3361, 1, 0
    %v3398 = vsel %vm3362, 1, 0
    %v3399 = vsel %vm3363, 1, 0
    %v3400 = vsel %vm3364, 1, 0
    %v3401 = vsel %vm3365, 1, 0
    %v3402 = vsel %vm3366, 1, 0
    %v3403 = vsel %vm3367, 1, 0
    %v3404 = vsel %vm3368, 1, 0
    %v3405 = vsel %vm3369, 1, 0
    %v3406 = vsel %vm3370, 1, 0
    %v3407 = vsel %vm3371, 1, 0
    %v3408 = vcvt.s32.f32 %v3372
    %v3409 = vcvt.s32.f32 %v3373
    %v3410 = vcvt.s32.f32 %v3374
    %v3411 = vcvt.s32.f32 %v3375
    %v3412 = vcvt.s32.f32 %v3376
    %v3413 = vcvt.s32.f32 %v3377
    %v3414 = vcvt.s32.f32 %v3378
    %v3415 = vcvt.s32.f32 %v3379
    %v3416 = vcvt.s32.f32 %v3380
    %v3417 = vcvt.s32.f32 %v3381
    %v3418 = vcvt.s32.f32 %v3382
    %v3419 = vcvt.s32.f32 %v3383
    %v3420 = vcvt.s32.f32 %v3384
    %v3421 = vcvt.s32.f32 %v3385
    %v3422 = vcvt.s32.f32 %v3386
    %v3423 = vcvt.s32.f32 %v3387
    %v3424 = vcvt.s32.f32 %v3388
    %v3425 = vcvt.s32.f32 %v3389
    %v3426 = vcvt.s32.f32 %v3390
    %v3427 = vcvt.s32.f32 %v3391
    %v3428 = vcvt.s32.f32 %v3392
    %v3429 = vcvt.s32.f32 %v3393
    %v3430 = vcvt.s32.f32 %v3394
    %v3431 = vcvt.s32.f32 %v3395
    %v3432 = vcvt.s32.f32 %v3396
    %v3433 = vcvt.s32.f32 %v3397
    %v3434 = vcvt.s32.f32 %v3398
    %v3435 = vcvt.s32.f32 %v3399
    %v3436 = vcvt.s32.f32 %v3400
    %v3437 = vcvt.s32.f32 %v3401
    %v3438 = vcvt.s32.f32 %v3402
    %v3439 = vcvt.s32.f32 %v3403
    %v3440 = vcvt.s32.f32 %v3404
    %v3441 = vcvt.s32.f32 %v3405
    %v3442 = vcvt.s32.f32 %v3406
    %v3443 = vcvt.s32.f32 %v3407
    %v3444 = vmul.f32 %v2828, %v3106
    %v3445 = vmul.f32 %v2830, %v3108
    %v3446 = vmul.f32 %v2949, %v3177
    %v3447 = vlaneseq
    %v3448 = vshrl.u32 %v3447, 7
    %v3449 = vsub.s32 3, %v3448
    %v3450 = vrot.slane %v39, %v3449
    %v3452 = vsel %vm44, %v3446, 0
    %3454 = vmatprep.subr.mxu0 0.0
    %3455 = vmatpush1.msra.mxu0 %v3423
    %3456 = vmatprep.subr.mxu0 0.0
    %3457 = vmatpush1.msra.mxu0 %v3422
    %3458 = vmatprep.subr.mxu0 0.0
    %3459 = vmatpush1.msra.mxu0 %v3421
    %3460 = vmatprep.subr.mxu0 0.0
    %3461 = vmatpush1.msra.mxu0 %v3420
    %3462 = vmatprep.subr.mxu0 0.0
    %3463 = vmatpush1.msra.mxu0 %v3419
    %3464 = vmatprep.subr.mxu0 0.0
    %3465 = vmatpush1.msra.mxu0 %v3418
    %3466 = vmatprep.subr.mxu0 0.0
    %3467 = vmatpush1.msra.mxu0 %v3417
    %3468 = vmatprep.subr.mxu0 0.0
    %3469 = vmatpush1.msra.mxu0 %v3416
    %3470 = vmatprep.subr.mxu0 0.0
    %3471 = vmatpush1.msra.mxu0 %v3415
    %3472 = vmatprep.subr.mxu0 0.0
    %3473 = vmatpush1.msra.mxu0 %v3414
    %3474 = vmatprep.subr.mxu0 0.0
    %3475 = vmatpush1.msra.mxu0 %v3413
    %3476 = vmatprep.subr.mxu0 0.0
    %3477 = vmatpush1.msra.mxu0 %v3412
    %3478 = vmatprep.subr.mxu0 0.0
    %3479 = vmatpush1.msra.mxu0 %v3411
    %3480 = vmatprep.subr.mxu0 0.0
    %3481 = vmatpush1.msra.mxu0 %v3410
    %3482 = vmatprep.subr.mxu0 0.0
    %3483 = vmatpush1.msra.mxu0 %v3409
    %3484 = vmatprep.subr.mxu0 0.0
    %3485 = vmatpush1.msra.mxu0 %v3408
    %3486 = vmatprep.subr.mxu0 0.0
    %3487 = vmatpush2.msra.mxu0 %v3439
    %3488 = vmatprep.subr.mxu0 0.0
    %3489 = vmatpush2.msra.mxu0 %v3438
    %3490 = vmatprep.subr.mxu0 0.0
    %3491 = vmatpush2.msra.mxu0 %v3437
    %3492 = vmatprep.subr.mxu0 0.0
    %3493 = vmatpush2.msra.mxu0 %v3436
    %3494 = vmatprep.subr.mxu0 0.0
    %3495 = vmatpush2.msra.mxu0 %v3435
    %3496 = vmatprep.subr.mxu0 0.0
    %3497 = vmatpush2.msra.mxu0 %v3434
    %3498 = vmatprep.subr.mxu0 0.0
    %3499 = vmatpush2.msra.mxu0 %v3433
    %3500 = vmatprep.subr.mxu0 0.0
    %3501 = vmatpush2.msra.mxu0 %v3432
    %3502 = vmatprep.subr.mxu0 0.0
    %3503 = vmatpush2.msra.mxu0 %v3431
    %3504 = vmatprep.subr.mxu0 0.0
    %3505 = vmatpush2.msra.mxu0 %v3430
    %3506 = vmatprep.subr.mxu0 0.0
    %3507 = vmatpush2.msra.mxu0 %v3429
    %3508 = vmatprep.subr.mxu0 0.0
    %3509 = vmatpush2.msra.mxu0 %v3428
    %3510 = vmatprep.subr.mxu0 0.0
    %3511 = vmatpush2.msra.mxu0 %v3427
    %3512 = vmatprep.subr.mxu0 0.0
    %3513 = vmatpush2.msra.mxu0 %v3426
    %3514 = vmatprep.subr.mxu0 0.0
    %3515 = vmatpush2.msra.mxu0 %v3425
    %3516 = vmatprep.subr.mxu0 0.0
    %3517 = vmatpush2.msra.mxu0 %v3424
    %3518 = vmatprep.mubr.f32.mxu0 %v3445
    %3519 = vmatmul.mubr.f32.gmra.mxu0 %v3444
    %v3520 = vpop.f32.mrf.mxu0
    %v3521 = vadd.f32 %v3450, %v3520
    %v3522 = vpop.f32.mrf.mxu0
    %3523 = vdwg.mxu0
    %3524 = vmatprep.subr.mxu0 0.0
    %3525 = vmatpush1.msra.mxu0 0.0
    %3526 = vmatprep.subr.mxu0 0.0
    %3527 = vmatpush1.msra.mxu0 0.0
    %3528 = vmatprep.subr.mxu0 0.0
    %3529 = vmatpush1.msra.mxu0 0.0
    %3530 = vmatprep.subr.mxu0 0.0
    %3531 = vmatpush1.msra.mxu0 0.0
    %3532 = vmatprep.subr.mxu0 0.0
    %3533 = vmatpush1.msra.mxu0 0.0
    %3534 = vmatprep.subr.mxu0 0.0
    %3535 = vmatpush1.msra.mxu0 0.0
    %3536 = vmatprep.subr.mxu0 0.0
    %3537 = vmatpush1.msra.mxu0 0.0
    %3538 = vmatprep.subr.mxu0 0.0
    %3539 = vmatpush1.msra.mxu0 0.0
    %3540 = vmatprep.subr.mxu0 0.0
    %3541 = vmatpush1.msra.mxu0 0.0
    %3542 = vmatprep.subr.mxu0 0.0
    %3543 = vmatpush1.msra.mxu0 0.0
    %3544 = vmatprep.subr.mxu0 0.0
    %3545 = vmatpush1.msra.mxu0 0.0
    %3546 = vmatprep.subr.mxu0 0.0
    %3547 = vmatpush1.msra.mxu0 0.0
    %3548 = vmatprep.subr.mxu0 0.0
    %3549 = vmatpush1.msra.mxu0 %v3443
    %3550 = vmatprep.subr.mxu0 0.0
    %3551 = vmatpush1.msra.mxu0 %v3442
    %3552 = vmatprep.subr.mxu0 0.0
    %3553 = vmatpush1.msra.mxu0 %v3441
    %3554 = vmatprep.subr.mxu0 0.0
    %3555 = vmatpush1.msra.mxu0 %v3440
    %3556 = vmatprep.subr.mxu0 0.0
    %3557 = vmatpush2.msra.mxu0 0.0
    %3558 = vmatprep.subr.mxu0 0.0
    %3559 = vmatpush2.msra.mxu0 0.0
    %3560 = vmatprep.subr.mxu0 0.0
    %3561 = vmatpush2.msra.mxu0 0.0
    %3562 = vmatprep.subr.mxu0 0.0
    %3563 = vmatpush2.msra.mxu0 0.0
    %3564 = vmatprep.subr.mxu0 0.0
    %3565 = vmatpush2.msra.mxu0 0.0
    %3566 = vmatprep.subr.mxu0 0.0
    %3567 = vmatpush2.msra.mxu0 0.0
    %3568 = vmatprep.subr.mxu0 0.0
    %3569 = vmatpush2.msra.mxu0 0.0
    %3570 = vmatprep.subr.mxu0 0.0
    %3571 = vmatpush2.msra.mxu0 0.0
    %3572 = vmatprep.subr.mxu0 0.0
    %3573 = vmatpush2.msra.mxu0 0.0
    %3574 = vmatprep.subr.mxu0 0.0
    %3575 = vmatpush2.msra.mxu0 0.0
    %3576 = vmatprep.subr.mxu0 0.0
    %3577 = vmatpush2.msra.mxu0 0.0
    %3578 = vmatprep.subr.mxu0 0.0
    %3579 = vmatpush2.msra.mxu0 0.0
    %3580 = vmatprep.subr.mxu0 0.0
    %3581 = vmatpush2.msra.mxu0 0.0
    %3582 = vmatprep.subr.mxu0 0.0
    %3583 = vmatpush2.msra.mxu0 0.0
    %3584 = vmatprep.subr.mxu0 0.0
    %3585 = vmatpush2.msra.mxu0 0.0
    %3586 = vmatprep.subr.mxu0 0.0
    %3587 = vmatpush2.msra.mxu0 0.0
    %3588 = vmatprep.mubr.f32.mxu0 0.0
    %3589 = vmatmul.mubr.f32.gmra.mxu0 %v3452
    %v3590 = vpop.f32.mrf.mxu0
    %v3591 = vadd.f32 %v3521, %v3590
    %v3592 = vpop.f32.mrf.mxu0
    %3593 = vdwg.mxu0
    %v3594 = vmax.f32 %v3591, 0.0
    %v3595 = vld [vmem:[%s4] sm:$0xff]
    %v3596 = vld [vmem:[%s4 + $0x8] sm:$0xff]
    %v3597 = vld [vmem:[%s4 + $0x10] sm:$0xff]
    %v3598 = vld [vmem:[%s4 + $0x18] sm:$0xff]
    %v3599 = vld [vmem:[%s4 + $0x20] sm:$0xff]
    %v3600 = vld [vmem:[%s4 + $0x28] sm:$0xff]
    %v3601 = vld [vmem:[%s4 + $0x30] sm:$0xff]
    %v3602 = vld [vmem:[%s4 + $0x38] sm:$0xff]
    %v3603 = vld [vmem:[%s4 + $0x40] sm:$0xf]
    %v3605 = vsel %vm786, %v3603, 0
    %3607 = vmatprep.subr.mxu0 0.0
    %3608 = vmatpush1.msra.mxu0 0.0
    %3609 = vmatprep.subr.mxu0 0.0
    %3610 = vmatpush1.msra.mxu0 0.0
    %3611 = vmatprep.subr.mxu0 0.0
    %3612 = vmatpush1.msra.mxu0 0.0
    %3613 = vmatprep.subr.mxu0 0.0
    %3614 = vmatpush1.msra.mxu0 0.0
    %3615 = vmatprep.subr.mxu0 0.0
    %3616 = vmatpush1.msra.mxu0 0.0
    %3617 = vmatprep.subr.mxu0 0.0
    %3618 = vmatpush1.msra.mxu0 0.0
    %3619 = vmatprep.subr.mxu0 0.0
    %3620 = vmatpush1.msra.mxu0 0.0
    %3621 = vmatprep.subr.mxu0 0.0
    %3622 = vmatpush1.msra.mxu0 0.0
    %3623 = vmatprep.subr.mxu0 0.0
    %3624 = vmatpush1.msra.mxu0 0.0
    %3625 = vmatprep.subr.mxu0 0.0
    %3626 = vmatpush1.msra.mxu0 0.0
    %3627 = vmatprep.subr.mxu0 0.0
    %3628 = vmatpush1.msra.mxu0 0.0
    %3629 = vmatprep.subr.mxu0 0.0
    %3630 = vmatpush1.msra.mxu0 %v3605
    %3631 = vmatprep.subr.mxu0 0.0
    %3632 = vmatpush1.msra.mxu0 %v3602
    %3633 = vmatprep.subr.mxu0 0.0
    %3634 = vmatpush1.msra.mxu0 %v3601
    %3635 = vmatprep.subr.mxu0 0.0
    %3636 = vmatpush1.msra.mxu0 %v3600
    %3637 = vmatprep.subr.mxu0 0.0
    %3638 = vmatpush1.msra.mxu0 %v3599
    %3639 = vmatprep.subr.mxu0 0.0
    %3640 = vmatpush2.msra.mxu0 0.0
    %3641 = vmatprep.subr.mxu0 0.0
    %3642 = vmatpush2.msra.mxu0 0.0
    %3643 = vmatprep.subr.mxu0 0.0
    %3644 = vmatpush2.msra.mxu0 0.0
    %3645 = vmatprep.subr.mxu0 0.0
    %3646 = vmatpush2.msra.mxu0 0.0
    %3647 = vmatprep.subr.mxu0 0.0
    %3648 = vmatpush2.msra.mxu0 0.0
    %3649 = vmatprep.subr.mxu0 0.0
    %3650 = vmatpush2.msra.mxu0 0.0
    %3651 = vmatprep.subr.mxu0 0.0
    %3652 = vmatpush2.msra.mxu0 0.0
    %3653 = vmatprep.subr.mxu0 0.0
    %3654 = vmatpush2.msra.mxu0 0.0
    %3655 = vmatprep.subr.mxu0 0.0
    %3656 = vmatpush2.msra.mxu0 0.0
    %3657 = vmatprep.subr.mxu0 0.0
    %3658 = vmatpush2.msra.mxu0 0.0
    %3659 = vmatprep.subr.mxu0 0.0
    %3660 = vmatpush2.msra.mxu0 0.0
    %3661 = vmatprep.subr.mxu0 0.0
    %3662 = vmatpush2.msra.mxu0 0.0
    %3663 = vmatprep.subr.mxu0 0.0
    %3664 = vmatpush2.msra.mxu0 0.0
    %3665 = vmatprep.subr.mxu0 0.0
    %3666 = vmatpush2.msra.mxu0 0.0
    %3667 = vmatprep.subr.mxu0 0.0
    %3668 = vmatpush2.msra.mxu0 0.0
    %3669 = vmatprep.subr.mxu0 0.0
    %3670 = vmatpush2.msra.mxu0 0.0
    %3671 = vmatprep.mubr.f32.mxu0 0.0
    %3672 = vmatmul.mubr.f32.gmra.mxu0 %v784
    %v3673 = vpop.f32.mrf.mxu0
    %v3674 = vadd.f32 0.0, %v3673
    %v3675 = vpop.f32.mrf.mxu0
    %3676 = vdwg.mxu0
    %v3678 = vsel %vm44, %v3594, 0
    %3680 = vmatprep.subr.mxu0 0.0
    %3681 = vmatpush1.msra.mxu0 0.0
    %3682 = vmatprep.subr.mxu0 0.0
    %3683 = vmatpush1.msra.mxu0 0.0
    %3684 = vmatprep.subr.mxu0 0.0
    %3685 = vmatpush1.msra.mxu0 0.0
    %3686 = vmatprep.subr.mxu0 0.0
    %3687 = vmatpush1.msra.mxu0 0.0
    %3688 = vmatprep.subr.mxu0 0.0
    %3689 = vmatpush1.msra.mxu0 0.0
    %3690 = vmatprep.subr.mxu0 0.0
    %3691 = vmatpush1.msra.mxu0 0.0
    %3692 = vmatprep.subr.mxu0 0.0
    %3693 = vmatpush1.msra.mxu0 0.0
    %3694 = vmatprep.subr.mxu0 0.0
    %3695 = vmatpush1.msra.mxu0 0.0
    %3696 = vmatprep.subr.mxu0 0.0
    %3697 = vmatpush1.msra.mxu0 0.0
    %3698 = vmatprep.subr.mxu0 0.0
    %3699 = vmatpush1.msra.mxu0 0.0
    %3700 = vmatprep.subr.mxu0 0.0
    %3701 = vmatpush1.msra.mxu0 0.0
    %3702 = vmatprep.subr.mxu0 0.0
    %3703 = vmatpush1.msra.mxu0 0.0
    %3704 = vmatprep.subr.mxu0 0.0
    %3705 = vmatpush1.msra.mxu0 %v3598
    %3706 = vmatprep.subr.mxu0 0.0
    %3707 = vmatpush1.msra.mxu0 %v3597
    %3708 = vmatprep.subr.mxu0 0.0
    %3709 = vmatpush1.msra.mxu0 %v3596
    %3710 = vmatprep.subr.mxu0 0.0
    %3711 = vmatpush1.msra.mxu0 %v3595
    %3712 = vmatprep.subr.mxu0 0.0
    %3713 = vmatpush2.msra.mxu0 0.0
    %3714 = vmatprep.subr.mxu0 0.0
    %3715 = vmatpush2.msra.mxu0 0.0
    %3716 = vmatprep.subr.mxu0 0.0
    %3717 = vmatpush2.msra.mxu0 0.0
    %3718 = vmatprep.subr.mxu0 0.0
    %3719 = vmatpush2.msra.mxu0 0.0
    %3720 = vmatprep.subr.mxu0 0.0
    %3721 = vmatpush2.msra.mxu0 0.0
    %3722 = vmatprep.subr.mxu0 0.0
    %3723 = vmatpush2.msra.mxu0 0.0
    %3724 = vmatprep.subr.mxu0 0.0
    %3725 = vmatpush2.msra.mxu0 0.0
    %3726 = vmatprep.subr.mxu0 0.0
    %3727 = vmatpush2.msra.mxu0 0.0
    %3728 = vmatprep.subr.mxu0 0.0
    %3729 = vmatpush2.msra.mxu0 0.0
    %3730 = vmatprep.subr.mxu0 0.0
    %3731 = vmatpush2.msra.mxu0 0.0
    %3732 = vmatprep.subr.mxu0 0.0
    %3733 = vmatpush2.msra.mxu0 0.0
    %3734 = vmatprep.subr.mxu0 0.0
    %3735 = vmatpush2.msra.mxu0 0.0
    %3736 = vmatprep.subr.mxu0 0.0
    %3737 = vmatpush2.msra.mxu0 0.0
    %3738 = vmatprep.subr.mxu0 0.0
    %3739 = vmatpush2.msra.mxu0 0.0
    %3740 = vmatprep.subr.mxu0 0.0
    %3741 = vmatpush2.msra.mxu0 0.0
    %3742 = vmatprep.subr.mxu0 0.0
    %3743 = vmatpush2.msra.mxu0 0.0
    %3744 = vmatprep.mubr.f32.mxu0 0.0
    %3745 = vmatmul.mubr.f32.gmra.mxu0 %v3678
    %v3746 = vpop.f32.mrf.mxu0
    %v3747 = vadd.f32 %v3674, %v3746
    %v3748 = vpop.f32.mrf.mxu0
    %3749 = vdwg.mxu0
    %v3750 = vlaneseq
    %v3751 = vshrl.u32 %v3750, 7
    %v3752 = vsub.s32 4, %v3751
    %v3753 = vrot.slane %v39, %v3752
    %v3754 = vadd.f32 %v3747, %v3753
    %v3755 = vmax.f32 %v3754, 0.0
    %3756 = vst.msk [vmem:[#allocation2] sm:$0xff] %vm44, %v3755
    // Predicated region
    $region22: #{tpu_custom_call.1} parent=1 // pred_check
      _
    $region23: #{tpu_custom_call.1} parent=1 // pred_check_branch
      %3758 = sbr.rel (0) target = $region25
    $region24: #{tpu_custom_call.1} parent=1 // pred_region
      %s3760 = ssub.s32 128, 128
      %3761 = vsyncadd [#allocation3], %s3760
      %s3763 = sshll.u32 [#allocation2], 4
      %s3764 = int_to_ptr.vmem [resolvable:$true] %s3763
      %3766 = dma.vmem_to_hbm [thread:$0]  %s3764, 128, %s5, [#allocation3]
    $region25: #{tpu_custom_call.1} parent=1 // pred_fallthru
      _
    // Predicated region
    $region26: #{tpu_custom_call.1} parent=1 // pred_check
      _
    $region27: #{tpu_custom_call.1} parent=1 // pred_check_branch
      %3768 = sbr.rel (0) target = $region29
    $region28: #{tpu_custom_call.1} parent=1 // pred_region
      %3769 = dma.done [#allocation3], 128
    $region29: #{tpu_custom_call.1} parent=1 // pred_fallthru
      _
    %3770 = vsyncpa [#allocation3], 1

</llo_original>
